<compile_context>
chip_gen: v5e
topology: v5e:2x2
jax: 0.10.0
libtpu: 0.0.40
codegen_flags: <defaults>
</compile_context>

<pallas_src>
import jax
import jax.numpy as jnp
from jax.experimental import pallas as pl
from jax.experimental.pallas import tpu as pltpu


def triple_conv_forward(x_ncdhw, params):
    """Fused TripleConv forward.

    x_ncdhw: (N, C, D, H, W) float32, PyTorch NCDHW layout.
    params:  list of 3 (w, b) with w: (Cout, Cin, 3, 3, 3), b: (Cout,)
             in PyTorch Conv3d layout.  Requires Cin == Cout == C.
    """
    N, C, D, H, W = x_ncdhw.shape
    HW = H * W
    DHW = D * HW
    K = 27 * C                                     # im2col contraction depth

    # Max flat-index shift of any 3x3x3 tap, rounded up to a full 128-lane
    # vreg so the interior write into the flat scratch is lane-aligned.
    max_shift = HW + W + 1
    PAD = ((max_shift + 127) // 128) * 128
    FLAT = 2 * PAD + DHW

    # --- one-time parameter prep (tiny): (Cout,Cin,3,3,3) -> (Cout, 27*Cin) bf16
    ws, bs = [], []
    for (w, b) in params:
        cout, cin = w.shape[0], w.shape[1]
        assert cin == C and cout == C, "TripleConv needs in_channels == out_channels"
        wk = jnp.transpose(w, (0, 2, 3, 4, 1)).reshape(cout, 27 * cin)
        ws.append(wk.astype(jnp.bfloat16))
        bs.append(b.reshape(cout, 1).astype(jnp.float32))

    # --- precomputed boundary masks: (27, DHW) {0,1} f32, VMEM-resident input.
    # Row t (t = kd*9 + kh*3 + kw, matching the weight flattening) is 1 where
    # the source voxel of tap t lies inside the valid D x H x W volume.  They
    # implement the zero padding (together with the zeroed guard bands) and
    # also zero the lane wrapped in by the pltpu.roll tap derivation.
    pos = jnp.arange(DHW, dtype=jnp.int32)
    dpos, hpos, wpos = pos // HW, (pos // W) % H, pos % W
    mask_rows = []
    for od in (-1, 0, 1):
        for oh in (-1, 0, 1):
            for ow in (-1, 0, 1):
                mask_rows.append((dpos + od >= 0) & (dpos + od < D) &
                                 (hpos + oh >= 0) & (hpos + oh < H) &
                                 (wpos + ow >= 0) & (wpos + ow < W))
    masks = jnp.stack(mask_rows).astype(jnp.float32)          # (27, DHW)

    # NCDHW -> (N, C, D*H*W): a free reshape (no transpose, no data movement).
    x_flat = x_ncdhw.reshape(N, C, DHW).astype(jnp.float32)

    def kernel(x_ref, mask_ref, w1_ref, b1_ref, w2_ref, b2_ref, w3_ref, b3_ref,
               o_ref, pad_ref, col_ref):
        # Zero ONLY the guard bands; the interior [PAD, PAD+DHW) is fully
        # overwritten by every layer.  Guard bands must never be written
        # anywhere else (all shifted reads below assume they stay zero).
        pad_ref[:, pl.ds(0, PAD)] = jnp.zeros((C, PAD), jnp.float32)
        pad_ref[:, pl.ds(PAD + DHW, PAD)] = jnp.zeros((C, PAD), jnp.float32)

        def conv3x3x3_relu(act, w_ref, b_ref):
            # act: (C, DHW) f32.
            pad_ref[:, pl.ds(PAD, DHW)] = act      # lane-aligned interior write
            t = 0
            for od in (-1, 0, 1):
                for oh in (-1, 0, 1):
                    # One load per (kd, kh); kw = +-1 derived on the XLU.
                    base = pad_ref[:, pl.ds(PAD + od * HW + oh * W, DHW)]
                    for ow in (-1, 0, 1):
                        if ow == 0:
                            patch = base
                        elif ow == 1:
                            # result[p] = base[p+1]; wrapped last lane is
                            # masked (w == W-1).
                            patch = pltpu.roll(base, shift=DHW - 1, axis=1)
                        else:
                            # result[p] = base[p-1]; wrapped first lane is
                            # masked (w == 0).
                            patch = pltpu.roll(base, shift=1, axis=1)
                        m = mask_ref[pl.ds(t, 1), :]              # (1, DHW)
                        col_ref[pl.ds(t * C, C), :] = (patch * m).astype(jnp.bfloat16)
                        t += 1
            # One deep MXU matmul per layer: bf16 operands, f32 accumulation.
            acc = jnp.dot(w_ref[...], col_ref[...],
                          preferred_element_type=jnp.float32)    # (C, DHW) f32
            return jnp.maximum(acc + b_ref[...], 0.0)            # bias + ReLU

        a = conv3x3x3_relu(x_ref[...], w1_ref, b1_ref)
        a = conv3x3x3_relu(a, w2_ref, b2_ref)
        a = conv3x3x3_relu(a, w3_ref, b3_ref)
        o_ref[...] = a.astype(o_ref.dtype)             # lane-dense (C, 512) store

    act_spec = pl.BlockSpec((None, C, DHW), lambda n: (n, 0, 0))
    # Grid-invariant operands (constant index_map): stay VMEM-resident.
    mask_spec = pl.BlockSpec((27, DHW), lambda n: (0, 0))
    w_spec = pl.BlockSpec((C, K), lambda n: (0, 0))
    b_spec = pl.BlockSpec((C, 1), lambda n: (0, 0))

    out = pl.pallas_call(
        kernel,
        out_shape=jax.ShapeDtypeStruct((N, C, DHW), jnp.float32),
        grid=(N,),
        in_specs=[act_spec, mask_spec,
                  w_spec, b_spec, w_spec, b_spec, w_spec, b_spec],
        out_specs=act_spec,
        scratch_shapes=[
            pltpu.VMEM((C, FLAT), jnp.float32),   # flat activation + guard bands
            pltpu.VMEM((K, DHW), jnp.bfloat16),   # bf16 im2col tile (27*C, DHW)
        ],
        compiler_params=pltpu.CompilerParams(
            dimension_semantics=("parallel",)),
    )(x_flat, masks, ws[0], bs[0], ws[1], bs[1], ws[2], bs[2])

    return out.reshape(N, C, D, H, W)


# ----------------------------- references ----------------------------------

def _ref_conv3d_relu(x_ncdhw, w, b, operand_dtype):
    """lax reference: Conv3d(k=3, s=1, p=1) + bias + ReLU in NCDHW."""
    y = jax.lax.conv_general_dilated(
        x_ncdhw.astype(operand_dtype), w.astype(operand_dtype),
        window_strides=(1, 1, 1), padding="SAME",
        dimension_numbers=("NCDHW", "OIDHW", "NCDHW"),
        preferred_element_type=jnp.float32)
    return jax.nn.relu(y + b.reshape(1, -1, 1, 1, 1))


def _ref_triple_conv(x_ncdhw, params, operand_dtype=jnp.float32):
    y = x_ncdhw
    for (w, b) in params:
        y = _ref_conv3d_relu(y, w, b, operand_dtype)
    return y


if __name__ == "__main__":
    # in_channels == out_channels == 8 (required by the module's 3rd conv).
    N, C, D, H, W = 2, 8, 8, 8, 8

    key = jax.random.PRNGKey(0)
    ks = jax.random.split(key, 7)
    x = jax.random.normal(ks[0], (N, C, D, H, W), jnp.float32)

    def make_conv_params(kw_key, kb_key, cin, cout):
        w = jax.random.normal(kw_key, (cout, cin, 3, 3, 3), jnp.float32) * 0.1
        b = jax.random.normal(kb_key, (cout,), jnp.float32) * 0.1
        return (w, b)

    params = [
        make_conv_params(ks[1], ks[2], C, C),   # Conv3d(in_channels, channels)
        make_conv_params(ks[3], ks[4], C, C),   # Conv3d(channels, out_channels)
        make_conv_params(ks[5], ks[6], C, C),   # Conv3d(in_channels, channels)
    ]

    y = triple_conv_forward(x, params)
    jax.block_until_ready(y)
    assert y.shape == (N, C, D, H, W)

    # Precision-matched reference: bf16 operands + f32 accumulation, i.e. the
    # same MXU numerics as the kernel -> tight tolerance.
    y_ref_bf16 = _ref_triple_conv(x, params, operand_dtype=jnp.bfloat16)
    assert jnp.allclose(y, y_ref_bf16, rtol=1e-3, atol=1e-3), \
        "mismatch vs precision-matched XLA reference"

    # Loose sanity check against the full-f32 reference (difference is only
    # the bf16 rounding of the matmul operands).
    y_ref_f32 = _ref_triple_conv(x, params, operand_dtype=jnp.float32)
    assert jnp.allclose(y, y_ref_f32, rtol=5e-2, atol=1e-1), \
        "mismatch vs f32 XLA reference"

    print("KERNEL_OK")
</pallas_src>

<mosaic_0001>
module attributes {stable_mosaic.version = 11 : i64} {
  func.func @kernel(%arg0: i32, %arg1: memref<1x8x512xf32, #tpu.memory_space<vmem>>, %arg2: memref<27x512xf32, #tpu.memory_space<vmem>>, %arg3: memref<8x216xbf16, #tpu.memory_space<vmem>>, %arg4: memref<8x1xf32, #tpu.memory_space<vmem>>, %arg5: memref<8x216xbf16, #tpu.memory_space<vmem>>, %arg6: memref<8x1xf32, #tpu.memory_space<vmem>>, %arg7: memref<8x216xbf16, #tpu.memory_space<vmem>>, %arg8: memref<8x1xf32, #tpu.memory_space<vmem>>, %arg9: memref<1x8x512xf32, #tpu.memory_space<vmem>>, %arg10: memref<8x768xf32, #tpu.memory_space<vmem>>, %arg11: memref<216x512xbf16, #tpu.memory_space<vmem>>) attributes {dimension_semantics = [#tpu.dimension_semantics<parallel>], iteration_bounds = array<i64: 2>, scalar_prefetch = 0 : i64, scratch_operands = 2 : i64, tpu.core_type = #tpu.core_type<tc>, window_params = [{transform_indices = @transform_0, window_bounds = array<i64: 1, 8, 512>}, {pipeline_mode = #tpu.pipeline_mode<synchronous>, transform_indices = @transform_1, window_bounds = array<i64: 27, 512>}, {pipeline_mode = #tpu.pipeline_mode<synchronous>, transform_indices = @transform_2, window_bounds = array<i64: 8, 216>}, {pipeline_mode = #tpu.pipeline_mode<synchronous>, transform_indices = @transform_3, window_bounds = array<i64: 8, 1>}, {pipeline_mode = #tpu.pipeline_mode<synchronous>, transform_indices = @transform_4, window_bounds = array<i64: 8, 216>}, {pipeline_mode = #tpu.pipeline_mode<synchronous>, transform_indices = @transform_5, window_bounds = array<i64: 8, 1>}, {pipeline_mode = #tpu.pipeline_mode<synchronous>, transform_indices = @transform_6, window_bounds = array<i64: 8, 216>}, {pipeline_mode = #tpu.pipeline_mode<synchronous>, transform_indices = @transform_7, window_bounds = array<i64: 8, 1>}, {transform_indices = @transform_8, window_bounds = array<i64: 1, 8, 512>}]} {
    %cst = arith.constant 0.000000e+00 : f32
    %0 = vector.broadcast %cst : f32 to vector<8x128xf32>
    %c0 = arith.constant 0 : index
    %c0_0 = arith.constant 0 : index
    %1 = vector.load %arg10[%c0, %c0_0] : memref<8x768xf32, #tpu.memory_space<vmem>>, vector<8x128xf32>
    tpu.vector_store %arg10[%c0, %c0_0], %0 {strides = array<i32>} : memref<8x768xf32, #tpu.memory_space<vmem>>, vector<8x128xf32>,
    %cst_1 = arith.constant 0.000000e+00 : f32
    %2 = vector.broadcast %cst_1 : f32 to vector<8x128xf32>
    %c0_2 = arith.constant 0 : index
    %c640 = arith.constant 640 : index
    %3 = vector.load %arg10[%c0_2, %c640] : memref<8x768xf32, #tpu.memory_space<vmem>>, vector<8x128xf32>
    tpu.vector_store %arg10[%c0_2, %c640], %2 {strides = array<i32>} : memref<8x768xf32, #tpu.memory_space<vmem>>, vector<8x128xf32>,
    %c0_3 = arith.constant 0 : index
    %c0_4 = arith.constant 0 : index
    %c0_5 = arith.constant 0 : index
    %4 = vector.load %arg1[%c0_3, %c0_4, %c0_5] : memref<1x8x512xf32, #tpu.memory_space<vmem>>, vector<1x8x512xf32>
    %5 = vector.shape_cast %4 : vector<1x8x512xf32> to vector<8x512xf32>
    %c0_6 = arith.constant 0 : index
    %c128 = arith.constant 128 : index
    %6 = vector.load %arg10[%c0_6, %c128] : memref<8x768xf32, #tpu.memory_space<vmem>>, vector<8x512xf32>
    tpu.vector_store %arg10[%c0_6, %c128], %5 {strides = array<i32>} : memref<8x768xf32, #tpu.memory_space<vmem>>, vector<8x512xf32>,
    %c0_7 = arith.constant 0 : index
    %c56 = arith.constant 56 : index
    %7 = vector.load %arg10[%c0_7, %c56] : memref<8x768xf32, #tpu.memory_space<vmem>>, vector<8x512xf32>
    %c1_i32 = arith.constant 1 : i32
    %8 = tpu.dynamic_rotate %7 by %c1_i32 dim 1 : vector<8x512xf32>, i32 -> vector<8x512xf32>
    %c0_8 = arith.constant 0 : index
    %c0_9 = arith.constant 0 : index
    %9 = vector.load %arg2[%c0_8, %c0_9] : memref<27x512xf32, #tpu.memory_space<vmem>>, vector<1x512xf32>
    %10 = vector.broadcast %9 : vector<1x512xf32> to vector<8x512xf32>
    %11 = arith.mulf %8, %10 : vector<8x512xf32>
    %12 = arith.truncf %11 : vector<8x512xf32> to vector<8x512xbf16>
    %c0_10 = arith.constant 0 : index
    %c0_11 = arith.constant 0 : index
    %13 = vector.load %arg11[%c0_10, %c0_11] : memref<216x512xbf16, #tpu.memory_space<vmem>>, vector<8x512xbf16>
    tpu.vector_store %arg11[%c0_10, %c0_11], %12 {strides = array<i32>} : memref<216x512xbf16, #tpu.memory_space<vmem>>, vector<8x512xbf16>,
    %c1 = arith.constant 1 : index
    %c0_12 = arith.constant 0 : index
    %14 = vector.load %arg2[%c1, %c0_12] : memref<27x512xf32, #tpu.memory_space<vmem>>, vector<1x512xf32>
    %15 = vector.broadcast %14 : vector<1x512xf32> to vector<8x512xf32>
    %16 = arith.mulf %7, %15 : vector<8x512xf32>
    %17 = arith.truncf %16 : vector<8x512xf32> to vector<8x512xbf16>
    %c8 = arith.constant 8 : index
    %c0_13 = arith.constant 0 : index
    %18 = vector.load %arg11[%c8, %c0_13] : memref<216x512xbf16, #tpu.memory_space<vmem>>, vector<8x512xbf16>
    tpu.vector_store %arg11[%c8, %c0_13], %17 {strides = array<i32>} : memref<216x512xbf16, #tpu.memory_space<vmem>>, vector<8x512xbf16>,
    %c511_i32 = arith.constant 511 : i32
    %19 = tpu.dynamic_rotate %7 by %c511_i32 dim 1 : vector<8x512xf32>, i32 -> vector<8x512xf32>
    %c2 = arith.constant 2 : index
    %c0_14 = arith.constant 0 : index
    %20 = vector.load %arg2[%c2, %c0_14] : memref<27x512xf32, #tpu.memory_space<vmem>>, vector<1x512xf32>
    %21 = vector.broadcast %20 : vector<1x512xf32> to vector<8x512xf32>
    %22 = arith.mulf %19, %21 : vector<8x512xf32>
    %23 = arith.truncf %22 : vector<8x512xf32> to vector<8x512xbf16>
    %c16 = arith.constant 16 : index
    %c0_15 = arith.constant 0 : index
    %24 = vector.load %arg11[%c16, %c0_15] : memref<216x512xbf16, #tpu.memory_space<vmem>>, vector<8x512xbf16>
    tpu.vector_store %arg11[%c16, %c0_15], %23 {strides = array<i32>} : memref<216x512xbf16, #tpu.memory_space<vmem>>, vector<8x512xbf16>,
    %c0_16 = arith.constant 0 : index
    %c64 = arith.constant 64 : index
    %25 = vector.load %arg10[%c0_16, %c64] : memref<8x768xf32, #tpu.memory_space<vmem>>, vector<8x512xf32>
    %c1_i32_17 = arith.constant 1 : i32
    %26 = tpu.dynamic_rotate %25 by %c1_i32_17 dim 1 : vector<8x512xf32>, i32 -> vector<8x512xf32>
    %c3 = arith.constant 3 : index
    %c0_18 = arith.constant 0 : index
    %27 = vector.load %arg2[%c3, %c0_18] : memref<27x512xf32, #tpu.memory_space<vmem>>, vector<1x512xf32>
    %28 = vector.broadcast %27 : vector<1x512xf32> to vector<8x512xf32>
    %29 = arith.mulf %26, %28 : vector<8x512xf32>
    %30 = arith.truncf %29 : vector<8x512xf32> to vector<8x512xbf16>
    %c24 = arith.constant 24 : index
    %c0_19 = arith.constant 0 : index
    %31 = vector.load %arg11[%c24, %c0_19] : memref<216x512xbf16, #tpu.memory_space<vmem>>, vector<8x512xbf16>
    tpu.vector_store %arg11[%c24, %c0_19], %30 {strides = array<i32>} : memref<216x512xbf16, #tpu.memory_space<vmem>>, vector<8x512xbf16>,
    %c4 = arith.constant 4 : index
    %c0_20 = arith.constant 0 : index
    %32 = vector.load %arg2[%c4, %c0_20] : memref<27x512xf32, #tpu.memory_space<vmem>>, vector<1x512xf32>
    %33 = vector.broadcast %32 : vector<1x512xf32> to vector<8x512xf32>
    %34 = arith.mulf %25, %33 : vector<8x512xf32>
    %35 = arith.truncf %34 : vector<8x512xf32> to vector<8x512xbf16>
    %c32 = arith.constant 32 : index
    %c0_21 = arith.constant 0 : index
    %36 = vector.load %arg11[%c32, %c0_21] : memref<216x512xbf16, #tpu.memory_space<vmem>>, vector<8x512xbf16>
    tpu.vector_store %arg11[%c32, %c0_21], %35 {strides = array<i32>} : memref<216x512xbf16, #tpu.memory_space<vmem>>, vector<8x512xbf16>,
    %c511_i32_22 = arith.constant 511 : i32
    %37 = tpu.dynamic_rotate %25 by %c511_i32_22 dim 1 : vector<8x512xf32>, i32 -> vector<8x512xf32>
    %c5 = arith.constant 5 : index
    %c0_23 = arith.constant 0 : index
    %38 = vector.load %arg2[%c5, %c0_23] : memref<27x512xf32, #tpu.memory_space<vmem>>, vector<1x512xf32>
    %39 = vector.broadcast %38 : vector<1x512xf32> to vector<8x512xf32>
    %40 = arith.mulf %37, %39 : vector<8x512xf32>
    %41 = arith.truncf %40 : vector<8x512xf32> to vector<8x512xbf16>
    %c40 = arith.constant 40 : index
    %c0_24 = arith.constant 0 : index
    %42 = vector.load %arg11[%c40, %c0_24] : memref<216x512xbf16, #tpu.memory_space<vmem>>, vector<8x512xbf16>
    tpu.vector_store %arg11[%c40, %c0_24], %41 {strides = array<i32>} : memref<216x512xbf16, #tpu.memory_space<vmem>>, vector<8x512xbf16>,
    %c0_25 = arith.constant 0 : index
    %c72 = arith.constant 72 : index
    %43 = vector.load %arg10[%c0_25, %c72] : memref<8x768xf32, #tpu.memory_space<vmem>>, vector<8x512xf32>
    %c1_i32_26 = arith.constant 1 : i32
    %44 = tpu.dynamic_rotate %43 by %c1_i32_26 dim 1 : vector<8x512xf32>, i32 -> vector<8x512xf32>
    %c6 = arith.constant 6 : index
    %c0_27 = arith.constant 0 : index
    %45 = vector.load %arg2[%c6, %c0_27] : memref<27x512xf32, #tpu.memory_space<vmem>>, vector<1x512xf32>
    %46 = vector.broadcast %45 : vector<1x512xf32> to vector<8x512xf32>
    %47 = arith.mulf %44, %46 : vector<8x512xf32>
    %48 = arith.truncf %47 : vector<8x512xf32> to vector<8x512xbf16>
    %c48 = arith.constant 48 : index
    %c0_28 = arith.constant 0 : index
    %49 = vector.load %arg11[%c48, %c0_28] : memref<216x512xbf16, #tpu.memory_space<vmem>>, vector<8x512xbf16>
    tpu.vector_store %arg11[%c48, %c0_28], %48 {strides = array<i32>} : memref<216x512xbf16, #tpu.memory_space<vmem>>, vector<8x512xbf16>,
    %c7 = arith.constant 7 : index
    %c0_29 = arith.constant 0 : index
    %50 = vector.load %arg2[%c7, %c0_29] : memref<27x512xf32, #tpu.memory_space<vmem>>, vector<1x512xf32>
    %51 = vector.broadcast %50 : vector<1x512xf32> to vector<8x512xf32>
    %52 = arith.mulf %43, %51 : vector<8x512xf32>
    %53 = arith.truncf %52 : vector<8x512xf32> to vector<8x512xbf16>
    %c56_30 = arith.constant 56 : index
    %c0_31 = arith.constant 0 : index
    %54 = vector.load %arg11[%c56_30, %c0_31] : memref<216x512xbf16, #tpu.memory_space<vmem>>, vector<8x512xbf16>
    tpu.vector_store %arg11[%c56_30, %c0_31], %53 {strides = array<i32>} : memref<216x512xbf16, #tpu.memory_space<vmem>>, vector<8x512xbf16>,
    %c511_i32_32 = arith.constant 511 : i32
    %55 = tpu.dynamic_rotate %43 by %c511_i32_32 dim 1 : vector<8x512xf32>, i32 -> vector<8x512xf32>
    %c8_33 = arith.constant 8 : index
    %c0_34 = arith.constant 0 : index
    %56 = vector.load %arg2[%c8_33, %c0_34] : memref<27x512xf32, #tpu.memory_space<vmem>>, vector<1x512xf32>
    %57 = vector.broadcast %56 : vector<1x512xf32> to vector<8x512xf32>
    %58 = arith.mulf %55, %57 : vector<8x512xf32>
    %59 = arith.truncf %58 : vector<8x512xf32> to vector<8x512xbf16>
    %c64_35 = arith.constant 64 : index
    %c0_36 = arith.constant 0 : index
    %60 = vector.load %arg11[%c64_35, %c0_36] : memref<216x512xbf16, #tpu.memory_space<vmem>>, vector<8x512xbf16>
    tpu.vector_store %arg11[%c64_35, %c0_36], %59 {strides = array<i32>} : memref<216x512xbf16, #tpu.memory_space<vmem>>, vector<8x512xbf16>,
    %c0_37 = arith.constant 0 : index
    %c120 = arith.constant 120 : index
    %61 = vector.load %arg10[%c0_37, %c120] : memref<8x768xf32, #tpu.memory_space<vmem>>, vector<8x512xf32>
    %c1_i32_38 = arith.constant 1 : i32
    %62 = tpu.dynamic_rotate %61 by %c1_i32_38 dim 1 : vector<8x512xf32>, i32 -> vector<8x512xf32>
    %c9 = arith.constant 9 : index
    %c0_39 = arith.constant 0 : index
    %63 = vector.load %arg2[%c9, %c0_39] : memref<27x512xf32, #tpu.memory_space<vmem>>, vector<1x512xf32>
    %64 = vector.broadcast %63 : vector<1x512xf32> to vector<8x512xf32>
    %65 = arith.mulf %62, %64 : vector<8x512xf32>
    %66 = arith.truncf %65 : vector<8x512xf32> to vector<8x512xbf16>
    %c72_40 = arith.constant 72 : index
    %c0_41 = arith.constant 0 : index
    %67 = vector.load %arg11[%c72_40, %c0_41] : memref<216x512xbf16, #tpu.memory_space<vmem>>, vector<8x512xbf16>
    tpu.vector_store %arg11[%c72_40, %c0_41], %66 {strides = array<i32>} : memref<216x512xbf16, #tpu.memory_space<vmem>>, vector<8x512xbf16>,
    %c10 = arith.constant 10 : index
    %c0_42 = arith.constant 0 : index
    %68 = vector.load %arg2[%c10, %c0_42] : memref<27x512xf32, #tpu.memory_space<vmem>>, vector<1x512xf32>
    %69 = vector.broadcast %68 : vector<1x512xf32> to vector<8x512xf32>
    %70 = arith.mulf %61, %69 : vector<8x512xf32>
    %71 = arith.truncf %70 : vector<8x512xf32> to vector<8x512xbf16>
    %c80 = arith.constant 80 : index
    %c0_43 = arith.constant 0 : index
    %72 = vector.load %arg11[%c80, %c0_43] : memref<216x512xbf16, #tpu.memory_space<vmem>>, vector<8x512xbf16>
    tpu.vector_store %arg11[%c80, %c0_43], %71 {strides = array<i32>} : memref<216x512xbf16, #tpu.memory_space<vmem>>, vector<8x512xbf16>,
    %c511_i32_44 = arith.constant 511 : i32
    %73 = tpu.dynamic_rotate %61 by %c511_i32_44 dim 1 : vector<8x512xf32>, i32 -> vector<8x512xf32>
    %c11 = arith.constant 11 : index
    %c0_45 = arith.constant 0 : index
    %74 = vector.load %arg2[%c11, %c0_45] : memref<27x512xf32, #tpu.memory_space<vmem>>, vector<1x512xf32>
    %75 = vector.broadcast %74 : vector<1x512xf32> to vector<8x512xf32>
    %76 = arith.mulf %73, %75 : vector<8x512xf32>
    %77 = arith.truncf %76 : vector<8x512xf32> to vector<8x512xbf16>
    %c88 = arith.constant 88 : index
    %c0_46 = arith.constant 0 : index
    %78 = vector.load %arg11[%c88, %c0_46] : memref<216x512xbf16, #tpu.memory_space<vmem>>, vector<8x512xbf16>
    tpu.vector_store %arg11[%c88, %c0_46], %77 {strides = array<i32>} : memref<216x512xbf16, #tpu.memory_space<vmem>>, vector<8x512xbf16>,
    %c0_47 = arith.constant 0 : index
    %c128_48 = arith.constant 128 : index
    %79 = vector.load %arg10[%c0_47, %c128_48] : memref<8x768xf32, #tpu.memory_space<vmem>>, vector<8x512xf32>
    %c1_i32_49 = arith.constant 1 : i32
    %80 = tpu.dynamic_rotate %79 by %c1_i32_49 dim 1 : vector<8x512xf32>, i32 -> vector<8x512xf32>
    %c12 = arith.constant 12 : index
    %c0_50 = arith.constant 0 : index
    %81 = vector.load %arg2[%c12, %c0_50] : memref<27x512xf32, #tpu.memory_space<vmem>>, vector<1x512xf32>
    %82 = vector.broadcast %81 : vector<1x512xf32> to vector<8x512xf32>
    %83 = arith.mulf %80, %82 : vector<8x512xf32>
    %84 = arith.truncf %83 : vector<8x512xf32> to vector<8x512xbf16>
    %c96 = arith.constant 96 : index
    %c0_51 = arith.constant 0 : index
    %85 = vector.load %arg11[%c96, %c0_51] : memref<216x512xbf16, #tpu.memory_space<vmem>>, vector<8x512xbf16>
    tpu.vector_store %arg11[%c96, %c0_51], %84 {strides = array<i32>} : memref<216x512xbf16, #tpu.memory_space<vmem>>, vector<8x512xbf16>,
    %c13 = arith.constant 13 : index
    %c0_52 = arith.constant 0 : index
    %86 = vector.load %arg2[%c13, %c0_52] : memref<27x512xf32, #tpu.memory_space<vmem>>, vector<1x512xf32>
    %87 = vector.broadcast %86 : vector<1x512xf32> to vector<8x512xf32>
    %88 = arith.mulf %79, %87 : vector<8x512xf32>
    %89 = arith.truncf %88 : vector<8x512xf32> to vector<8x512xbf16>
    %c104 = arith.constant 104 : index
    %c0_53 = arith.constant 0 : index
    %90 = vector.load %arg11[%c104, %c0_53] : memref<216x512xbf16, #tpu.memory_space<vmem>>, vector<8x512xbf16>
    tpu.vector_store %arg11[%c104, %c0_53], %89 {strides = array<i32>} : memref<216x512xbf16, #tpu.memory_space<vmem>>, vector<8x512xbf16>,
    %c511_i32_54 = arith.constant 511 : i32
    %91 = tpu.dynamic_rotate %79 by %c511_i32_54 dim 1 : vector<8x512xf32>, i32 -> vector<8x512xf32>
    %c14 = arith.constant 14 : index
    %c0_55 = arith.constant 0 : index
    %92 = vector.load %arg2[%c14, %c0_55] : memref<27x512xf32, #tpu.memory_space<vmem>>, vector<1x512xf32>
    %93 = vector.broadcast %92 : vector<1x512xf32> to vector<8x512xf32>
    %94 = arith.mulf %91, %93 : vector<8x512xf32>
    %95 = arith.truncf %94 : vector<8x512xf32> to vector<8x512xbf16>
    %c112 = arith.constant 112 : index
    %c0_56 = arith.constant 0 : index
    %96 = vector.load %arg11[%c112, %c0_56] : memref<216x512xbf16, #tpu.memory_space<vmem>>, vector<8x512xbf16>
    tpu.vector_store %arg11[%c112, %c0_56], %95 {strides = array<i32>} : memref<216x512xbf16, #tpu.memory_space<vmem>>, vector<8x512xbf16>,
    %c0_57 = arith.constant 0 : index
    %c136 = arith.constant 136 : index
    %97 = vector.load %arg10[%c0_57, %c136] : memref<8x768xf32, #tpu.memory_space<vmem>>, vector<8x512xf32>
    %c1_i32_58 = arith.constant 1 : i32
    %98 = tpu.dynamic_rotate %97 by %c1_i32_58 dim 1 : vector<8x512xf32>, i32 -> vector<8x512xf32>
    %c15 = arith.constant 15 : index
    %c0_59 = arith.constant 0 : index
    %99 = vector.load %arg2[%c15, %c0_59] : memref<27x512xf32, #tpu.memory_space<vmem>>, vector<1x512xf32>
    %100 = vector.broadcast %99 : vector<1x512xf32> to vector<8x512xf32>
    %101 = arith.mulf %98, %100 : vector<8x512xf32>
    %102 = arith.truncf %101 : vector<8x512xf32> to vector<8x512xbf16>
    %c120_60 = arith.constant 120 : index
    %c0_61 = arith.constant 0 : index
    %103 = vector.load %arg11[%c120_60, %c0_61] : memref<216x512xbf16, #tpu.memory_space<vmem>>, vector<8x512xbf16>
    tpu.vector_store %arg11[%c120_60, %c0_61], %102 {strides = array<i32>} : memref<216x512xbf16, #tpu.memory_space<vmem>>, vector<8x512xbf16>,
    %c16_62 = arith.constant 16 : index
    %c0_63 = arith.constant 0 : index
    %104 = vector.load %arg2[%c16_62, %c0_63] : memref<27x512xf32, #tpu.memory_space<vmem>>, vector<1x512xf32>
    %105 = vector.broadcast %104 : vector<1x512xf32> to vector<8x512xf32>
    %106 = arith.mulf %97, %105 : vector<8x512xf32>
    %107 = arith.truncf %106 : vector<8x512xf32> to vector<8x512xbf16>
    %c128_64 = arith.constant 128 : index
    %c0_65 = arith.constant 0 : index
    %108 = vector.load %arg11[%c128_64, %c0_65] : memref<216x512xbf16, #tpu.memory_space<vmem>>, vector<8x512xbf16>
    tpu.vector_store %arg11[%c128_64, %c0_65], %107 {strides = array<i32>} : memref<216x512xbf16, #tpu.memory_space<vmem>>, vector<8x512xbf16>,
    %c511_i32_66 = arith.constant 511 : i32
    %109 = tpu.dynamic_rotate %97 by %c511_i32_66 dim 1 : vector<8x512xf32>, i32 -> vector<8x512xf32>
    %c17 = arith.constant 17 : index
    %c0_67 = arith.constant 0 : index
    %110 = vector.load %arg2[%c17, %c0_67] : memref<27x512xf32, #tpu.memory_space<vmem>>, vector<1x512xf32>
    %111 = vector.broadcast %110 : vector<1x512xf32> to vector<8x512xf32>
    %112 = arith.mulf %109, %111 : vector<8x512xf32>
    %113 = arith.truncf %112 : vector<8x512xf32> to vector<8x512xbf16>
    %c136_68 = arith.constant 136 : index
    %c0_69 = arith.constant 0 : index
    %114 = vector.load %arg11[%c136_68, %c0_69] : memref<216x512xbf16, #tpu.memory_space<vmem>>, vector<8x512xbf16>
    tpu.vector_store %arg11[%c136_68, %c0_69], %113 {strides = array<i32>} : memref<216x512xbf16, #tpu.memory_space<vmem>>, vector<8x512xbf16>,
    %c0_70 = arith.constant 0 : index
    %c184 = arith.constant 184 : index
    %115 = vector.load %arg10[%c0_70, %c184] : memref<8x768xf32, #tpu.memory_space<vmem>>, vector<8x512xf32>
    %c1_i32_71 = arith.constant 1 : i32
    %116 = tpu.dynamic_rotate %115 by %c1_i32_71 dim 1 : vector<8x512xf32>, i32 -> vector<8x512xf32>
    %c18 = arith.constant 18 : index
    %c0_72 = arith.constant 0 : index
    %117 = vector.load %arg2[%c18, %c0_72] : memref<27x512xf32, #tpu.memory_space<vmem>>, vector<1x512xf32>
    %118 = vector.broadcast %117 : vector<1x512xf32> to vector<8x512xf32>
    %119 = arith.mulf %116, %118 : vector<8x512xf32>
    %120 = arith.truncf %119 : vector<8x512xf32> to vector<8x512xbf16>
    %c144 = arith.constant 144 : index
    %c0_73 = arith.constant 0 : index
    %121 = vector.load %arg11[%c144, %c0_73] : memref<216x512xbf16, #tpu.memory_space<vmem>>, vector<8x512xbf16>
    tpu.vector_store %arg11[%c144, %c0_73], %120 {strides = array<i32>} : memref<216x512xbf16, #tpu.memory_space<vmem>>, vector<8x512xbf16>,
    %c19 = arith.constant 19 : index
    %c0_74 = arith.constant 0 : index
    %122 = vector.load %arg2[%c19, %c0_74] : memref<27x512xf32, #tpu.memory_space<vmem>>, vector<1x512xf32>
    %123 = vector.broadcast %122 : vector<1x512xf32> to vector<8x512xf32>
    %124 = arith.mulf %115, %123 : vector<8x512xf32>
    %125 = arith.truncf %124 : vector<8x512xf32> to vector<8x512xbf16>
    %c152 = arith.constant 152 : index
    %c0_75 = arith.constant 0 : index
    %126 = vector.load %arg11[%c152, %c0_75] : memref<216x512xbf16, #tpu.memory_space<vmem>>, vector<8x512xbf16>
    tpu.vector_store %arg11[%c152, %c0_75], %125 {strides = array<i32>} : memref<216x512xbf16, #tpu.memory_space<vmem>>, vector<8x512xbf16>,
    %c511_i32_76 = arith.constant 511 : i32
    %127 = tpu.dynamic_rotate %115 by %c511_i32_76 dim 1 : vector<8x512xf32>, i32 -> vector<8x512xf32>
    %c20 = arith.constant 20 : index
    %c0_77 = arith.constant 0 : index
    %128 = vector.load %arg2[%c20, %c0_77] : memref<27x512xf32, #tpu.memory_space<vmem>>, vector<1x512xf32>
    %129 = vector.broadcast %128 : vector<1x512xf32> to vector<8x512xf32>
    %130 = arith.mulf %127, %129 : vector<8x512xf32>
    %131 = arith.truncf %130 : vector<8x512xf32> to vector<8x512xbf16>
    %c160 = arith.constant 160 : index
    %c0_78 = arith.constant 0 : index
    %132 = vector.load %arg11[%c160, %c0_78] : memref<216x512xbf16, #tpu.memory_space<vmem>>, vector<8x512xbf16>
    tpu.vector_store %arg11[%c160, %c0_78], %131 {strides = array<i32>} : memref<216x512xbf16, #tpu.memory_space<vmem>>, vector<8x512xbf16>,
    %c0_79 = arith.constant 0 : index
    %c192 = arith.constant 192 : index
    %133 = vector.load %arg10[%c0_79, %c192] : memref<8x768xf32, #tpu.memory_space<vmem>>, vector<8x512xf32>
    %c1_i32_80 = arith.constant 1 : i32
    %134 = tpu.dynamic_rotate %133 by %c1_i32_80 dim 1 : vector<8x512xf32>, i32 -> vector<8x512xf32>
    %c21 = arith.constant 21 : index
    %c0_81 = arith.constant 0 : index
    %135 = vector.load %arg2[%c21, %c0_81] : memref<27x512xf32, #tpu.memory_space<vmem>>, vector<1x512xf32>
    %136 = vector.broadcast %135 : vector<1x512xf32> to vector<8x512xf32>
    %137 = arith.mulf %134, %136 : vector<8x512xf32>
    %138 = arith.truncf %137 : vector<8x512xf32> to vector<8x512xbf16>
    %c168 = arith.constant 168 : index
    %c0_82 = arith.constant 0 : index
    %139 = vector.load %arg11[%c168, %c0_82] : memref<216x512xbf16, #tpu.memory_space<vmem>>, vector<8x512xbf16>
    tpu.vector_store %arg11[%c168, %c0_82], %138 {strides = array<i32>} : memref<216x512xbf16, #tpu.memory_space<vmem>>, vector<8x512xbf16>,
    %c22 = arith.constant 22 : index
    %c0_83 = arith.constant 0 : index
    %140 = vector.load %arg2[%c22, %c0_83] : memref<27x512xf32, #tpu.memory_space<vmem>>, vector<1x512xf32>
    %141 = vector.broadcast %140 : vector<1x512xf32> to vector<8x512xf32>
    %142 = arith.mulf %133, %141 : vector<8x512xf32>
    %143 = arith.truncf %142 : vector<8x512xf32> to vector<8x512xbf16>
    %c176 = arith.constant 176 : index
    %c0_84 = arith.constant 0 : index
    %144 = vector.load %arg11[%c176, %c0_84] : memref<216x512xbf16, #tpu.memory_space<vmem>>, vector<8x512xbf16>
    tpu.vector_store %arg11[%c176, %c0_84], %143 {strides = array<i32>} : memref<216x512xbf16, #tpu.memory_space<vmem>>, vector<8x512xbf16>,
    %c511_i32_85 = arith.constant 511 : i32
    %145 = tpu.dynamic_rotate %133 by %c511_i32_85 dim 1 : vector<8x512xf32>, i32 -> vector<8x512xf32>
    %c23 = arith.constant 23 : index
    %c0_86 = arith.constant 0 : index
    %146 = vector.load %arg2[%c23, %c0_86] : memref<27x512xf32, #tpu.memory_space<vmem>>, vector<1x512xf32>
    %147 = vector.broadcast %146 : vector<1x512xf32> to vector<8x512xf32>
    %148 = arith.mulf %145, %147 : vector<8x512xf32>
    %149 = arith.truncf %148 : vector<8x512xf32> to vector<8x512xbf16>
    %c184_87 = arith.constant 184 : index
    %c0_88 = arith.constant 0 : index
    %150 = vector.load %arg11[%c184_87, %c0_88] : memref<216x512xbf16, #tpu.memory_space<vmem>>, vector<8x512xbf16>
    tpu.vector_store %arg11[%c184_87, %c0_88], %149 {strides = array<i32>} : memref<216x512xbf16, #tpu.memory_space<vmem>>, vector<8x512xbf16>,
    %c0_89 = arith.constant 0 : index
    %c200 = arith.constant 200 : index
    %151 = vector.load %arg10[%c0_89, %c200] : memref<8x768xf32, #tpu.memory_space<vmem>>, vector<8x512xf32>
    %c1_i32_90 = arith.constant 1 : i32
    %152 = tpu.dynamic_rotate %151 by %c1_i32_90 dim 1 : vector<8x512xf32>, i32 -> vector<8x512xf32>
    %c24_91 = arith.constant 24 : index
    %c0_92 = arith.constant 0 : index
    %153 = vector.load %arg2[%c24_91, %c0_92] : memref<27x512xf32, #tpu.memory_space<vmem>>, vector<1x512xf32>
    %154 = vector.broadcast %153 : vector<1x512xf32> to vector<8x512xf32>
    %155 = arith.mulf %152, %154 : vector<8x512xf32>
    %156 = arith.truncf %155 : vector<8x512xf32> to vector<8x512xbf16>
    %c192_93 = arith.constant 192 : index
    %c0_94 = arith.constant 0 : index
    %157 = vector.load %arg11[%c192_93, %c0_94] : memref<216x512xbf16, #tpu.memory_space<vmem>>, vector<8x512xbf16>
    tpu.vector_store %arg11[%c192_93, %c0_94], %156 {strides = array<i32>} : memref<216x512xbf16, #tpu.memory_space<vmem>>, vector<8x512xbf16>,
    %c25 = arith.constant 25 : index
    %c0_95 = arith.constant 0 : index
    %158 = vector.load %arg2[%c25, %c0_95] : memref<27x512xf32, #tpu.memory_space<vmem>>, vector<1x512xf32>
    %159 = vector.broadcast %158 : vector<1x512xf32> to vector<8x512xf32>
    %160 = arith.mulf %151, %159 : vector<8x512xf32>
    %161 = arith.truncf %160 : vector<8x512xf32> to vector<8x512xbf16>
    %c200_96 = arith.constant 200 : index
    %c0_97 = arith.constant 0 : index
    %162 = vector.load %arg11[%c200_96, %c0_97] : memref<216x512xbf16, #tpu.memory_space<vmem>>, vector<8x512xbf16>
    tpu.vector_store %arg11[%c200_96, %c0_97], %161 {strides = array<i32>} : memref<216x512xbf16, #tpu.memory_space<vmem>>, vector<8x512xbf16>,
    %c511_i32_98 = arith.constant 511 : i32
    %163 = tpu.dynamic_rotate %151 by %c511_i32_98 dim 1 : vector<8x512xf32>, i32 -> vector<8x512xf32>
    %c26 = arith.constant 26 : index
    %c0_99 = arith.constant 0 : index
    %164 = vector.load %arg2[%c26, %c0_99] : memref<27x512xf32, #tpu.memory_space<vmem>>, vector<1x512xf32>
    %165 = vector.broadcast %164 : vector<1x512xf32> to vector<8x512xf32>
    %166 = arith.mulf %163, %165 : vector<8x512xf32>
    %167 = arith.truncf %166 : vector<8x512xf32> to vector<8x512xbf16>
    %c208 = arith.constant 208 : index
    %c0_100 = arith.constant 0 : index
    %168 = vector.load %arg11[%c208, %c0_100] : memref<216x512xbf16, #tpu.memory_space<vmem>>, vector<8x512xbf16>
    tpu.vector_store %arg11[%c208, %c0_100], %167 {strides = array<i32>} : memref<216x512xbf16, #tpu.memory_space<vmem>>, vector<8x512xbf16>,
    %c0_101 = arith.constant 0 : index
    %c0_102 = arith.constant 0 : index
    %169 = vector.load %arg3[%c0_101, %c0_102] : memref<8x216xbf16, #tpu.memory_space<vmem>>, vector<8x216xbf16>
    %c0_103 = arith.constant 0 : index
    %c0_104 = arith.constant 0 : index
    %170 = vector.load %arg11[%c0_103, %c0_104] : memref<216x512xbf16, #tpu.memory_space<vmem>>, vector<216x512xbf16>
    %cst_105 = arith.constant dense<0.000000e+00> : vector<8x512xf32>
    %171 = tpu.matmul %169, %170, %cst_105 {dimension_numbers = #tpu.dot_dimension_numbers<[1], [0], [0], [1], [0, 0, 1, 1], [], []>} : vector<8x216xbf16>, vector<216x512xbf16>, vector<8x512xf32> -> vector<8x512xf32>
    %c0_106 = arith.constant 0 : index
    %c0_107 = arith.constant 0 : index
    %172 = vector.load %arg4[%c0_106, %c0_107] : memref<8x1xf32, #tpu.memory_space<vmem>>, vector<8x1xf32>
    %173 = vector.broadcast %172 : vector<8x1xf32> to vector<8x512xf32>
    %174 = arith.addf %171, %173 : vector<8x512xf32>
    %cst_108 = arith.constant 0.000000e+00 : f32
    %175 = vector.broadcast %cst_108 : f32 to vector<8x512xf32>
    %176 = arith.maximumf %174, %175 : vector<8x512xf32>
    %c0_109 = arith.constant 0 : index
    %c128_110 = arith.constant 128 : index
    %177 = vector.load %arg10[%c0_109, %c128_110] : memref<8x768xf32, #tpu.memory_space<vmem>>, vector<8x512xf32>
    tpu.vector_store %arg10[%c0_109, %c128_110], %176 {strides = array<i32>} : memref<8x768xf32, #tpu.memory_space<vmem>>, vector<8x512xf32>,
    %c0_111 = arith.constant 0 : index
    %c56_112 = arith.constant 56 : index
    %178 = vector.load %arg10[%c0_111, %c56_112] : memref<8x768xf32, #tpu.memory_space<vmem>>, vector<8x512xf32>
    %c1_i32_113 = arith.constant 1 : i32
    %179 = tpu.dynamic_rotate %178 by %c1_i32_113 dim 1 : vector<8x512xf32>, i32 -> vector<8x512xf32>
    %c0_114 = arith.constant 0 : index
    %c0_115 = arith.constant 0 : index
    %180 = vector.load %arg2[%c0_114, %c0_115] : memref<27x512xf32, #tpu.memory_space<vmem>>, vector<1x512xf32>
    %181 = vector.broadcast %180 : vector<1x512xf32> to vector<8x512xf32>
    %182 = arith.mulf %179, %181 : vector<8x512xf32>
    %183 = arith.truncf %182 : vector<8x512xf32> to vector<8x512xbf16>
    %c0_116 = arith.constant 0 : index
    %c0_117 = arith.constant 0 : index
    %184 = vector.load %arg11[%c0_116, %c0_117] : memref<216x512xbf16, #tpu.memory_space<vmem>>, vector<8x512xbf16>
    tpu.vector_store %arg11[%c0_116, %c0_117], %183 {strides = array<i32>} : memref<216x512xbf16, #tpu.memory_space<vmem>>, vector<8x512xbf16>,
    %c1_118 = arith.constant 1 : index
    %c0_119 = arith.constant 0 : index
    %185 = vector.load %arg2[%c1_118, %c0_119] : memref<27x512xf32, #tpu.memory_space<vmem>>, vector<1x512xf32>
    %186 = vector.broadcast %185 : vector<1x512xf32> to vector<8x512xf32>
    %187 = arith.mulf %178, %186 : vector<8x512xf32>
    %188 = arith.truncf %187 : vector<8x512xf32> to vector<8x512xbf16>
    %c8_120 = arith.constant 8 : index
    %c0_121 = arith.constant 0 : index
    %189 = vector.load %arg11[%c8_120, %c0_121] : memref<216x512xbf16, #tpu.memory_space<vmem>>, vector<8x512xbf16>
    tpu.vector_store %arg11[%c8_120, %c0_121], %188 {strides = array<i32>} : memref<216x512xbf16, #tpu.memory_space<vmem>>, vector<8x512xbf16>,
    %c511_i32_122 = arith.constant 511 : i32
    %190 = tpu.dynamic_rotate %178 by %c511_i32_122 dim 1 : vector<8x512xf32>, i32 -> vector<8x512xf32>
    %c2_123 = arith.constant 2 : index
    %c0_124 = arith.constant 0 : index
    %191 = vector.load %arg2[%c2_123, %c0_124] : memref<27x512xf32, #tpu.memory_space<vmem>>, vector<1x512xf32>
    %192 = vector.broadcast %191 : vector<1x512xf32> to vector<8x512xf32>
    %193 = arith.mulf %190, %192 : vector<8x512xf32>
    %194 = arith.truncf %193 : vector<8x512xf32> to vector<8x512xbf16>
    %c16_125 = arith.constant 16 : index
    %c0_126 = arith.constant 0 : index
    %195 = vector.load %arg11[%c16_125, %c0_126] : memref<216x512xbf16, #tpu.memory_space<vmem>>, vector<8x512xbf16>
    tpu.vector_store %arg11[%c16_125, %c0_126], %194 {strides = array<i32>} : memref<216x512xbf16, #tpu.memory_space<vmem>>, vector<8x512xbf16>,
    %c0_127 = arith.constant 0 : index
    %c64_128 = arith.constant 64 : index
    %196 = vector.load %arg10[%c0_127, %c64_128] : memref<8x768xf32, #tpu.memory_space<vmem>>, vector<8x512xf32>
    %c1_i32_129 = arith.constant 1 : i32
    %197 = tpu.dynamic_rotate %196 by %c1_i32_129 dim 1 : vector<8x512xf32>, i32 -> vector<8x512xf32>
    %c3_130 = arith.constant 3 : index
    %c0_131 = arith.constant 0 : index
    %198 = vector.load %arg2[%c3_130, %c0_131] : memref<27x512xf32, #tpu.memory_space<vmem>>, vector<1x512xf32>
    %199 = vector.broadcast %198 : vector<1x512xf32> to vector<8x512xf32>
    %200 = arith.mulf %197, %199 : vector<8x512xf32>
    %201 = arith.truncf %200 : vector<8x512xf32> to vector<8x512xbf16>
    %c24_132 = arith.constant 24 : index
    %c0_133 = arith.constant 0 : index
    %202 = vector.load %arg11[%c24_132, %c0_133] : memref<216x512xbf16, #tpu.memory_space<vmem>>, vector<8x512xbf16>
    tpu.vector_store %arg11[%c24_132, %c0_133], %201 {strides = array<i32>} : memref<216x512xbf16, #tpu.memory_space<vmem>>, vector<8x512xbf16>,
    %c4_134 = arith.constant 4 : index
    %c0_135 = arith.constant 0 : index
    %203 = vector.load %arg2[%c4_134, %c0_135] : memref<27x512xf32, #tpu.memory_space<vmem>>, vector<1x512xf32>
    %204 = vector.broadcast %203 : vector<1x512xf32> to vector<8x512xf32>
    %205 = arith.mulf %196, %204 : vector<8x512xf32>
    %206 = arith.truncf %205 : vector<8x512xf32> to vector<8x512xbf16>
    %c32_136 = arith.constant 32 : index
    %c0_137 = arith.constant 0 : index
    %207 = vector.load %arg11[%c32_136, %c0_137] : memref<216x512xbf16, #tpu.memory_space<vmem>>, vector<8x512xbf16>
    tpu.vector_store %arg11[%c32_136, %c0_137], %206 {strides = array<i32>} : memref<216x512xbf16, #tpu.memory_space<vmem>>, vector<8x512xbf16>,
    %c511_i32_138 = arith.constant 511 : i32
    %208 = tpu.dynamic_rotate %196 by %c511_i32_138 dim 1 : vector<8x512xf32>, i32 -> vector<8x512xf32>
    %c5_139 = arith.constant 5 : index
    %c0_140 = arith.constant 0 : index
    %209 = vector.load %arg2[%c5_139, %c0_140] : memref<27x512xf32, #tpu.memory_space<vmem>>, vector<1x512xf32>
    %210 = vector.broadcast %209 : vector<1x512xf32> to vector<8x512xf32>
    %211 = arith.mulf %208, %210 : vector<8x512xf32>
    %212 = arith.truncf %211 : vector<8x512xf32> to vector<8x512xbf16>
    %c40_141 = arith.constant 40 : index
    %c0_142 = arith.constant 0 : index
    %213 = vector.load %arg11[%c40_141, %c0_142] : memref<216x512xbf16, #tpu.memory_space<vmem>>, vector<8x512xbf16>
    tpu.vector_store %arg11[%c40_141, %c0_142], %212 {strides = array<i32>} : memref<216x512xbf16, #tpu.memory_space<vmem>>, vector<8x512xbf16>,
    %c0_143 = arith.constant 0 : index
    %c72_144 = arith.constant 72 : index
    %214 = vector.load %arg10[%c0_143, %c72_144] : memref<8x768xf32, #tpu.memory_space<vmem>>, vector<8x512xf32>
    %c1_i32_145 = arith.constant 1 : i32
    %215 = tpu.dynamic_rotate %214 by %c1_i32_145 dim 1 : vector<8x512xf32>, i32 -> vector<8x512xf32>
    %c6_146 = arith.constant 6 : index
    %c0_147 = arith.constant 0 : index
    %216 = vector.load %arg2[%c6_146, %c0_147] : memref<27x512xf32, #tpu.memory_space<vmem>>, vector<1x512xf32>
    %217 = vector.broadcast %216 : vector<1x512xf32> to vector<8x512xf32>
    %218 = arith.mulf %215, %217 : vector<8x512xf32>
    %219 = arith.truncf %218 : vector<8x512xf32> to vector<8x512xbf16>
    %c48_148 = arith.constant 48 : index
    %c0_149 = arith.constant 0 : index
    %220 = vector.load %arg11[%c48_148, %c0_149] : memref<216x512xbf16, #tpu.memory_space<vmem>>, vector<8x512xbf16>
    tpu.vector_store %arg11[%c48_148, %c0_149], %219 {strides = array<i32>} : memref<216x512xbf16, #tpu.memory_space<vmem>>, vector<8x512xbf16>,
    %c7_150 = arith.constant 7 : index
    %c0_151 = arith.constant 0 : index
    %221 = vector.load %arg2[%c7_150, %c0_151] : memref<27x512xf32, #tpu.memory_space<vmem>>, vector<1x512xf32>
    %222 = vector.broadcast %221 : vector<1x512xf32> to vector<8x512xf32>
    %223 = arith.mulf %214, %222 : vector<8x512xf32>
    %224 = arith.truncf %223 : vector<8x512xf32> to vector<8x512xbf16>
    %c56_152 = arith.constant 56 : index
    %c0_153 = arith.constant 0 : index
    %225 = vector.load %arg11[%c56_152, %c0_153] : memref<216x512xbf16, #tpu.memory_space<vmem>>, vector<8x512xbf16>
    tpu.vector_store %arg11[%c56_152, %c0_153], %224 {strides = array<i32>} : memref<216x512xbf16, #tpu.memory_space<vmem>>, vector<8x512xbf16>,
    %c511_i32_154 = arith.constant 511 : i32
    %226 = tpu.dynamic_rotate %214 by %c511_i32_154 dim 1 : vector<8x512xf32>, i32 -> vector<8x512xf32>
    %c8_155 = arith.constant 8 : index
    %c0_156 = arith.constant 0 : index
    %227 = vector.load %arg2[%c8_155, %c0_156] : memref<27x512xf32, #tpu.memory_space<vmem>>, vector<1x512xf32>
    %228 = vector.broadcast %227 : vector<1x512xf32> to vector<8x512xf32>
    %229 = arith.mulf %226, %228 : vector<8x512xf32>
    %230 = arith.truncf %229 : vector<8x512xf32> to vector<8x512xbf16>
    %c64_157 = arith.constant 64 : index
    %c0_158 = arith.constant 0 : index
    %231 = vector.load %arg11[%c64_157, %c0_158] : memref<216x512xbf16, #tpu.memory_space<vmem>>, vector<8x512xbf16>
    tpu.vector_store %arg11[%c64_157, %c0_158], %230 {strides = array<i32>} : memref<216x512xbf16, #tpu.memory_space<vmem>>, vector<8x512xbf16>,
    %c0_159 = arith.constant 0 : index
    %c120_160 = arith.constant 120 : index
    %232 = vector.load %arg10[%c0_159, %c120_160] : memref<8x768xf32, #tpu.memory_space<vmem>>, vector<8x512xf32>
    %c1_i32_161 = arith.constant 1 : i32
    %233 = tpu.dynamic_rotate %232 by %c1_i32_161 dim 1 : vector<8x512xf32>, i32 -> vector<8x512xf32>
    %c9_162 = arith.constant 9 : index
    %c0_163 = arith.constant 0 : index
    %234 = vector.load %arg2[%c9_162, %c0_163] : memref<27x512xf32, #tpu.memory_space<vmem>>, vector<1x512xf32>
    %235 = vector.broadcast %234 : vector<1x512xf32> to vector<8x512xf32>
    %236 = arith.mulf %233, %235 : vector<8x512xf32>
    %237 = arith.truncf %236 : vector<8x512xf32> to vector<8x512xbf16>
    %c72_164 = arith.constant 72 : index
    %c0_165 = arith.constant 0 : index
    %238 = vector.load %arg11[%c72_164, %c0_165] : memref<216x512xbf16, #tpu.memory_space<vmem>>, vector<8x512xbf16>
    tpu.vector_store %arg11[%c72_164, %c0_165], %237 {strides = array<i32>} : memref<216x512xbf16, #tpu.memory_space<vmem>>, vector<8x512xbf16>,
    %c10_166 = arith.constant 10 : index
    %c0_167 = arith.constant 0 : index
    %239 = vector.load %arg2[%c10_166, %c0_167] : memref<27x512xf32, #tpu.memory_space<vmem>>, vector<1x512xf32>
    %240 = vector.broadcast %239 : vector<1x512xf32> to vector<8x512xf32>
    %241 = arith.mulf %232, %240 : vector<8x512xf32>
    %242 = arith.truncf %241 : vector<8x512xf32> to vector<8x512xbf16>
    %c80_168 = arith.constant 80 : index
    %c0_169 = arith.constant 0 : index
    %243 = vector.load %arg11[%c80_168, %c0_169] : memref<216x512xbf16, #tpu.memory_space<vmem>>, vector<8x512xbf16>
    tpu.vector_store %arg11[%c80_168, %c0_169], %242 {strides = array<i32>} : memref<216x512xbf16, #tpu.memory_space<vmem>>, vector<8x512xbf16>,
    %c511_i32_170 = arith.constant 511 : i32
    %244 = tpu.dynamic_rotate %232 by %c511_i32_170 dim 1 : vector<8x512xf32>, i32 -> vector<8x512xf32>
    %c11_171 = arith.constant 11 : index
    %c0_172 = arith.constant 0 : index
    %245 = vector.load %arg2[%c11_171, %c0_172] : memref<27x512xf32, #tpu.memory_space<vmem>>, vector<1x512xf32>
    %246 = vector.broadcast %245 : vector<1x512xf32> to vector<8x512xf32>
    %247 = arith.mulf %244, %246 : vector<8x512xf32>
    %248 = arith.truncf %247 : vector<8x512xf32> to vector<8x512xbf16>
    %c88_173 = arith.constant 88 : index
    %c0_174 = arith.constant 0 : index
    %249 = vector.load %arg11[%c88_173, %c0_174] : memref<216x512xbf16, #tpu.memory_space<vmem>>, vector<8x512xbf16>
    tpu.vector_store %arg11[%c88_173, %c0_174], %248 {strides = array<i32>} : memref<216x512xbf16, #tpu.memory_space<vmem>>, vector<8x512xbf16>,
    %c0_175 = arith.constant 0 : index
    %c128_176 = arith.constant 128 : index
    %250 = vector.load %arg10[%c0_175, %c128_176] : memref<8x768xf32, #tpu.memory_space<vmem>>, vector<8x512xf32>
    %c1_i32_177 = arith.constant 1 : i32
    %251 = tpu.dynamic_rotate %250 by %c1_i32_177 dim 1 : vector<8x512xf32>, i32 -> vector<8x512xf32>
    %c12_178 = arith.constant 12 : index
    %c0_179 = arith.constant 0 : index
    %252 = vector.load %arg2[%c12_178, %c0_179] : memref<27x512xf32, #tpu.memory_space<vmem>>, vector<1x512xf32>
    %253 = vector.broadcast %252 : vector<1x512xf32> to vector<8x512xf32>
    %254 = arith.mulf %251, %253 : vector<8x512xf32>
    %255 = arith.truncf %254 : vector<8x512xf32> to vector<8x512xbf16>
    %c96_180 = arith.constant 96 : index
    %c0_181 = arith.constant 0 : index
    %256 = vector.load %arg11[%c96_180, %c0_181] : memref<216x512xbf16, #tpu.memory_space<vmem>>, vector<8x512xbf16>
    tpu.vector_store %arg11[%c96_180, %c0_181], %255 {strides = array<i32>} : memref<216x512xbf16, #tpu.memory_space<vmem>>, vector<8x512xbf16>,
    %c13_182 = arith.constant 13 : index
    %c0_183 = arith.constant 0 : index
    %257 = vector.load %arg2[%c13_182, %c0_183] : memref<27x512xf32, #tpu.memory_space<vmem>>, vector<1x512xf32>
    %258 = vector.broadcast %257 : vector<1x512xf32> to vector<8x512xf32>
    %259 = arith.mulf %250, %258 : vector<8x512xf32>
    %260 = arith.truncf %259 : vector<8x512xf32> to vector<8x512xbf16>
    %c104_184 = arith.constant 104 : index
    %c0_185 = arith.constant 0 : index
    %261 = vector.load %arg11[%c104_184, %c0_185] : memref<216x512xbf16, #tpu.memory_space<vmem>>, vector<8x512xbf16>
    tpu.vector_store %arg11[%c104_184, %c0_185], %260 {strides = array<i32>} : memref<216x512xbf16, #tpu.memory_space<vmem>>, vector<8x512xbf16>,
    %c511_i32_186 = arith.constant 511 : i32
    %262 = tpu.dynamic_rotate %250 by %c511_i32_186 dim 1 : vector<8x512xf32>, i32 -> vector<8x512xf32>
    %c14_187 = arith.constant 14 : index
    %c0_188 = arith.constant 0 : index
    %263 = vector.load %arg2[%c14_187, %c0_188] : memref<27x512xf32, #tpu.memory_space<vmem>>, vector<1x512xf32>
    %264 = vector.broadcast %263 : vector<1x512xf32> to vector<8x512xf32>
    %265 = arith.mulf %262, %264 : vector<8x512xf32>
    %266 = arith.truncf %265 : vector<8x512xf32> to vector<8x512xbf16>
    %c112_189 = arith.constant 112 : index
    %c0_190 = arith.constant 0 : index
    %267 = vector.load %arg11[%c112_189, %c0_190] : memref<216x512xbf16, #tpu.memory_space<vmem>>, vector<8x512xbf16>
    tpu.vector_store %arg11[%c112_189, %c0_190], %266 {strides = array<i32>} : memref<216x512xbf16, #tpu.memory_space<vmem>>, vector<8x512xbf16>,
    %c0_191 = arith.constant 0 : index
    %c136_192 = arith.constant 136 : index
    %268 = vector.load %arg10[%c0_191, %c136_192] : memref<8x768xf32, #tpu.memory_space<vmem>>, vector<8x512xf32>
    %c1_i32_193 = arith.constant 1 : i32
    %269 = tpu.dynamic_rotate %268 by %c1_i32_193 dim 1 : vector<8x512xf32>, i32 -> vector<8x512xf32>
    %c15_194 = arith.constant 15 : index
    %c0_195 = arith.constant 0 : index
    %270 = vector.load %arg2[%c15_194, %c0_195] : memref<27x512xf32, #tpu.memory_space<vmem>>, vector<1x512xf32>
    %271 = vector.broadcast %270 : vector<1x512xf32> to vector<8x512xf32>
    %272 = arith.mulf %269, %271 : vector<8x512xf32>
    %273 = arith.truncf %272 : vector<8x512xf32> to vector<8x512xbf16>
    %c120_196 = arith.constant 120 : index
    %c0_197 = arith.constant 0 : index
    %274 = vector.load %arg11[%c120_196, %c0_197] : memref<216x512xbf16, #tpu.memory_space<vmem>>, vector<8x512xbf16>
    tpu.vector_store %arg11[%c120_196, %c0_197], %273 {strides = array<i32>} : memref<216x512xbf16, #tpu.memory_space<vmem>>, vector<8x512xbf16>,
    %c16_198 = arith.constant 16 : index
    %c0_199 = arith.constant 0 : index
    %275 = vector.load %arg2[%c16_198, %c0_199] : memref<27x512xf32, #tpu.memory_space<vmem>>, vector<1x512xf32>
    %276 = vector.broadcast %275 : vector<1x512xf32> to vector<8x512xf32>
    %277 = arith.mulf %268, %276 : vector<8x512xf32>
    %278 = arith.truncf %277 : vector<8x512xf32> to vector<8x512xbf16>
    %c128_200 = arith.constant 128 : index
    %c0_201 = arith.constant 0 : index
    %279 = vector.load %arg11[%c128_200, %c0_201] : memref<216x512xbf16, #tpu.memory_space<vmem>>, vector<8x512xbf16>
    tpu.vector_store %arg11[%c128_200, %c0_201], %278 {strides = array<i32>} : memref<216x512xbf16, #tpu.memory_space<vmem>>, vector<8x512xbf16>,
    %c511_i32_202 = arith.constant 511 : i32
    %280 = tpu.dynamic_rotate %268 by %c511_i32_202 dim 1 : vector<8x512xf32>, i32 -> vector<8x512xf32>
    %c17_203 = arith.constant 17 : index
    %c0_204 = arith.constant 0 : index
    %281 = vector.load %arg2[%c17_203, %c0_204] : memref<27x512xf32, #tpu.memory_space<vmem>>, vector<1x512xf32>
    %282 = vector.broadcast %281 : vector<1x512xf32> to vector<8x512xf32>
    %283 = arith.mulf %280, %282 : vector<8x512xf32>
    %284 = arith.truncf %283 : vector<8x512xf32> to vector<8x512xbf16>
    %c136_205 = arith.constant 136 : index
    %c0_206 = arith.constant 0 : index
    %285 = vector.load %arg11[%c136_205, %c0_206] : memref<216x512xbf16, #tpu.memory_space<vmem>>, vector<8x512xbf16>
    tpu.vector_store %arg11[%c136_205, %c0_206], %284 {strides = array<i32>} : memref<216x512xbf16, #tpu.memory_space<vmem>>, vector<8x512xbf16>,
    %c0_207 = arith.constant 0 : index
    %c184_208 = arith.constant 184 : index
    %286 = vector.load %arg10[%c0_207, %c184_208] : memref<8x768xf32, #tpu.memory_space<vmem>>, vector<8x512xf32>
    %c1_i32_209 = arith.constant 1 : i32
    %287 = tpu.dynamic_rotate %286 by %c1_i32_209 dim 1 : vector<8x512xf32>, i32 -> vector<8x512xf32>
    %c18_210 = arith.constant 18 : index
    %c0_211 = arith.constant 0 : index
    %288 = vector.load %arg2[%c18_210, %c0_211] : memref<27x512xf32, #tpu.memory_space<vmem>>, vector<1x512xf32>
    %289 = vector.broadcast %288 : vector<1x512xf32> to vector<8x512xf32>
    %290 = arith.mulf %287, %289 : vector<8x512xf32>
    %291 = arith.truncf %290 : vector<8x512xf32> to vector<8x512xbf16>
    %c144_212 = arith.constant 144 : index
    %c0_213 = arith.constant 0 : index
    %292 = vector.load %arg11[%c144_212, %c0_213] : memref<216x512xbf16, #tpu.memory_space<vmem>>, vector<8x512xbf16>
    tpu.vector_store %arg11[%c144_212, %c0_213], %291 {strides = array<i32>} : memref<216x512xbf16, #tpu.memory_space<vmem>>, vector<8x512xbf16>,
    %c19_214 = arith.constant 19 : index
    %c0_215 = arith.constant 0 : index
    %293 = vector.load %arg2[%c19_214, %c0_215] : memref<27x512xf32, #tpu.memory_space<vmem>>, vector<1x512xf32>
    %294 = vector.broadcast %293 : vector<1x512xf32> to vector<8x512xf32>
    %295 = arith.mulf %286, %294 : vector<8x512xf32>
    %296 = arith.truncf %295 : vector<8x512xf32> to vector<8x512xbf16>
    %c152_216 = arith.constant 152 : index
    %c0_217 = arith.constant 0 : index
    %297 = vector.load %arg11[%c152_216, %c0_217] : memref<216x512xbf16, #tpu.memory_space<vmem>>, vector<8x512xbf16>
    tpu.vector_store %arg11[%c152_216, %c0_217], %296 {strides = array<i32>} : memref<216x512xbf16, #tpu.memory_space<vmem>>, vector<8x512xbf16>,
    %c511_i32_218 = arith.constant 511 : i32
    %298 = tpu.dynamic_rotate %286 by %c511_i32_218 dim 1 : vector<8x512xf32>, i32 -> vector<8x512xf32>
    %c20_219 = arith.constant 20 : index
    %c0_220 = arith.constant 0 : index
    %299 = vector.load %arg2[%c20_219, %c0_220] : memref<27x512xf32, #tpu.memory_space<vmem>>, vector<1x512xf32>
    %300 = vector.broadcast %299 : vector<1x512xf32> to vector<8x512xf32>
    %301 = arith.mulf %298, %300 : vector<8x512xf32>
    %302 = arith.truncf %301 : vector<8x512xf32> to vector<8x512xbf16>
    %c160_221 = arith.constant 160 : index
    %c0_222 = arith.constant 0 : index
    %303 = vector.load %arg11[%c160_221, %c0_222] : memref<216x512xbf16, #tpu.memory_space<vmem>>, vector<8x512xbf16>
    tpu.vector_store %arg11[%c160_221, %c0_222], %302 {strides = array<i32>} : memref<216x512xbf16, #tpu.memory_space<vmem>>, vector<8x512xbf16>,
    %c0_223 = arith.constant 0 : index
    %c192_224 = arith.constant 192 : index
    %304 = vector.load %arg10[%c0_223, %c192_224] : memref<8x768xf32, #tpu.memory_space<vmem>>, vector<8x512xf32>
    %c1_i32_225 = arith.constant 1 : i32
    %305 = tpu.dynamic_rotate %304 by %c1_i32_225 dim 1 : vector<8x512xf32>, i32 -> vector<8x512xf32>
    %c21_226 = arith.constant 21 : index
    %c0_227 = arith.constant 0 : index
    %306 = vector.load %arg2[%c21_226, %c0_227] : memref<27x512xf32, #tpu.memory_space<vmem>>, vector<1x512xf32>
    %307 = vector.broadcast %306 : vector<1x512xf32> to vector<8x512xf32>
    %308 = arith.mulf %305, %307 : vector<8x512xf32>
    %309 = arith.truncf %308 : vector<8x512xf32> to vector<8x512xbf16>
    %c168_228 = arith.constant 168 : index
    %c0_229 = arith.constant 0 : index
    %310 = vector.load %arg11[%c168_228, %c0_229] : memref<216x512xbf16, #tpu.memory_space<vmem>>, vector<8x512xbf16>
    tpu.vector_store %arg11[%c168_228, %c0_229], %309 {strides = array<i32>} : memref<216x512xbf16, #tpu.memory_space<vmem>>, vector<8x512xbf16>,
    %c22_230 = arith.constant 22 : index
    %c0_231 = arith.constant 0 : index
    %311 = vector.load %arg2[%c22_230, %c0_231] : memref<27x512xf32, #tpu.memory_space<vmem>>, vector<1x512xf32>
    %312 = vector.broadcast %311 : vector<1x512xf32> to vector<8x512xf32>
    %313 = arith.mulf %304, %312 : vector<8x512xf32>
    %314 = arith.truncf %313 : vector<8x512xf32> to vector<8x512xbf16>
    %c176_232 = arith.constant 176 : index
    %c0_233 = arith.constant 0 : index
    %315 = vector.load %arg11[%c176_232, %c0_233] : memref<216x512xbf16, #tpu.memory_space<vmem>>, vector<8x512xbf16>
    tpu.vector_store %arg11[%c176_232, %c0_233], %314 {strides = array<i32>} : memref<216x512xbf16, #tpu.memory_space<vmem>>, vector<8x512xbf16>,
    %c511_i32_234 = arith.constant 511 : i32
    %316 = tpu.dynamic_rotate %304 by %c511_i32_234 dim 1 : vector<8x512xf32>, i32 -> vector<8x512xf32>
    %c23_235 = arith.constant 23 : index
    %c0_236 = arith.constant 0 : index
    %317 = vector.load %arg2[%c23_235, %c0_236] : memref<27x512xf32, #tpu.memory_space<vmem>>, vector<1x512xf32>
    %318 = vector.broadcast %317 : vector<1x512xf32> to vector<8x512xf32>
    %319 = arith.mulf %316, %318 : vector<8x512xf32>
    %320 = arith.truncf %319 : vector<8x512xf32> to vector<8x512xbf16>
    %c184_237 = arith.constant 184 : index
    %c0_238 = arith.constant 0 : index
    %321 = vector.load %arg11[%c184_237, %c0_238] : memref<216x512xbf16, #tpu.memory_space<vmem>>, vector<8x512xbf16>
    tpu.vector_store %arg11[%c184_237, %c0_238], %320 {strides = array<i32>} : memref<216x512xbf16, #tpu.memory_space<vmem>>, vector<8x512xbf16>,
    %c0_239 = arith.constant 0 : index
    %c200_240 = arith.constant 200 : index
    %322 = vector.load %arg10[%c0_239, %c200_240] : memref<8x768xf32, #tpu.memory_space<vmem>>, vector<8x512xf32>
    %c1_i32_241 = arith.constant 1 : i32
    %323 = tpu.dynamic_rotate %322 by %c1_i32_241 dim 1 : vector<8x512xf32>, i32 -> vector<8x512xf32>
    %c24_242 = arith.constant 24 : index
    %c0_243 = arith.constant 0 : index
    %324 = vector.load %arg2[%c24_242, %c0_243] : memref<27x512xf32, #tpu.memory_space<vmem>>, vector<1x512xf32>
    %325 = vector.broadcast %324 : vector<1x512xf32> to vector<8x512xf32>
    %326 = arith.mulf %323, %325 : vector<8x512xf32>
    %327 = arith.truncf %326 : vector<8x512xf32> to vector<8x512xbf16>
    %c192_244 = arith.constant 192 : index
    %c0_245 = arith.constant 0 : index
    %328 = vector.load %arg11[%c192_244, %c0_245] : memref<216x512xbf16, #tpu.memory_space<vmem>>, vector<8x512xbf16>
    tpu.vector_store %arg11[%c192_244, %c0_245], %327 {strides = array<i32>} : memref<216x512xbf16, #tpu.memory_space<vmem>>, vector<8x512xbf16>,
    %c25_246 = arith.constant 25 : index
    %c0_247 = arith.constant 0 : index
    %329 = vector.load %arg2[%c25_246, %c0_247] : memref<27x512xf32, #tpu.memory_space<vmem>>, vector<1x512xf32>
    %330 = vector.broadcast %329 : vector<1x512xf32> to vector<8x512xf32>
    %331 = arith.mulf %322, %330 : vector<8x512xf32>
    %332 = arith.truncf %331 : vector<8x512xf32> to vector<8x512xbf16>
    %c200_248 = arith.constant 200 : index
    %c0_249 = arith.constant 0 : index
    %333 = vector.load %arg11[%c200_248, %c0_249] : memref<216x512xbf16, #tpu.memory_space<vmem>>, vector<8x512xbf16>
    tpu.vector_store %arg11[%c200_248, %c0_249], %332 {strides = array<i32>} : memref<216x512xbf16, #tpu.memory_space<vmem>>, vector<8x512xbf16>,
    %c511_i32_250 = arith.constant 511 : i32
    %334 = tpu.dynamic_rotate %322 by %c511_i32_250 dim 1 : vector<8x512xf32>, i32 -> vector<8x512xf32>
    %c26_251 = arith.constant 26 : index
    %c0_252 = arith.constant 0 : index
    %335 = vector.load %arg2[%c26_251, %c0_252] : memref<27x512xf32, #tpu.memory_space<vmem>>, vector<1x512xf32>
    %336 = vector.broadcast %335 : vector<1x512xf32> to vector<8x512xf32>
    %337 = arith.mulf %334, %336 : vector<8x512xf32>
    %338 = arith.truncf %337 : vector<8x512xf32> to vector<8x512xbf16>
    %c208_253 = arith.constant 208 : index
    %c0_254 = arith.constant 0 : index
    %339 = vector.load %arg11[%c208_253, %c0_254] : memref<216x512xbf16, #tpu.memory_space<vmem>>, vector<8x512xbf16>
    tpu.vector_store %arg11[%c208_253, %c0_254], %338 {strides = array<i32>} : memref<216x512xbf16, #tpu.memory_space<vmem>>, vector<8x512xbf16>,
    %c0_255 = arith.constant 0 : index
    %c0_256 = arith.constant 0 : index
    %340 = vector.load %arg5[%c0_255, %c0_256] : memref<8x216xbf16, #tpu.memory_space<vmem>>, vector<8x216xbf16>
    %c0_257 = arith.constant 0 : index
    %c0_258 = arith.constant 0 : index
    %341 = vector.load %arg11[%c0_257, %c0_258] : memref<216x512xbf16, #tpu.memory_space<vmem>>, vector<216x512xbf16>
    %cst_259 = arith.constant dense<0.000000e+00> : vector<8x512xf32>
    %342 = tpu.matmul %340, %341, %cst_259 {dimension_numbers = #tpu.dot_dimension_numbers<[1], [0], [0], [1], [0, 0, 1, 1], [], []>} : vector<8x216xbf16>, vector<216x512xbf16>, vector<8x512xf32> -> vector<8x512xf32>
    %c0_260 = arith.constant 0 : index
    %c0_261 = arith.constant 0 : index
    %343 = vector.load %arg6[%c0_260, %c0_261] : memref<8x1xf32, #tpu.memory_space<vmem>>, vector<8x1xf32>
    %344 = vector.broadcast %343 : vector<8x1xf32> to vector<8x512xf32>
    %345 = arith.addf %342, %344 : vector<8x512xf32>
    %cst_262 = arith.constant 0.000000e+00 : f32
    %346 = vector.broadcast %cst_262 : f32 to vector<8x512xf32>
    %347 = arith.maximumf %345, %346 : vector<8x512xf32>
    %c0_263 = arith.constant 0 : index
    %c128_264 = arith.constant 128 : index
    %348 = vector.load %arg10[%c0_263, %c128_264] : memref<8x768xf32, #tpu.memory_space<vmem>>, vector<8x512xf32>
    tpu.vector_store %arg10[%c0_263, %c128_264], %347 {strides = array<i32>} : memref<8x768xf32, #tpu.memory_space<vmem>>, vector<8x512xf32>,
    %c0_265 = arith.constant 0 : index
    %c56_266 = arith.constant 56 : index
    %349 = vector.load %arg10[%c0_265, %c56_266] : memref<8x768xf32, #tpu.memory_space<vmem>>, vector<8x512xf32>
    %c1_i32_267 = arith.constant 1 : i32
    %350 = tpu.dynamic_rotate %349 by %c1_i32_267 dim 1 : vector<8x512xf32>, i32 -> vector<8x512xf32>
    %c0_268 = arith.constant 0 : index
    %c0_269 = arith.constant 0 : index
    %351 = vector.load %arg2[%c0_268, %c0_269] : memref<27x512xf32, #tpu.memory_space<vmem>>, vector<1x512xf32>
    %352 = vector.broadcast %351 : vector<1x512xf32> to vector<8x512xf32>
    %353 = arith.mulf %350, %352 : vector<8x512xf32>
    %354 = arith.truncf %353 : vector<8x512xf32> to vector<8x512xbf16>
    %c0_270 = arith.constant 0 : index
    %c0_271 = arith.constant 0 : index
    %355 = vector.load %arg11[%c0_270, %c0_271] : memref<216x512xbf16, #tpu.memory_space<vmem>>, vector<8x512xbf16>
    tpu.vector_store %arg11[%c0_270, %c0_271], %354 {strides = array<i32>} : memref<216x512xbf16, #tpu.memory_space<vmem>>, vector<8x512xbf16>,
    %c1_272 = arith.constant 1 : index
    %c0_273 = arith.constant 0 : index
    %356 = vector.load %arg2[%c1_272, %c0_273] : memref<27x512xf32, #tpu.memory_space<vmem>>, vector<1x512xf32>
    %357 = vector.broadcast %356 : vector<1x512xf32> to vector<8x512xf32>
    %358 = arith.mulf %349, %357 : vector<8x512xf32>
    %359 = arith.truncf %358 : vector<8x512xf32> to vector<8x512xbf16>
    %c8_274 = arith.constant 8 : index
    %c0_275 = arith.constant 0 : index
    %360 = vector.load %arg11[%c8_274, %c0_275] : memref<216x512xbf16, #tpu.memory_space<vmem>>, vector<8x512xbf16>
    tpu.vector_store %arg11[%c8_274, %c0_275], %359 {strides = array<i32>} : memref<216x512xbf16, #tpu.memory_space<vmem>>, vector<8x512xbf16>,
    %c511_i32_276 = arith.constant 511 : i32
    %361 = tpu.dynamic_rotate %349 by %c511_i32_276 dim 1 : vector<8x512xf32>, i32 -> vector<8x512xf32>
    %c2_277 = arith.constant 2 : index
    %c0_278 = arith.constant 0 : index
    %362 = vector.load %arg2[%c2_277, %c0_278] : memref<27x512xf32, #tpu.memory_space<vmem>>, vector<1x512xf32>
    %363 = vector.broadcast %362 : vector<1x512xf32> to vector<8x512xf32>
    %364 = arith.mulf %361, %363 : vector<8x512xf32>
    %365 = arith.truncf %364 : vector<8x512xf32> to vector<8x512xbf16>
    %c16_279 = arith.constant 16 : index
    %c0_280 = arith.constant 0 : index
    %366 = vector.load %arg11[%c16_279, %c0_280] : memref<216x512xbf16, #tpu.memory_space<vmem>>, vector<8x512xbf16>
    tpu.vector_store %arg11[%c16_279, %c0_280], %365 {strides = array<i32>} : memref<216x512xbf16, #tpu.memory_space<vmem>>, vector<8x512xbf16>,
    %c0_281 = arith.constant 0 : index
    %c64_282 = arith.constant 64 : index
    %367 = vector.load %arg10[%c0_281, %c64_282] : memref<8x768xf32, #tpu.memory_space<vmem>>, vector<8x512xf32>
    %c1_i32_283 = arith.constant 1 : i32
    %368 = tpu.dynamic_rotate %367 by %c1_i32_283 dim 1 : vector<8x512xf32>, i32 -> vector<8x512xf32>
    %c3_284 = arith.constant 3 : index
    %c0_285 = arith.constant 0 : index
    %369 = vector.load %arg2[%c3_284, %c0_285] : memref<27x512xf32, #tpu.memory_space<vmem>>, vector<1x512xf32>
    %370 = vector.broadcast %369 : vector<1x512xf32> to vector<8x512xf32>
    %371 = arith.mulf %368, %370 : vector<8x512xf32>
    %372 = arith.truncf %371 : vector<8x512xf32> to vector<8x512xbf16>
    %c24_286 = arith.constant 24 : index
    %c0_287 = arith.constant 0 : index
    %373 = vector.load %arg11[%c24_286, %c0_287] : memref<216x512xbf16, #tpu.memory_space<vmem>>, vector<8x512xbf16>
    tpu.vector_store %arg11[%c24_286, %c0_287], %372 {strides = array<i32>} : memref<216x512xbf16, #tpu.memory_space<vmem>>, vector<8x512xbf16>,
    %c4_288 = arith.constant 4 : index
    %c0_289 = arith.constant 0 : index
    %374 = vector.load %arg2[%c4_288, %c0_289] : memref<27x512xf32, #tpu.memory_space<vmem>>, vector<1x512xf32>
    %375 = vector.broadcast %374 : vector<1x512xf32> to vector<8x512xf32>
    %376 = arith.mulf %367, %375 : vector<8x512xf32>
    %377 = arith.truncf %376 : vector<8x512xf32> to vector<8x512xbf16>
    %c32_290 = arith.constant 32 : index
    %c0_291 = arith.constant 0 : index
    %378 = vector.load %arg11[%c32_290, %c0_291] : memref<216x512xbf16, #tpu.memory_space<vmem>>, vector<8x512xbf16>
    tpu.vector_store %arg11[%c32_290, %c0_291], %377 {strides = array<i32>} : memref<216x512xbf16, #tpu.memory_space<vmem>>, vector<8x512xbf16>,
    %c511_i32_292 = arith.constant 511 : i32
    %379 = tpu.dynamic_rotate %367 by %c511_i32_292 dim 1 : vector<8x512xf32>, i32 -> vector<8x512xf32>
    %c5_293 = arith.constant 5 : index
    %c0_294 = arith.constant 0 : index
    %380 = vector.load %arg2[%c5_293, %c0_294] : memref<27x512xf32, #tpu.memory_space<vmem>>, vector<1x512xf32>
    %381 = vector.broadcast %380 : vector<1x512xf32> to vector<8x512xf32>
    %382 = arith.mulf %379, %381 : vector<8x512xf32>
    %383 = arith.truncf %382 : vector<8x512xf32> to vector<8x512xbf16>
    %c40_295 = arith.constant 40 : index
    %c0_296 = arith.constant 0 : index
    %384 = vector.load %arg11[%c40_295, %c0_296] : memref<216x512xbf16, #tpu.memory_space<vmem>>, vector<8x512xbf16>
    tpu.vector_store %arg11[%c40_295, %c0_296], %383 {strides = array<i32>} : memref<216x512xbf16, #tpu.memory_space<vmem>>, vector<8x512xbf16>,
    %c0_297 = arith.constant 0 : index
    %c72_298 = arith.constant 72 : index
    %385 = vector.load %arg10[%c0_297, %c72_298] : memref<8x768xf32, #tpu.memory_space<vmem>>, vector<8x512xf32>
    %c1_i32_299 = arith.constant 1 : i32
    %386 = tpu.dynamic_rotate %385 by %c1_i32_299 dim 1 : vector<8x512xf32>, i32 -> vector<8x512xf32>
    %c6_300 = arith.constant 6 : index
    %c0_301 = arith.constant 0 : index
    %387 = vector.load %arg2[%c6_300, %c0_301] : memref<27x512xf32, #tpu.memory_space<vmem>>, vector<1x512xf32>
    %388 = vector.broadcast %387 : vector<1x512xf32> to vector<8x512xf32>
    %389 = arith.mulf %386, %388 : vector<8x512xf32>
    %390 = arith.truncf %389 : vector<8x512xf32> to vector<8x512xbf16>
    %c48_302 = arith.constant 48 : index
    %c0_303 = arith.constant 0 : index
    %391 = vector.load %arg11[%c48_302, %c0_303] : memref<216x512xbf16, #tpu.memory_space<vmem>>, vector<8x512xbf16>
    tpu.vector_store %arg11[%c48_302, %c0_303], %390 {strides = array<i32>} : memref<216x512xbf16, #tpu.memory_space<vmem>>, vector<8x512xbf16>,
    %c7_304 = arith.constant 7 : index
    %c0_305 = arith.constant 0 : index
    %392 = vector.load %arg2[%c7_304, %c0_305] : memref<27x512xf32, #tpu.memory_space<vmem>>, vector<1x512xf32>
    %393 = vector.broadcast %392 : vector<1x512xf32> to vector<8x512xf32>
    %394 = arith.mulf %385, %393 : vector<8x512xf32>
    %395 = arith.truncf %394 : vector<8x512xf32> to vector<8x512xbf16>
    %c56_306 = arith.constant 56 : index
    %c0_307 = arith.constant 0 : index
    %396 = vector.load %arg11[%c56_306, %c0_307] : memref<216x512xbf16, #tpu.memory_space<vmem>>, vector<8x512xbf16>
    tpu.vector_store %arg11[%c56_306, %c0_307], %395 {strides = array<i32>} : memref<216x512xbf16, #tpu.memory_space<vmem>>, vector<8x512xbf16>,
    %c511_i32_308 = arith.constant 511 : i32
    %397 = tpu.dynamic_rotate %385 by %c511_i32_308 dim 1 : vector<8x512xf32>, i32 -> vector<8x512xf32>
    %c8_309 = arith.constant 8 : index
    %c0_310 = arith.constant 0 : index
    %398 = vector.load %arg2[%c8_309, %c0_310] : memref<27x512xf32, #tpu.memory_space<vmem>>, vector<1x512xf32>
    %399 = vector.broadcast %398 : vector<1x512xf32> to vector<8x512xf32>
    %400 = arith.mulf %397, %399 : vector<8x512xf32>
    %401 = arith.truncf %400 : vector<8x512xf32> to vector<8x512xbf16>
    %c64_311 = arith.constant 64 : index
    %c0_312 = arith.constant 0 : index
    %402 = vector.load %arg11[%c64_311, %c0_312] : memref<216x512xbf16, #tpu.memory_space<vmem>>, vector<8x512xbf16>
    tpu.vector_store %arg11[%c64_311, %c0_312], %401 {strides = array<i32>} : memref<216x512xbf16, #tpu.memory_space<vmem>>, vector<8x512xbf16>,
    %c0_313 = arith.constant 0 : index
    %c120_314 = arith.constant 120 : index
    %403 = vector.load %arg10[%c0_313, %c120_314] : memref<8x768xf32, #tpu.memory_space<vmem>>, vector<8x512xf32>
    %c1_i32_315 = arith.constant 1 : i32
    %404 = tpu.dynamic_rotate %403 by %c1_i32_315 dim 1 : vector<8x512xf32>, i32 -> vector<8x512xf32>
    %c9_316 = arith.constant 9 : index
    %c0_317 = arith.constant 0 : index
    %405 = vector.load %arg2[%c9_316, %c0_317] : memref<27x512xf32, #tpu.memory_space<vmem>>, vector<1x512xf32>
    %406 = vector.broadcast %405 : vector<1x512xf32> to vector<8x512xf32>
    %407 = arith.mulf %404, %406 : vector<8x512xf32>
    %408 = arith.truncf %407 : vector<8x512xf32> to vector<8x512xbf16>
    %c72_318 = arith.constant 72 : index
    %c0_319 = arith.constant 0 : index
    %409 = vector.load %arg11[%c72_318, %c0_319] : memref<216x512xbf16, #tpu.memory_space<vmem>>, vector<8x512xbf16>
    tpu.vector_store %arg11[%c72_318, %c0_319], %408 {strides = array<i32>} : memref<216x512xbf16, #tpu.memory_space<vmem>>, vector<8x512xbf16>,
    %c10_320 = arith.constant 10 : index
    %c0_321 = arith.constant 0 : index
    %410 = vector.load %arg2[%c10_320, %c0_321] : memref<27x512xf32, #tpu.memory_space<vmem>>, vector<1x512xf32>
    %411 = vector.broadcast %410 : vector<1x512xf32> to vector<8x512xf32>
    %412 = arith.mulf %403, %411 : vector<8x512xf32>
    %413 = arith.truncf %412 : vector<8x512xf32> to vector<8x512xbf16>
    %c80_322 = arith.constant 80 : index
    %c0_323 = arith.constant 0 : index
    %414 = vector.load %arg11[%c80_322, %c0_323] : memref<216x512xbf16, #tpu.memory_space<vmem>>, vector<8x512xbf16>
    tpu.vector_store %arg11[%c80_322, %c0_323], %413 {strides = array<i32>} : memref<216x512xbf16, #tpu.memory_space<vmem>>, vector<8x512xbf16>,
    %c511_i32_324 = arith.constant 511 : i32
    %415 = tpu.dynamic_rotate %403 by %c511_i32_324 dim 1 : vector<8x512xf32>, i32 -> vector<8x512xf32>
    %c11_325 = arith.constant 11 : index
    %c0_326 = arith.constant 0 : index
    %416 = vector.load %arg2[%c11_325, %c0_326] : memref<27x512xf32, #tpu.memory_space<vmem>>, vector<1x512xf32>
    %417 = vector.broadcast %416 : vector<1x512xf32> to vector<8x512xf32>
    %418 = arith.mulf %415, %417 : vector<8x512xf32>
    %419 = arith.truncf %418 : vector<8x512xf32> to vector<8x512xbf16>
    %c88_327 = arith.constant 88 : index
    %c0_328 = arith.constant 0 : index
    %420 = vector.load %arg11[%c88_327, %c0_328] : memref<216x512xbf16, #tpu.memory_space<vmem>>, vector<8x512xbf16>
    tpu.vector_store %arg11[%c88_327, %c0_328], %419 {strides = array<i32>} : memref<216x512xbf16, #tpu.memory_space<vmem>>, vector<8x512xbf16>,
    %c0_329 = arith.constant 0 : index
    %c128_330 = arith.constant 128 : index
    %421 = vector.load %arg10[%c0_329, %c128_330] : memref<8x768xf32, #tpu.memory_space<vmem>>, vector<8x512xf32>
    %c1_i32_331 = arith.constant 1 : i32
    %422 = tpu.dynamic_rotate %421 by %c1_i32_331 dim 1 : vector<8x512xf32>, i32 -> vector<8x512xf32>
    %c12_332 = arith.constant 12 : index
    %c0_333 = arith.constant 0 : index
    %423 = vector.load %arg2[%c12_332, %c0_333] : memref<27x512xf32, #tpu.memory_space<vmem>>, vector<1x512xf32>
    %424 = vector.broadcast %423 : vector<1x512xf32> to vector<8x512xf32>
    %425 = arith.mulf %422, %424 : vector<8x512xf32>
    %426 = arith.truncf %425 : vector<8x512xf32> to vector<8x512xbf16>
    %c96_334 = arith.constant 96 : index
    %c0_335 = arith.constant 0 : index
    %427 = vector.load %arg11[%c96_334, %c0_335] : memref<216x512xbf16, #tpu.memory_space<vmem>>, vector<8x512xbf16>
    tpu.vector_store %arg11[%c96_334, %c0_335], %426 {strides = array<i32>} : memref<216x512xbf16, #tpu.memory_space<vmem>>, vector<8x512xbf16>,
    %c13_336 = arith.constant 13 : index
    %c0_337 = arith.constant 0 : index
    %428 = vector.load %arg2[%c13_336, %c0_337] : memref<27x512xf32, #tpu.memory_space<vmem>>, vector<1x512xf32>
    %429 = vector.broadcast %428 : vector<1x512xf32> to vector<8x512xf32>
    %430 = arith.mulf %421, %429 : vector<8x512xf32>
    %431 = arith.truncf %430 : vector<8x512xf32> to vector<8x512xbf16>
    %c104_338 = arith.constant 104 : index
    %c0_339 = arith.constant 0 : index
    %432 = vector.load %arg11[%c104_338, %c0_339] : memref<216x512xbf16, #tpu.memory_space<vmem>>, vector<8x512xbf16>
    tpu.vector_store %arg11[%c104_338, %c0_339], %431 {strides = array<i32>} : memref<216x512xbf16, #tpu.memory_space<vmem>>, vector<8x512xbf16>,
    %c511_i32_340 = arith.constant 511 : i32
    %433 = tpu.dynamic_rotate %421 by %c511_i32_340 dim 1 : vector<8x512xf32>, i32 -> vector<8x512xf32>
    %c14_341 = arith.constant 14 : index
    %c0_342 = arith.constant 0 : index
    %434 = vector.load %arg2[%c14_341, %c0_342] : memref<27x512xf32, #tpu.memory_space<vmem>>, vector<1x512xf32>
    %435 = vector.broadcast %434 : vector<1x512xf32> to vector<8x512xf32>
    %436 = arith.mulf %433, %435 : vector<8x512xf32>
    %437 = arith.truncf %436 : vector<8x512xf32> to vector<8x512xbf16>
    %c112_343 = arith.constant 112 : index
    %c0_344 = arith.constant 0 : index
    %438 = vector.load %arg11[%c112_343, %c0_344] : memref<216x512xbf16, #tpu.memory_space<vmem>>, vector<8x512xbf16>
    tpu.vector_store %arg11[%c112_343, %c0_344], %437 {strides = array<i32>} : memref<216x512xbf16, #tpu.memory_space<vmem>>, vector<8x512xbf16>,
    %c0_345 = arith.constant 0 : index
    %c136_346 = arith.constant 136 : index
    %439 = vector.load %arg10[%c0_345, %c136_346] : memref<8x768xf32, #tpu.memory_space<vmem>>, vector<8x512xf32>
    %c1_i32_347 = arith.constant 1 : i32
    %440 = tpu.dynamic_rotate %439 by %c1_i32_347 dim 1 : vector<8x512xf32>, i32 -> vector<8x512xf32>
    %c15_348 = arith.constant 15 : index
    %c0_349 = arith.constant 0 : index
    %441 = vector.load %arg2[%c15_348, %c0_349] : memref<27x512xf32, #tpu.memory_space<vmem>>, vector<1x512xf32>
    %442 = vector.broadcast %441 : vector<1x512xf32> to vector<8x512xf32>
    %443 = arith.mulf %440, %442 : vector<8x512xf32>
    %444 = arith.truncf %443 : vector<8x512xf32> to vector<8x512xbf16>
    %c120_350 = arith.constant 120 : index
    %c0_351 = arith.constant 0 : index
    %445 = vector.load %arg11[%c120_350, %c0_351] : memref<216x512xbf16, #tpu.memory_space<vmem>>, vector<8x512xbf16>
    tpu.vector_store %arg11[%c120_350, %c0_351], %444 {strides = array<i32>} : memref<216x512xbf16, #tpu.memory_space<vmem>>, vector<8x512xbf16>,
    %c16_352 = arith.constant 16 : index
    %c0_353 = arith.constant 0 : index
    %446 = vector.load %arg2[%c16_352, %c0_353] : memref<27x512xf32, #tpu.memory_space<vmem>>, vector<1x512xf32>
    %447 = vector.broadcast %446 : vector<1x512xf32> to vector<8x512xf32>
    %448 = arith.mulf %439, %447 : vector<8x512xf32>
    %449 = arith.truncf %448 : vector<8x512xf32> to vector<8x512xbf16>
    %c128_354 = arith.constant 128 : index
    %c0_355 = arith.constant 0 : index
    %450 = vector.load %arg11[%c128_354, %c0_355] : memref<216x512xbf16, #tpu.memory_space<vmem>>, vector<8x512xbf16>
    tpu.vector_store %arg11[%c128_354, %c0_355], %449 {strides = array<i32>} : memref<216x512xbf16, #tpu.memory_space<vmem>>, vector<8x512xbf16>,
    %c511_i32_356 = arith.constant 511 : i32
    %451 = tpu.dynamic_rotate %439 by %c511_i32_356 dim 1 : vector<8x512xf32>, i32 -> vector<8x512xf32>
    %c17_357 = arith.constant 17 : index
    %c0_358 = arith.constant 0 : index
    %452 = vector.load %arg2[%c17_357, %c0_358] : memref<27x512xf32, #tpu.memory_space<vmem>>, vector<1x512xf32>
    %453 = vector.broadcast %452 : vector<1x512xf32> to vector<8x512xf32>
    %454 = arith.mulf %451, %453 : vector<8x512xf32>
    %455 = arith.truncf %454 : vector<8x512xf32> to vector<8x512xbf16>
    %c136_359 = arith.constant 136 : index
    %c0_360 = arith.constant 0 : index
    %456 = vector.load %arg11[%c136_359, %c0_360] : memref<216x512xbf16, #tpu.memory_space<vmem>>, vector<8x512xbf16>
    tpu.vector_store %arg11[%c136_359, %c0_360], %455 {strides = array<i32>} : memref<216x512xbf16, #tpu.memory_space<vmem>>, vector<8x512xbf16>,
    %c0_361 = arith.constant 0 : index
    %c184_362 = arith.constant 184 : index
    %457 = vector.load %arg10[%c0_361, %c184_362] : memref<8x768xf32, #tpu.memory_space<vmem>>, vector<8x512xf32>
    %c1_i32_363 = arith.constant 1 : i32
    %458 = tpu.dynamic_rotate %457 by %c1_i32_363 dim 1 : vector<8x512xf32>, i32 -> vector<8x512xf32>
    %c18_364 = arith.constant 18 : index
    %c0_365 = arith.constant 0 : index
    %459 = vector.load %arg2[%c18_364, %c0_365] : memref<27x512xf32, #tpu.memory_space<vmem>>, vector<1x512xf32>
    %460 = vector.broadcast %459 : vector<1x512xf32> to vector<8x512xf32>
    %461 = arith.mulf %458, %460 : vector<8x512xf32>
    %462 = arith.truncf %461 : vector<8x512xf32> to vector<8x512xbf16>
    %c144_366 = arith.constant 144 : index
    %c0_367 = arith.constant 0 : index
    %463 = vector.load %arg11[%c144_366, %c0_367] : memref<216x512xbf16, #tpu.memory_space<vmem>>, vector<8x512xbf16>
    tpu.vector_store %arg11[%c144_366, %c0_367], %462 {strides = array<i32>} : memref<216x512xbf16, #tpu.memory_space<vmem>>, vector<8x512xbf16>,
    %c19_368 = arith.constant 19 : index
    %c0_369 = arith.constant 0 : index
    %464 = vector.load %arg2[%c19_368, %c0_369] : memref<27x512xf32, #tpu.memory_space<vmem>>, vector<1x512xf32>
    %465 = vector.broadcast %464 : vector<1x512xf32> to vector<8x512xf32>
    %466 = arith.mulf %457, %465 : vector<8x512xf32>
    %467 = arith.truncf %466 : vector<8x512xf32> to vector<8x512xbf16>
    %c152_370 = arith.constant 152 : index
    %c0_371 = arith.constant 0 : index
    %468 = vector.load %arg11[%c152_370, %c0_371] : memref<216x512xbf16, #tpu.memory_space<vmem>>, vector<8x512xbf16>
    tpu.vector_store %arg11[%c152_370, %c0_371], %467 {strides = array<i32>} : memref<216x512xbf16, #tpu.memory_space<vmem>>, vector<8x512xbf16>,
    %c511_i32_372 = arith.constant 511 : i32
    %469 = tpu.dynamic_rotate %457 by %c511_i32_372 dim 1 : vector<8x512xf32>, i32 -> vector<8x512xf32>
    %c20_373 = arith.constant 20 : index
    %c0_374 = arith.constant 0 : index
    %470 = vector.load %arg2[%c20_373, %c0_374] : memref<27x512xf32, #tpu.memory_space<vmem>>, vector<1x512xf32>
    %471 = vector.broadcast %470 : vector<1x512xf32> to vector<8x512xf32>
    %472 = arith.mulf %469, %471 : vector<8x512xf32>
    %473 = arith.truncf %472 : vector<8x512xf32> to vector<8x512xbf16>
    %c160_375 = arith.constant 160 : index
    %c0_376 = arith.constant 0 : index
    %474 = vector.load %arg11[%c160_375, %c0_376] : memref<216x512xbf16, #tpu.memory_space<vmem>>, vector<8x512xbf16>
    tpu.vector_store %arg11[%c160_375, %c0_376], %473 {strides = array<i32>} : memref<216x512xbf16, #tpu.memory_space<vmem>>, vector<8x512xbf16>,
    %c0_377 = arith.constant 0 : index
    %c192_378 = arith.constant 192 : index
    %475 = vector.load %arg10[%c0_377, %c192_378] : memref<8x768xf32, #tpu.memory_space<vmem>>, vector<8x512xf32>
    %c1_i32_379 = arith.constant 1 : i32
    %476 = tpu.dynamic_rotate %475 by %c1_i32_379 dim 1 : vector<8x512xf32>, i32 -> vector<8x512xf32>
    %c21_380 = arith.constant 21 : index
    %c0_381 = arith.constant 0 : index
    %477 = vector.load %arg2[%c21_380, %c0_381] : memref<27x512xf32, #tpu.memory_space<vmem>>, vector<1x512xf32>
    %478 = vector.broadcast %477 : vector<1x512xf32> to vector<8x512xf32>
    %479 = arith.mulf %476, %478 : vector<8x512xf32>
    %480 = arith.truncf %479 : vector<8x512xf32> to vector<8x512xbf16>
    %c168_382 = arith.constant 168 : index
    %c0_383 = arith.constant 0 : index
    %481 = vector.load %arg11[%c168_382, %c0_383] : memref<216x512xbf16, #tpu.memory_space<vmem>>, vector<8x512xbf16>
    tpu.vector_store %arg11[%c168_382, %c0_383], %480 {strides = array<i32>} : memref<216x512xbf16, #tpu.memory_space<vmem>>, vector<8x512xbf16>,
    %c22_384 = arith.constant 22 : index
    %c0_385 = arith.constant 0 : index
    %482 = vector.load %arg2[%c22_384, %c0_385] : memref<27x512xf32, #tpu.memory_space<vmem>>, vector<1x512xf32>
    %483 = vector.broadcast %482 : vector<1x512xf32> to vector<8x512xf32>
    %484 = arith.mulf %475, %483 : vector<8x512xf32>
    %485 = arith.truncf %484 : vector<8x512xf32> to vector<8x512xbf16>
    %c176_386 = arith.constant 176 : index
    %c0_387 = arith.constant 0 : index
    %486 = vector.load %arg11[%c176_386, %c0_387] : memref<216x512xbf16, #tpu.memory_space<vmem>>, vector<8x512xbf16>
    tpu.vector_store %arg11[%c176_386, %c0_387], %485 {strides = array<i32>} : memref<216x512xbf16, #tpu.memory_space<vmem>>, vector<8x512xbf16>,
    %c511_i32_388 = arith.constant 511 : i32
    %487 = tpu.dynamic_rotate %475 by %c511_i32_388 dim 1 : vector<8x512xf32>, i32 -> vector<8x512xf32>
    %c23_389 = arith.constant 23 : index
    %c0_390 = arith.constant 0 : index
    %488 = vector.load %arg2[%c23_389, %c0_390] : memref<27x512xf32, #tpu.memory_space<vmem>>, vector<1x512xf32>
    %489 = vector.broadcast %488 : vector<1x512xf32> to vector<8x512xf32>
    %490 = arith.mulf %487, %489 : vector<8x512xf32>
    %491 = arith.truncf %490 : vector<8x512xf32> to vector<8x512xbf16>
    %c184_391 = arith.constant 184 : index
    %c0_392 = arith.constant 0 : index
    %492 = vector.load %arg11[%c184_391, %c0_392] : memref<216x512xbf16, #tpu.memory_space<vmem>>, vector<8x512xbf16>
    tpu.vector_store %arg11[%c184_391, %c0_392], %491 {strides = array<i32>} : memref<216x512xbf16, #tpu.memory_space<vmem>>, vector<8x512xbf16>,
    %c0_393 = arith.constant 0 : index
    %c200_394 = arith.constant 200 : index
    %493 = vector.load %arg10[%c0_393, %c200_394] : memref<8x768xf32, #tpu.memory_space<vmem>>, vector<8x512xf32>
    %c1_i32_395 = arith.constant 1 : i32
    %494 = tpu.dynamic_rotate %493 by %c1_i32_395 dim 1 : vector<8x512xf32>, i32 -> vector<8x512xf32>
    %c24_396 = arith.constant 24 : index
    %c0_397 = arith.constant 0 : index
    %495 = vector.load %arg2[%c24_396, %c0_397] : memref<27x512xf32, #tpu.memory_space<vmem>>, vector<1x512xf32>
    %496 = vector.broadcast %495 : vector<1x512xf32> to vector<8x512xf32>
    %497 = arith.mulf %494, %496 : vector<8x512xf32>
    %498 = arith.truncf %497 : vector<8x512xf32> to vector<8x512xbf16>
    %c192_398 = arith.constant 192 : index
    %c0_399 = arith.constant 0 : index
    %499 = vector.load %arg11[%c192_398, %c0_399] : memref<216x512xbf16, #tpu.memory_space<vmem>>, vector<8x512xbf16>
    tpu.vector_store %arg11[%c192_398, %c0_399], %498 {strides = array<i32>} : memref<216x512xbf16, #tpu.memory_space<vmem>>, vector<8x512xbf16>,
    %c25_400 = arith.constant 25 : index
    %c0_401 = arith.constant 0 : index
    %500 = vector.load %arg2[%c25_400, %c0_401] : memref<27x512xf32, #tpu.memory_space<vmem>>, vector<1x512xf32>
    %501 = vector.broadcast %500 : vector<1x512xf32> to vector<8x512xf32>
    %502 = arith.mulf %493, %501 : vector<8x512xf32>
    %503 = arith.truncf %502 : vector<8x512xf32> to vector<8x512xbf16>
    %c200_402 = arith.constant 200 : index
    %c0_403 = arith.constant 0 : index
    %504 = vector.load %arg11[%c200_402, %c0_403] : memref<216x512xbf16, #tpu.memory_space<vmem>>, vector<8x512xbf16>
    tpu.vector_store %arg11[%c200_402, %c0_403], %503 {strides = array<i32>} : memref<216x512xbf16, #tpu.memory_space<vmem>>, vector<8x512xbf16>,
    %c511_i32_404 = arith.constant 511 : i32
    %505 = tpu.dynamic_rotate %493 by %c511_i32_404 dim 1 : vector<8x512xf32>, i32 -> vector<8x512xf32>
    %c26_405 = arith.constant 26 : index
    %c0_406 = arith.constant 0 : index
    %506 = vector.load %arg2[%c26_405, %c0_406] : memref<27x512xf32, #tpu.memory_space<vmem>>, vector<1x512xf32>
    %507 = vector.broadcast %506 : vector<1x512xf32> to vector<8x512xf32>
    %508 = arith.mulf %505, %507 : vector<8x512xf32>
    %509 = arith.truncf %508 : vector<8x512xf32> to vector<8x512xbf16>
    %c208_407 = arith.constant 208 : index
    %c0_408 = arith.constant 0 : index
    %510 = vector.load %arg11[%c208_407, %c0_408] : memref<216x512xbf16, #tpu.memory_space<vmem>>, vector<8x512xbf16>
    tpu.vector_store %arg11[%c208_407, %c0_408], %509 {strides = array<i32>} : memref<216x512xbf16, #tpu.memory_space<vmem>>, vector<8x512xbf16>,
    %c0_409 = arith.constant 0 : index
    %c0_410 = arith.constant 0 : index
    %511 = vector.load %arg7[%c0_409, %c0_410] : memref<8x216xbf16, #tpu.memory_space<vmem>>, vector<8x216xbf16>
    %c0_411 = arith.constant 0 : index
    %c0_412 = arith.constant 0 : index
    %512 = vector.load %arg11[%c0_411, %c0_412] : memref<216x512xbf16, #tpu.memory_space<vmem>>, vector<216x512xbf16>
    %cst_413 = arith.constant dense<0.000000e+00> : vector<8x512xf32>
    %513 = tpu.matmul %511, %512, %cst_413 {dimension_numbers = #tpu.dot_dimension_numbers<[1], [0], [0], [1], [0, 0, 1, 1], [], []>} : vector<8x216xbf16>, vector<216x512xbf16>, vector<8x512xf32> -> vector<8x512xf32>
    %c0_414 = arith.constant 0 : index
    %c0_415 = arith.constant 0 : index
    %514 = vector.load %arg8[%c0_414, %c0_415] : memref<8x1xf32, #tpu.memory_space<vmem>>, vector<8x1xf32>
    %515 = vector.broadcast %514 : vector<8x1xf32> to vector<8x512xf32>
    %516 = arith.addf %513, %515 : vector<8x512xf32>
    %cst_416 = arith.constant 0.000000e+00 : f32
    %517 = vector.broadcast %cst_416 : f32 to vector<8x512xf32>
    %518 = arith.maximumf %516, %517 : vector<8x512xf32>
    %c0_417 = arith.constant 0 : index
    %c0_418 = arith.constant 0 : index
    %c0_419 = arith.constant 0 : index
    %519 = vector.load %arg9[%c0_417, %c0_418, %c0_419] : memref<1x8x512xf32, #tpu.memory_space<vmem>>, vector<1x8x512xf32>
    %520 = vector.shape_cast %519 : vector<1x8x512xf32> to vector<8x512xf32>
    %521 = vector.shape_cast %518 : vector<8x512xf32> to vector<1x8x512xf32>
    tpu.vector_store %arg9[%c0_417, %c0_418, %c0_419], %521 {strides = array<i32>} : memref<1x8x512xf32, #tpu.memory_space<vmem>>, vector<1x8x512xf32>,
    return
  }
  func.func @transform_0(%arg0: i32) -> (i32, i32, i32) {
    %c0_i32 = arith.constant 0 : i32
    %c0_i32_0 = arith.constant 0 : i32
    %c0_i32_1 = arith.constant 0 : i32
    return %arg0, %c0_i32, %c0_i32_0 : i32, i32, i32
  }
  func.func @transform_1(%arg0: i32) -> (i32, i32) {
    %c0_i32 = arith.constant 0 : i32
    %c0_i32_0 = arith.constant 0 : i32
    %c0_i32_1 = arith.constant 0 : i32
    return %c0_i32, %c0_i32_0 : i32, i32
  }
  func.func @transform_2(%arg0: i32) -> (i32, i32) {
    %c0_i32 = arith.constant 0 : i32
    %c0_i32_0 = arith.constant 0 : i32
    %c0_i32_1 = arith.constant 0 : i32
    return %c0_i32, %c0_i32_0 : i32, i32
  }
  func.func @transform_3(%arg0: i32) -> (i32, i32) {
    %c0_i32 = arith.constant 0 : i32
    %c0_i32_0 = arith.constant 0 : i32
    %c0_i32_1 = arith.constant 0 : i32
    return %c0_i32, %c0_i32_0 : i32, i32
  }
  func.func @transform_4(%arg0: i32) -> (i32, i32) {
    %c0_i32 = arith.constant 0 : i32
    %c0_i32_0 = arith.constant 0 : i32
    %c0_i32_1 = arith.constant 0 : i32
    return %c0_i32, %c0_i32_0 : i32, i32
  }
  func.func @transform_5(%arg0: i32) -> (i32, i32) {
    %c0_i32 = arith.constant 0 : i32
    %c0_i32_0 = arith.constant 0 : i32
    %c0_i32_1 = arith.constant 0 : i32
    return %c0_i32, %c0_i32_0 : i32, i32
  }
  func.func @transform_6(%arg0: i32) -> (i32, i32) {
    %c0_i32 = arith.constant 0 : i32
    %c0_i32_0 = arith.constant 0 : i32
    %c0_i32_1 = arith.constant 0 : i32
    return %c0_i32, %c0_i32_0 : i32, i32
  }
  func.func @transform_7(%arg0: i32) -> (i32, i32) {
    %c0_i32 = arith.constant 0 : i32
    %c0_i32_0 = arith.constant 0 : i32
    %c0_i32_1 = arith.constant 0 : i32
    return %c0_i32, %c0_i32_0 : i32, i32
  }
  func.func @transform_8(%arg0: i32) -> (i32, i32, i32) {
    %c0_i32 = arith.constant 0 : i32
    %c0_i32_0 = arith.constant 0 : i32
    %c0_i32_1 = arith.constant 0 : i32
    return %arg0, %c0_i32, %c0_i32_0 : i32, i32, i32
  }
}

</mosaic_0001>

<llo_original>
// kernel: tpu_custom_call.1
$region0: #{tpu_custom_call.1}
  #allocation0 [shape = 'u32[]', space=smem, size = 0x4, offset = 0x4, fixed_abs, tag = 'smem constant byte address 0x4 - core index']
  #allocation1 [shape = 'u32[72,128]{1,0:T(1,128)}', space=vmem, size = 0x9000, scoped, tag = 'internal scratch']
  #allocation2 [shape = 'f32[8,768]{1,0:T(8,128)}', space=vmem, size = 0x6000, scoped, tag = 'scratch operand']
  #allocation3 [shape = 'bf16[216,512]{1,0:T(8,128)(2,1)}', space=vmem, size = 0x36000, scoped, tag = 'scratch operand']
  %s0 = inlined_call_operand.hbm [shape: f32[2,8,512], index: 0, kind: input, shape index: {}]
  %s1 = inlined_call_operand.hbm [shape: f32[27,512], index: 1, kind: input, shape index: {}]
  %s2 = inlined_call_operand.vmem [shape: bf16[8,216], index: 2, kind: input, shape index: {}]
  %s3 = inlined_call_operand.vmem [shape: f32[8,1], index: 3, kind: input, shape index: {}]
  %s4 = inlined_call_operand.vmem [shape: bf16[8,216], index: 4, kind: input, shape index: {}]
  %s5 = inlined_call_operand.vmem [shape: f32[8,1], index: 5, kind: input, shape index: {}]
  %s6 = inlined_call_operand.vmem [shape: bf16[8,216], index: 6, kind: input, shape index: {}]
  %s7 = inlined_call_operand.vmem [shape: f32[8,1], index: 7, kind: input, shape index: {}]
  %s8 = inlined_call_operand.hbm [shape: f32[2,8,512], index: 8, kind: output, shape index: {}]
  %s9 = sld [smem:[#allocation0]]
  $region73: #{tpu_custom_call.1} parent=0
    _
  %s11 = ssub.s32 1, %s9
  %s12 = scalar_select 0, %s11, %s9
  $region1: #{tpu_custom_call.1} parent=0
    #allocation4 [shape = 'u8[32768]{0}', space=vmem, size = 0x8000, scoped, tag = 'input window, operand 0']
    #allocation5 [shape = 's32[2]{0}', space=sflag, size = 0x8, scoped, tag = 'scoped memory for tpu_custom_call.1']
    #allocation6 [shape = 's32[2]{0}', space=sflag, size = 0x8, scoped, tag = 'scoped memory for tpu_custom_call.1']
    #allocation7 [shape = 'u8[65536]{0}', space=vmem, size = 0x10000, scoped, tag = 'input window, operand 1, single buffered']
    #allocation8 [shape = 's32[1]{0}', space=sflag, size = 0x4, scoped, tag = 'scoped memory for tpu_custom_call.1']
    #allocation9 [shape = 'u8[32768]{0}', space=vmem, size = 0x8000, scoped, tag = 'output window, operand 0']
    %13 = vsyncpa [#allocation5], 0
    %s14 = scalar_lea.sflag [#allocation5], 1
    %15 = vsyncpa %s14, 0
    %16 = vsyncpa [#allocation8], 0
    %17 = vsyncpa [#allocation6], 0
    %s18 = scalar_lea.sflag [#allocation6], 1
    %19 = vsyncpa %s18, 0
    loop: start=0, step=1, limit=4
    $region2: #{tpu_custom_call.1} parent=1 // loop_pre_header
      _
    $region3: #{tpu_custom_call.1} parent=1 // loop_header
      %s21 = sphi 0, %s25
      %p22 = scmp.ge.s32.totalorder %s21, 4
      %s31 = sphi 0, %s33
      %s34 = sphi 0, %s31
      %s35 = sphi 0, %s34
      %s51 = sphi 0, %s35
      %s55 = sphi 0, %s55
      %s57 = sphi 0, %s55
      %s58 = sphi 0, %s57
      %s72 = sphi 0, %s58
      %s76 = sphi 0, %s76
      %s78 = sphi 0, %s76
      %s79 = sphi 0, %s78
      %s93 = sphi 0, %s79
      %s97 = sphi 0, %s97
      %s99 = sphi 0, %s97
      %s100 = sphi 0, %s99
      %s114 = sphi 0, %s100
      %s118 = sphi 0, %s118
      %s120 = sphi 0, %s118
      %s121 = sphi 0, %s120
      %s135 = sphi 0, %s121
      %s139 = sphi 0, %s139
      %s141 = sphi 0, %s139
      %s142 = sphi 0, %s141
      %s156 = sphi 0, %s142
      %s160 = sphi 0, %s160
      %s162 = sphi 0, %s160
      %s163 = sphi 0, %s162
      %s177 = sphi 0, %s163
      %s181 = sphi 0, %s181
      %s183 = sphi 0, %s181
      %s184 = sphi 0, %s183
      %s198 = sphi 0, %s184
      %s204 = sphi 0, %s206
      %s207 = sphi 0, %s204
      %s208 = sphi 0, %s207
      %s224 = sphi 0, %s208
    $region4: #{tpu_custom_call.1} parent=1 // loop_header_branch
      %24 = sbr.rel (%p22) target = $region8
    $region5: #{tpu_custom_call.1} parent=1 // loop_body
      %s26 = ssub.s32 %s21, 1
      %s27 = ssub.s32 %s21, 2
      %s28 = sadd.s32 %s21, 1
      %s29 = ssub.s32 %s21, %s28
      %p30 = scmp.eq.s32.totalorder %s29, 0
      %s32 = sadd.s32 %s31, 1
      %s33 = scalar_select %p30, %s31, %s32
      %p36 = pneg %p30
      %p37 = scmp.eq.s32.totalorder %s21, 1
      %p38 = por %p36, %p37
      %p39 = scmp.ne.s32.totalorder %s31, %s34
      %p40 = scmp.eq.s32.totalorder %s21, 0
      %p41 = por %p39, %p40
      %p42 = scmp.ne.s32.totalorder %s31, %s34
      %p43 = scmp.eq.s32.totalorder %s26, 1
      %p44 = por %p42, %p43
      %p45 = scmp.ne.s32.totalorder %s34, %s35
      %p46 = scmp.eq.s32.totalorder %s26, 0
      %p47 = por %p45, %p46
      %p48 = scmp.ne.s32.totalorder %s34, %s35
      %p49 = scmp.eq.s32.totalorder %s27, 1
      %p50 = por %p48, %p49
      %p52 = scmp.ne.s32.totalorder %s35, %s51
      %p53 = scmp.eq.s32.totalorder %s27, 0
      %p54 = por %p52, %p53
      %s56 = sadd.s32 %s55, 1
      %p59 = scmp.eq.s32.totalorder %s21, 1
      %p60 = scmp.ne.s32.totalorder %s55, %s57
      %p61 = scmp.eq.s32.totalorder %s21, 0
      %p62 = por %p60, %p61
      %p63 = scmp.ne.s32.totalorder %s55, %s57
      %p64 = scmp.eq.s32.totalorder %s26, 1
      %p65 = por %p63, %p64
      %p66 = scmp.ne.s32.totalorder %s57, %s58
      %p67 = scmp.eq.s32.totalorder %s26, 0
      %p68 = por %p66, %p67
      %p69 = scmp.ne.s32.totalorder %s57, %s58
      %p70 = scmp.eq.s32.totalorder %s27, 1
      %p71 = por %p69, %p70
      %p73 = scmp.ne.s32.totalorder %s58, %s72
      %p74 = scmp.eq.s32.totalorder %s27, 0
      %p75 = por %p73, %p74
      %s77 = sadd.s32 %s76, 1
      %p80 = scmp.eq.s32.totalorder %s21, 1
      %p81 = scmp.ne.s32.totalorder %s76, %s78
      %p82 = scmp.eq.s32.totalorder %s21, 0
      %p83 = por %p81, %p82
      %p84 = scmp.ne.s32.totalorder %s76, %s78
      %p85 = scmp.eq.s32.totalorder %s26, 1
      %p86 = por %p84, %p85
      %p87 = scmp.ne.s32.totalorder %s78, %s79
      %p88 = scmp.eq.s32.totalorder %s26, 0
      %p89 = por %p87, %p88
      %p90 = scmp.ne.s32.totalorder %s78, %s79
      %p91 = scmp.eq.s32.totalorder %s27, 1
      %p92 = por %p90, %p91
      %p94 = scmp.ne.s32.totalorder %s79, %s93
      %p95 = scmp.eq.s32.totalorder %s27, 0
      %p96 = por %p94, %p95
      %s98 = sadd.s32 %s97, 1
      %p101 = scmp.eq.s32.totalorder %s21, 1
      %p102 = scmp.ne.s32.totalorder %s97, %s99
      %p103 = scmp.eq.s32.totalorder %s21, 0
      %p104 = por %p102, %p103
      %p105 = scmp.ne.s32.totalorder %s97, %s99
      %p106 = scmp.eq.s32.totalorder %s26, 1
      %p107 = por %p105, %p106
      %p108 = scmp.ne.s32.totalorder %s99, %s100
      %p109 = scmp.eq.s32.totalorder %s26, 0
      %p110 = por %p108, %p109
      %p111 = scmp.ne.s32.totalorder %s99, %s100
      %p112 = scmp.eq.s32.totalorder %s27, 1
      %p113 = por %p111, %p112
      %p115 = scmp.ne.s32.totalorder %s100, %s114
      %p116 = scmp.eq.s32.totalorder %s27, 0
      %p117 = por %p115, %p116
      %s119 = sadd.s32 %s118, 1
      %p122 = scmp.eq.s32.totalorder %s21, 1
      %p123 = scmp.ne.s32.totalorder %s118, %s120
      %p124 = scmp.eq.s32.totalorder %s21, 0
      %p125 = por %p123, %p124
      %p126 = scmp.ne.s32.totalorder %s118, %s120
      %p127 = scmp.eq.s32.totalorder %s26, 1
      %p128 = por %p126, %p127
      %p129 = scmp.ne.s32.totalorder %s120, %s121
      %p130 = scmp.eq.s32.totalorder %s26, 0
      %p131 = por %p129, %p130
      %p132 = scmp.ne.s32.totalorder %s120, %s121
      %p133 = scmp.eq.s32.totalorder %s27, 1
      %p134 = por %p132, %p133
      %p136 = scmp.ne.s32.totalorder %s121, %s135
      %p137 = scmp.eq.s32.totalorder %s27, 0
      %p138 = por %p136, %p137
      %s140 = sadd.s32 %s139, 1
      %p143 = scmp.eq.s32.totalorder %s21, 1
      %p144 = scmp.ne.s32.totalorder %s139, %s141
      %p145 = scmp.eq.s32.totalorder %s21, 0
      %p146 = por %p144, %p145
      %p147 = scmp.ne.s32.totalorder %s139, %s141
      %p148 = scmp.eq.s32.totalorder %s26, 1
      %p149 = por %p147, %p148
      %p150 = scmp.ne.s32.totalorder %s141, %s142
      %p151 = scmp.eq.s32.totalorder %s26, 0
      %p152 = por %p150, %p151
      %p153 = scmp.ne.s32.totalorder %s141, %s142
      %p154 = scmp.eq.s32.totalorder %s27, 1
      %p155 = por %p153, %p154
      %p157 = scmp.ne.s32.totalorder %s142, %s156
      %p158 = scmp.eq.s32.totalorder %s27, 0
      %p159 = por %p157, %p158
      %s161 = sadd.s32 %s160, 1
      %p164 = scmp.eq.s32.totalorder %s21, 1
      %p165 = scmp.ne.s32.totalorder %s160, %s162
      %p166 = scmp.eq.s32.totalorder %s21, 0
      %p167 = por %p165, %p166
      %p168 = scmp.ne.s32.totalorder %s160, %s162
      %p169 = scmp.eq.s32.totalorder %s26, 1
      %p170 = por %p168, %p169
      %p171 = scmp.ne.s32.totalorder %s162, %s163
      %p172 = scmp.eq.s32.totalorder %s26, 0
      %p173 = por %p171, %p172
      %p174 = scmp.ne.s32.totalorder %s162, %s163
      %p175 = scmp.eq.s32.totalorder %s27, 1
      %p176 = por %p174, %p175
      %p178 = scmp.ne.s32.totalorder %s163, %s177
      %p179 = scmp.eq.s32.totalorder %s27, 0
      %p180 = por %p178, %p179
      %s182 = sadd.s32 %s181, 1
      %p185 = scmp.eq.s32.totalorder %s21, 1
      %p186 = scmp.ne.s32.totalorder %s181, %s183
      %p187 = scmp.eq.s32.totalorder %s21, 0
      %p188 = por %p186, %p187
      %p189 = scmp.ne.s32.totalorder %s181, %s183
      %p190 = scmp.eq.s32.totalorder %s26, 1
      %p191 = por %p189, %p190
      %p192 = scmp.ne.s32.totalorder %s183, %s184
      %p193 = scmp.eq.s32.totalorder %s26, 0
      %p194 = por %p192, %p193
      %p195 = scmp.ne.s32.totalorder %s183, %s184
      %p196 = scmp.eq.s32.totalorder %s27, 1
      %p197 = por %p195, %p196
      %p199 = scmp.ne.s32.totalorder %s184, %s198
      %p200 = scmp.eq.s32.totalorder %s27, 0
      %p201 = por %p199, %p200
      %s202 = ssub.s32 %s21, %s28
      %p203 = scmp.eq.s32.totalorder %s202, 0
      %s205 = sadd.s32 %s204, 1
      %s206 = scalar_select %p203, %s204, %s205
      %p209 = pneg %p203
      %p210 = scmp.eq.s32.totalorder %s21, 1
      %p211 = por %p209, %p210
      %p212 = scmp.ne.s32.totalorder %s204, %s207
      %p213 = scmp.eq.s32.totalorder %s21, 0
      %p214 = por %p212, %p213
      %p215 = scmp.ne.s32.totalorder %s204, %s207
      %p216 = scmp.eq.s32.totalorder %s26, 1
      %p217 = por %p215, %p216
      %p218 = scmp.ne.s32.totalorder %s207, %s208
      %p219 = scmp.eq.s32.totalorder %s26, 0
      %p220 = por %p218, %p219
      %p221 = scmp.ne.s32.totalorder %s207, %s208
      %p222 = scmp.eq.s32.totalorder %s27, 1
      %p223 = por %p221, %p222
      %p225 = scmp.ne.s32.totalorder %s208, %s224
      %p226 = scmp.eq.s32.totalorder %s27, 0
      %p227 = por %p225, %p226
      %p228 = scmp.le.s32.totalorder 1, %s21
      %p229 = scmp.lt.s32.totalorder %s21, 3
      %p230 = pnand %p228, %p229
      %p231 = pneg %p230
      // Predicated region
      $region9: #{tpu_custom_call.1} parent=5 // pred_check
        _
      $region10: #{tpu_custom_call.1} parent=5 // pred_check_branch
        %233 = sbr.rel (%p230) target = $region12
      $region11: #{tpu_custom_call.1} parent=5 // pred_region
        %s234 = ssub.s32 %s21, 1
        // Predicated region
        $region13: #{tpu_custom_call.1} parent=11 // pred_check
          %p235 = pneg %p68
        $region14: #{tpu_custom_call.1} parent=11 // pred_check_branch
          %237 = sbr.rel (%p235) target = $region16
        $region15: #{tpu_custom_call.1} parent=11 // pred_region
          %239 = vsyncadd [#allocation8], 0
          %s240 = sshll.u32 %s1, 4
          %s241 = int_to_ptr.hbm [resolvable:$true] %s240
          %s242 = sshll.u32 [#allocation7], 4
          %s243 = int_to_ptr.vmem [resolvable:$true] %s242
          %248 = dma.hbm_to_vmem [thread:$0]  %s241, 2048, %s243, [#allocation8], 512, 512, 32
        $region16: #{tpu_custom_call.1} parent=11 // pred_fallthru
          _
        // Predicated region
        $region17: #{tpu_custom_call.1} parent=11 // pred_check
          %p249 = pneg %p89
        $region18: #{tpu_custom_call.1} parent=11 // pred_check_branch
          %251 = sbr.rel (%p249) target = $region20
        $region19: #{tpu_custom_call.1} parent=11 // pred_region
          _
        $region20: #{tpu_custom_call.1} parent=11 // pred_fallthru
          _
        // Predicated region
        $region21: #{tpu_custom_call.1} parent=11 // pred_check
          %p252 = pneg %p110
        $region22: #{tpu_custom_call.1} parent=11 // pred_check_branch
          %254 = sbr.rel (%p252) target = $region24
        $region23: #{tpu_custom_call.1} parent=11 // pred_region
          _
        $region24: #{tpu_custom_call.1} parent=11 // pred_fallthru
          _
        // Predicated region
        $region25: #{tpu_custom_call.1} parent=11 // pred_check
          %p255 = pneg %p131
        $region26: #{tpu_custom_call.1} parent=11 // pred_check_branch
          %257 = sbr.rel (%p255) target = $region28
        $region27: #{tpu_custom_call.1} parent=11 // pred_region
          _
        $region28: #{tpu_custom_call.1} parent=11 // pred_fallthru
          _
        // Predicated region
        $region29: #{tpu_custom_call.1} parent=11 // pred_check
          %p258 = pneg %p152
        $region30: #{tpu_custom_call.1} parent=11 // pred_check_branch
          %260 = sbr.rel (%p258) target = $region32
        $region31: #{tpu_custom_call.1} parent=11 // pred_region
          _
        $region32: #{tpu_custom_call.1} parent=11 // pred_fallthru
          _
        // Predicated region
        $region33: #{tpu_custom_call.1} parent=11 // pred_check
          %p261 = pneg %p173
        $region34: #{tpu_custom_call.1} parent=11 // pred_check_branch
          %263 = sbr.rel (%p261) target = $region36
        $region35: #{tpu_custom_call.1} parent=11 // pred_region
          _
        $region36: #{tpu_custom_call.1} parent=11 // pred_fallthru
          _
        // Predicated region
        $region37: #{tpu_custom_call.1} parent=11 // pred_check
          %p264 = pneg %p194
        $region38: #{tpu_custom_call.1} parent=11 // pred_check_branch
          %266 = sbr.rel (%p264) target = $region40
        $region39: #{tpu_custom_call.1} parent=11 // pred_region
          _
        $region40: #{tpu_custom_call.1} parent=11 // pred_fallthru
          _
      $region12: #{tpu_custom_call.1} parent=5 // pred_fallthru
        _
      %p267 = scmp.lt.s32.totalorder %s21, 2
      // Predicated region
      $region41: #{tpu_custom_call.1} parent=5 // pred_check
        %p268 = pneg %p267
      $region42: #{tpu_custom_call.1} parent=5 // pred_check_branch
        %270 = sbr.rel (%p268) target = $region44
      $region43: #{tpu_custom_call.1} parent=5 // pred_region
        // Predicated region
        $region45: #{tpu_custom_call.1} parent=43 // pred_check
          %p271 = pneg %p41
        $region46: #{tpu_custom_call.1} parent=43 // pred_check_branch
          %273 = sbr.rel (%p271) target = $region48
        $region47: #{tpu_custom_call.1} parent=43 // pred_region
          %s274 = sand.u32 %s31, 1
          %s275 = scalar_lea.sflag [#allocation5], %s274
          %s276 = sand.u32 %s31, 1
          %s277 = smul.addr %s276, 32
          %s278 = scalar_lea.vmem [#allocation4], %s277
          %280 = vsyncadd %s275, 0
          %s281 = smul.addr %s21, 4
          %s282 = smul.addr %s281, 8
          %s283 = scalar_lea.hbm %s0, %s282
          %s285 = sshll.u32 %s283, 4
          %s286 = int_to_ptr.hbm [resolvable:$true] %s285
          %s287 = sshll.u32 %s278, 4
          %s288 = int_to_ptr.vmem [resolvable:$true] %s287
          %290 = dma.hbm_to_vmem [thread:$0]  %s286, 512, %s288, %s275
        $region48: #{tpu_custom_call.1} parent=43 // pred_fallthru
          _
      $region44: #{tpu_custom_call.1} parent=5 // pred_fallthru
        _
      %p291 = scmp.le.s32.totalorder 1, %s21
      %p292 = scmp.lt.s32.totalorder %s21, 3
      %p293 = pnand %p291, %p292
      %p294 = pneg %p293
      // Predicated region
      $region49: #{tpu_custom_call.1} parent=5 // pred_check
        _
      $region50: #{tpu_custom_call.1} parent=5 // pred_check_branch
        %296 = sbr.rel (%p293) target = $region52
      $region51: #{tpu_custom_call.1} parent=5 // pred_region
        %s297 = ssub.s32 %s21, 1
        %s298 = sand.u32 %s34, 1
        %s299 = scalar_lea.sflag [#allocation5], %s298
        %s300 = sand.u32 %s34, 1
        %s301 = smul.addr %s300, 32
        %s302 = scalar_lea.vmem [#allocation4], %s301
        // Predicated region
        $region53: #{tpu_custom_call.1} parent=51 // pred_check
          %p303 = pneg %p47
        $region54: #{tpu_custom_call.1} parent=51 // pred_check_branch
          %305 = sbr.rel (%p303) target = $region56
        $region55: #{tpu_custom_call.1} parent=51 // pred_region
          %307 = dma.done %s299, 512
        $region56: #{tpu_custom_call.1} parent=51 // pred_fallthru
          _
        // Predicated region
        $region57: #{tpu_custom_call.1} parent=51 // pred_check
          %p308 = pneg %p68
        $region58: #{tpu_custom_call.1} parent=51 // pred_check_branch
          %310 = sbr.rel (%p308) target = $region60
        $region59: #{tpu_custom_call.1} parent=51 // pred_region
          %312 = dma.done [#allocation8], 2048
        $region60: #{tpu_custom_call.1} parent=51 // pred_fallthru
          _
        %s313 = sand.u32 %s34, 1
        %s314 = scalar_lea.sflag [#allocation5], %s313
        %s315 = sand.u32 %s34, 1
        %s316 = smul.addr %s315, 32
        %s317 = scalar_lea.vmem [#allocation4], %s316
        %p318 = pneg %p47
        %p319 = pneg %p44
        %p320 = pneg %p68
        %p321 = pneg %p65
        %p322 = pneg %p89
        %p323 = pneg %p86
        %p324 = pneg %p110
        %p325 = pneg %p107
        %p326 = pneg %p131
        %p327 = pneg %p128
        %p328 = pneg %p152
        %p329 = pneg %p149
        %p330 = pneg %p173
        %p331 = pneg %p170
        %p332 = pneg %p194
        %p333 = pneg %p191
        %p334 = pneg %p220
        %p335 = pneg %p217
        %s336 = sand.u32 %s207, 1
        %s337 = scalar_lea.sflag [#allocation6], %s336
        %s338 = sand.u32 %s207, 1
        %s339 = smul.addr %s338, 32
        %s340 = scalar_lea.vmem [#allocation9], %s339
        %342 = vst [vmem:[#allocation2] sm:$0xff] 0.0
        %343 = vst [vmem:[#allocation2 + $0x28] sm:$0xff] 0.0
        %v344 = vld [vmem:[%s302] sm:$0xff]
        %v345 = vld [vmem:[%s302 + $0x8] sm:$0xff]
        %v346 = vld [vmem:[%s302 + $0x10] sm:$0xff]
        %v347 = vld [vmem:[%s302 + $0x18] sm:$0xff]
        %348 = vst [vmem:[#allocation2 + $0x8] sm:$0xff] %v344
        %349 = vst [vmem:[#allocation2 + $0x10] sm:$0xff] %v345
        %350 = vst [vmem:[#allocation2 + $0x18] sm:$0xff] %v346
        %351 = vst [vmem:[#allocation2 + $0x20] sm:$0xff] %v347
        %v352 = vld [vmem:[#allocation2] sm:$0xff]
        %v353 = vld [vmem:[#allocation2 + $0x8] sm:$0xff]
        %v354 = vld [vmem:[#allocation2 + $0x10] sm:$0xff]
        %v355 = vld [vmem:[#allocation2 + $0x18] sm:$0xff]
        %v356 = vld [vmem:[#allocation2 + $0x20] sm:$0xff]
        %362 = vrot.lane.b32.xlu0 %v352, 72
        %v363 = vpop.permute.xlu0 %362
        %364 = vrot.lane.b32.xlu0 %v353, 72
        %v365 = vpop.permute.xlu0 %364
        %366 = vrot.lane.b32.xlu0 %v354, 72
        %v367 = vpop.permute.xlu0 %366
        %368 = vrot.lane.b32.xlu0 %v355, 72
        %v369 = vpop.permute.xlu0 %368
        %370 = vrot.lane.b32.xlu0 %v356, 72
        %v371 = vpop.permute.xlu0 %370
        %vm372 = vcmask 588800
        %v373 = vsel %vm372, %v363, %v365
        %v374 = vsel %vm372, %v365, %v367
        %v375 = vsel %vm372, %v367, %v369
        %v376 = vsel %vm372, %v369, %v371
        %381 = vrot.lane.b32.xlu0 %v373, 1
        %v382 = vpop.permute.xlu0 %381
        %383 = vrot.lane.b32.xlu0 %v374, 1
        %v384 = vpop.permute.xlu0 %383
        %385 = vrot.lane.b32.xlu0 %v375, 1
        %v386 = vpop.permute.xlu0 %385
        %387 = vrot.lane.b32.xlu0 %v376, 1
        %v388 = vpop.permute.xlu0 %387
        %v389 = vlaneseq
        %v390 = vand.u32 %v389, 127
        %vm391 = vcmp.lt.s32.totalorder %v390, 1
        %v392 = vsel %vm391, %v386, %v388
        %v393 = vsel %vm391, %v384, %v386
        %v394 = vsel %vm391, %v382, %v384
        %v395 = vsel %vm391, %v388, %v382
        %v396 = vld [vmem:[#allocation7] ss:$8 sm:$0xf]
        %v398 = vperm.slane %v396, 0
        %v399 = vperm.slane %v396, 1
        %v400 = vperm.slane %v396, 2
        %v401 = vperm.slane %v396, 3
        %v406 = vmul.f32 %v395, %v398
        %v407 = vmul.f32 %v394, %v399
        %v408 = vmul.f32 %v393, %v400
        %v409 = vmul.f32 %v392, %v401
        %v410 = vpack.c.bf16 %v407, %v406
        %v411 = vpack.c.bf16 %v409, %v408
        %412 = vst [vmem:[#allocation3] sm:$0xff] %v410
        %413 = vst [vmem:[#allocation3 + $0x8] sm:$0xff] %v411
        %s414 = scalar_lea.vmem [#allocation7], 1
        %v415 = vld [vmem:[%s414] ss:$8 sm:$0xf]
        %v417 = vperm.slane %v415, 0
        %v418 = vperm.slane %v415, 1
        %v419 = vperm.slane %v415, 2
        %v420 = vperm.slane %v415, 3
        %421 = vrot.lane.b32.xlu0 %v417, 56
        %v422 = vpop.permute.xlu0 %421
        %423 = vrot.lane.b32.xlu0 %v418, 56
        %v424 = vpop.permute.xlu0 %423
        %425 = vrot.lane.b32.xlu0 %v419, 56
        %v426 = vpop.permute.xlu0 %425
        %427 = vrot.lane.b32.xlu0 %v420, 56
        %v428 = vpop.permute.xlu0 %427
        %vm429 = vcmask 457728
        %v430 = vsel %vm429, %v422, %v424
        %v431 = vsel %vm429, %v424, %v426
        %v432 = vsel %vm429, %v426, %v428
        %v438 = vmul.f32 %v352, %v422
        %v439 = vmul.f32 %v353, %v430
        %v440 = vmul.f32 %v354, %v431
        %v441 = vmul.f32 %v355, %v432
        %v442 = vmul.f32 %v356, %v428
        %v443 = vpack.c.bf16 %v439, %v438
        %v444 = vpack.c.bf16 %v441, %v440
        %v445 = vpack.c.bf16 %v442, %v442
        %449 = vrot.lane.b32.xlu0 %v443, 72
        %v450 = vpop.permute.xlu0 %449
        %451 = vrot.lane.b32.xlu0 %v444, 72
        %v452 = vpop.permute.xlu0 %451
        %453 = vrot.lane.b32.xlu0 %v445, 72
        %v454 = vpop.permute.xlu0 %453
        %v455 = vrot.slane %v450, 4
        %v456 = vrot.slane %v452, 4
        %v457 = vrot.slane %v454, 4
        %vm458 = vcmask 1043456
        %v459 = vsel %vm458, %v455, %v456
        %vm460 = vcmask 588800
        %v461 = vsel %vm460, %v450, %v459
        %v462 = vsel %vm458, %v456, %v457
        %v463 = vsel %vm460, %v452, %v462
        %466 = vst [vmem:[#allocation3 + $0x10] sm:$0xff] %v461
        %467 = vst [vmem:[#allocation3 + $0x18] sm:$0xff] %v463
        %468 = vrot.lane.b32.xlu0 %v373, 127
        %v469 = vpop.permute.xlu0 %468
        %470 = vrot.lane.b32.xlu0 %v374, 127
        %v471 = vpop.permute.xlu0 %470
        %472 = vrot.lane.b32.xlu0 %v375, 127
        %v473 = vpop.permute.xlu0 %472
        %474 = vrot.lane.b32.xlu0 %v376, 127
        %v475 = vpop.permute.xlu0 %474
        %vm476 = vcmp.lt.s32.totalorder %v390, 127
        %v477 = vsel %vm476, %v473, %v475
        %v478 = vsel %vm476, %v471, %v473
        %v479 = vsel %vm476, %v469, %v471
        %v480 = vsel %vm476, %v475, %v469
        %s481 = scalar_lea.vmem [#allocation7], 2
        %v482 = vld [vmem:[%s481] ss:$8 sm:$0xf]
        %v484 = vperm.slane %v482, 0
        %v485 = vperm.slane %v482, 1
        %v486 = vperm.slane %v482, 2
        %v487 = vperm.slane %v482, 3
        %v492 = vmul.f32 %v479, %v484
        %v493 = vmul.f32 %v478, %v485
        %v494 = vmul.f32 %v477, %v486
        %v495 = vmul.f32 %v480, %v487
        %v496 = vpack.c.bf16 %v493, %v492
        %v497 = vpack.c.bf16 %v495, %v494
        %498 = vst [vmem:[#allocation3 + $0x20] sm:$0xff] %v496
        %499 = vst [vmem:[#allocation3 + $0x28] sm:$0xff] %v497
        %v500 = vld [vmem:[#allocation2] sm:$0xff]
        %v501 = vld [vmem:[#allocation2 + $0x8] sm:$0xff]
        %v502 = vld [vmem:[#allocation2 + $0x10] sm:$0xff]
        %v503 = vld [vmem:[#allocation2 + $0x18] sm:$0xff]
        %v504 = vld [vmem:[#allocation2 + $0x20] sm:$0xff]
        %510 = vrot.lane.b32.xlu0 %v500, 64
        %v511 = vpop.permute.xlu0 %510
        %512 = vrot.lane.b32.xlu0 %v501, 64
        %v513 = vpop.permute.xlu0 %512
        %514 = vrot.lane.b32.xlu0 %v502, 64
        %v515 = vpop.permute.xlu0 %514
        %516 = vrot.lane.b32.xlu0 %v503, 64
        %v517 = vpop.permute.xlu0 %516
        %518 = vrot.lane.b32.xlu0 %v504, 64
        %v519 = vpop.permute.xlu0 %518
        %vm520 = vcmask 523264
        %v521 = vsel %vm520, %v511, %v513
        %v522 = vsel %vm520, %v513, %v515
        %v523 = vsel %vm520, %v515, %v517
        %v524 = vsel %vm520, %v517, %v519
        %529 = vrot.lane.b32.xlu0 %v521, 1
        %v530 = vpop.permute.xlu0 %529
        %531 = vrot.lane.b32.xlu0 %v522, 1
        %v532 = vpop.permute.xlu0 %531
        %533 = vrot.lane.b32.xlu0 %v523, 1
        %v534 = vpop.permute.xlu0 %533
        %535 = vrot.lane.b32.xlu0 %v524, 1
        %v536 = vpop.permute.xlu0 %535
        %v537 = vsel %vm391, %v534, %v536
        %v538 = vsel %vm391, %v532, %v534
        %v539 = vsel %vm391, %v530, %v532
        %v540 = vsel %vm391, %v536, %v530
        %s541 = scalar_lea.vmem [#allocation7], 3
        %v542 = vld [vmem:[%s541] ss:$8 sm:$0xf]
        %v544 = vperm.slane %v542, 0
        %v545 = vperm.slane %v542, 1
        %v546 = vperm.slane %v542, 2
        %v547 = vperm.slane %v542, 3
        %v552 = vmul.f32 %v540, %v544
        %v553 = vmul.f32 %v539, %v545
        %v554 = vmul.f32 %v538, %v546
        %v555 = vmul.f32 %v537, %v547
        %v556 = vpack.c.bf16 %v553, %v552
        %v557 = vpack.c.bf16 %v555, %v554
        %558 = vst [vmem:[#allocation3 + $0x30] sm:$0xff] %v556
        %559 = vst [vmem:[#allocation3 + $0x38] sm:$0xff] %v557
        %s560 = scalar_lea.vmem [#allocation7], 4
        %v561 = vld [vmem:[%s560] ss:$8 sm:$0xf]
        %v563 = vperm.slane %v561, 0
        %v564 = vperm.slane %v561, 1
        %v565 = vperm.slane %v561, 2
        %v566 = vperm.slane %v561, 3
        %567 = vrot.lane.b32.xlu0 %v563, 64
        %v568 = vpop.permute.xlu0 %567
        %569 = vrot.lane.b32.xlu0 %v564, 64
        %v570 = vpop.permute.xlu0 %569
        %571 = vrot.lane.b32.xlu0 %v565, 64
        %v572 = vpop.permute.xlu0 %571
        %573 = vrot.lane.b32.xlu0 %v566, 64
        %v574 = vpop.permute.xlu0 %573
        %v575 = vsel %vm520, %v568, %v570
        %v576 = vsel %vm520, %v570, %v572
        %v577 = vsel %vm520, %v572, %v574
        %v583 = vmul.f32 %v500, %v568
        %v584 = vmul.f32 %v501, %v575
        %v585 = vmul.f32 %v502, %v576
        %v586 = vmul.f32 %v503, %v577
        %v587 = vmul.f32 %v504, %v574
        %v588 = vpack.c.bf16 %v584, %v583
        %v589 = vpack.c.bf16 %v586, %v585
        %v590 = vpack.c.bf16 %v587, %v587
        %594 = vrot.lane.b32.xlu0 %v588, 64
        %v595 = vpop.permute.xlu0 %594
        %596 = vrot.lane.b32.xlu0 %v589, 64
        %v597 = vpop.permute.xlu0 %596
        %598 = vrot.lane.b32.xlu0 %v590, 64
        %v599 = vpop.permute.xlu0 %598
        %v600 = vrot.slane %v595, 4
        %v601 = vrot.slane %v597, 4
        %v602 = vrot.slane %v599, 4
        %v603 = vsel %vm458, %v600, %v601
        %vm604 = vcmask 523264
        %v605 = vsel %vm604, %v595, %v603
        %v606 = vsel %vm458, %v601, %v602
        %v607 = vsel %vm604, %v597, %v606
        %610 = vst [vmem:[#allocation3 + $0x40] sm:$0xff] %v605
        %611 = vst [vmem:[#allocation3 + $0x48] sm:$0xff] %v607
        %612 = vrot.lane.b32.xlu0 %v521, 127
        %v613 = vpop.permute.xlu0 %612
        %614 = vrot.lane.b32.xlu0 %v522, 127
        %v615 = vpop.permute.xlu0 %614
        %616 = vrot.lane.b32.xlu0 %v523, 127
        %v617 = vpop.permute.xlu0 %616
        %618 = vrot.lane.b32.xlu0 %v524, 127
        %v619 = vpop.permute.xlu0 %618
        %v620 = vsel %vm476, %v617, %v619
        %v621 = vsel %vm476, %v615, %v617
        %v622 = vsel %vm476, %v613, %v615
        %v623 = vsel %vm476, %v619, %v613
        %s624 = scalar_lea.vmem [#allocation7], 5
        %v625 = vld [vmem:[%s624] ss:$8 sm:$0xf]
        %v627 = vperm.slane %v625, 0
        %v628 = vperm.slane %v625, 1
        %v629 = vperm.slane %v625, 2
        %v630 = vperm.slane %v625, 3
        %v635 = vmul.f32 %v622, %v627
        %v636 = vmul.f32 %v621, %v628
        %v637 = vmul.f32 %v620, %v629
        %v638 = vmul.f32 %v623, %v630
        %v639 = vpack.c.bf16 %v636, %v635
        %v640 = vpack.c.bf16 %v638, %v637
        %641 = vst [vmem:[#allocation3 + $0x50] sm:$0xff] %v639
        %642 = vst [vmem:[#allocation3 + $0x58] sm:$0xff] %v640
        %v643 = vld [vmem:[#allocation2] sm:$0xff]
        %v644 = vld [vmem:[#allocation2 + $0x8] sm:$0xff]
        %v645 = vld [vmem:[#allocation2 + $0x10] sm:$0xff]
        %v646 = vld [vmem:[#allocation2 + $0x18] sm:$0xff]
        %v647 = vld [vmem:[#allocation2 + $0x20] sm:$0xff]
        %653 = vrot.lane.b32.xlu0 %v643, 56
        %v654 = vpop.permute.xlu0 %653
        %655 = vrot.lane.b32.xlu0 %v644, 56
        %v656 = vpop.permute.xlu0 %655
        %657 = vrot.lane.b32.xlu0 %v645, 56
        %v658 = vpop.permute.xlu0 %657
        %659 = vrot.lane.b32.xlu0 %v646, 56
        %v660 = vpop.permute.xlu0 %659
        %661 = vrot.lane.b32.xlu0 %v647, 56
        %v662 = vpop.permute.xlu0 %661
        %v663 = vsel %vm429, %v654, %v656
        %v664 = vsel %vm429, %v656, %v658
        %v665 = vsel %vm429, %v658, %v660
        %v666 = vsel %vm429, %v660, %v662
        %671 = vrot.lane.b32.xlu0 %v663, 1
        %v672 = vpop.permute.xlu0 %671
        %673 = vrot.lane.b32.xlu0 %v664, 1
        %v674 = vpop.permute.xlu0 %673
        %675 = vrot.lane.b32.xlu0 %v665, 1
        %v676 = vpop.permute.xlu0 %675
        %677 = vrot.lane.b32.xlu0 %v666, 1
        %v678 = vpop.permute.xlu0 %677
        %v679 = vsel %vm391, %v676, %v678
        %v680 = vsel %vm391, %v674, %v676
        %v681 = vsel %vm391, %v672, %v674
        %v682 = vsel %vm391, %v678, %v672
        %s683 = scalar_lea.vmem [#allocation7], 6
        %v684 = vld [vmem:[%s683] ss:$8 sm:$0xf]
        %v686 = vperm.slane %v684, 0
        %v687 = vperm.slane %v684, 1
        %v688 = vperm.slane %v684, 2
        %v689 = vperm.slane %v684, 3
        %v694 = vmul.f32 %v682, %v686
        %v695 = vmul.f32 %v681, %v687
        %v696 = vmul.f32 %v680, %v688
        %v697 = vmul.f32 %v679, %v689
        %v698 = vpack.c.bf16 %v695, %v694
        %v699 = vpack.c.bf16 %v697, %v696
        %700 = vst [vmem:[#allocation3 + $0x60] sm:$0xff] %v698
        %701 = vst [vmem:[#allocation3 + $0x68] sm:$0xff] %v699
        %s702 = scalar_lea.vmem [#allocation7], 7
        %v703 = vld [vmem:[%s702] ss:$8 sm:$0xf]
        %v705 = vperm.slane %v703, 0
        %v706 = vperm.slane %v703, 1
        %v707 = vperm.slane %v703, 2
        %v708 = vperm.slane %v703, 3
        %709 = vrot.lane.b32.xlu0 %v705, 72
        %v710 = vpop.permute.xlu0 %709
        %711 = vrot.lane.b32.xlu0 %v706, 72
        %v712 = vpop.permute.xlu0 %711
        %713 = vrot.lane.b32.xlu0 %v707, 72
        %v714 = vpop.permute.xlu0 %713
        %715 = vrot.lane.b32.xlu0 %v708, 72
        %v716 = vpop.permute.xlu0 %715
        %v717 = vsel %vm372, %v710, %v712
        %v718 = vsel %vm372, %v712, %v714
        %v719 = vsel %vm372, %v714, %v716
        %v725 = vmul.f32 %v643, %v710
        %v726 = vmul.f32 %v644, %v717
        %v727 = vmul.f32 %v645, %v718
        %v728 = vmul.f32 %v646, %v719
        %v729 = vmul.f32 %v647, %v716
        %v730 = vpack.c.bf16 %v726, %v725
        %v731 = vpack.c.bf16 %v728, %v727
        %v732 = vpack.c.bf16 %v729, %v729
        %736 = vrot.lane.b32.xlu0 %v730, 56
        %v737 = vpop.permute.xlu0 %736
        %738 = vrot.lane.b32.xlu0 %v731, 56
        %v739 = vpop.permute.xlu0 %738
        %740 = vrot.lane.b32.xlu0 %v732, 56
        %v741 = vpop.permute.xlu0 %740
        %v742 = vrot.slane %v737, 4
        %v743 = vrot.slane %v739, 4
        %v744 = vrot.slane %v741, 4
        %v745 = vsel %vm458, %v742, %v743
        %vm746 = vcmask 457728
        %v747 = vsel %vm746, %v737, %v745
        %v748 = vsel %vm458, %v743, %v744
        %v749 = vsel %vm746, %v739, %v748
        %752 = vst [vmem:[#allocation3 + $0x70] sm:$0xff] %v747
        %753 = vst [vmem:[#allocation3 + $0x78] sm:$0xff] %v749
        %754 = vrot.lane.b32.xlu0 %v663, 127
        %v755 = vpop.permute.xlu0 %754
        %756 = vrot.lane.b32.xlu0 %v664, 127
        %v757 = vpop.permute.xlu0 %756
        %758 = vrot.lane.b32.xlu0 %v665, 127
        %v759 = vpop.permute.xlu0 %758
        %760 = vrot.lane.b32.xlu0 %v666, 127
        %v761 = vpop.permute.xlu0 %760
        %v762 = vsel %vm476, %v759, %v761
        %v763 = vsel %vm476, %v757, %v759
        %v764 = vsel %vm476, %v755, %v757
        %v765 = vsel %vm476, %v761, %v755
        %s766 = scalar_lea.vmem [#allocation7], 32
        %v767 = vld [vmem:[%s766] ss:$8 sm:$0xf]
        %v769 = vperm.slane %v767, 0
        %v770 = vperm.slane %v767, 1
        %v771 = vperm.slane %v767, 2
        %v772 = vperm.slane %v767, 3
        %v777 = vmul.f32 %v764, %v769
        %v778 = vmul.f32 %v763, %v770
        %v779 = vmul.f32 %v762, %v771
        %v780 = vmul.f32 %v765, %v772
        %v781 = vpack.c.bf16 %v778, %v777
        %v782 = vpack.c.bf16 %v780, %v779
        %783 = vst [vmem:[#allocation3 + $0x80] sm:$0xff] %v781
        %784 = vst [vmem:[#allocation3 + $0x88] sm:$0xff] %v782
        %v785 = vld [vmem:[#allocation2] sm:$0xff]
        %v786 = vld [vmem:[#allocation2 + $0x8] sm:$0xff]
        %v787 = vld [vmem:[#allocation2 + $0x10] sm:$0xff]
        %v788 = vld [vmem:[#allocation2 + $0x18] sm:$0xff]
        %v789 = vld [vmem:[#allocation2 + $0x20] sm:$0xff]
        %795 = vrot.lane.b32.xlu0 %v785, 8
        %v796 = vpop.permute.xlu0 %795
        %797 = vrot.lane.b32.xlu0 %v786, 8
        %v798 = vpop.permute.xlu0 %797
        %799 = vrot.lane.b32.xlu0 %v787, 8
        %v800 = vpop.permute.xlu0 %799
        %801 = vrot.lane.b32.xlu0 %v788, 8
        %v802 = vpop.permute.xlu0 %801
        %803 = vrot.lane.b32.xlu0 %v789, 8
        %v804 = vpop.permute.xlu0 %803
        %vm805 = vcmask 64512
        %v806 = vsel %vm805, %v796, %v798
        %v807 = vsel %vm805, %v798, %v800
        %v808 = vsel %vm805, %v800, %v802
        %v809 = vsel %vm805, %v802, %v804
        %814 = vrot.lane.b32.xlu0 %v806, 1
        %v815 = vpop.permute.xlu0 %814
        %816 = vrot.lane.b32.xlu0 %v807, 1
        %v817 = vpop.permute.xlu0 %816
        %818 = vrot.lane.b32.xlu0 %v808, 1
        %v819 = vpop.permute.xlu0 %818
        %820 = vrot.lane.b32.xlu0 %v809, 1
        %v821 = vpop.permute.xlu0 %820
        %v822 = vsel %vm391, %v819, %v821
        %v823 = vsel %vm391, %v817, %v819
        %v824 = vsel %vm391, %v815, %v817
        %v825 = vsel %vm391, %v821, %v815
        %s826 = scalar_lea.vmem [#allocation7], 33
        %v827 = vld [vmem:[%s826] ss:$8 sm:$0xf]
        %v829 = vperm.slane %v827, 0
        %v830 = vperm.slane %v827, 1
        %v831 = vperm.slane %v827, 2
        %v832 = vperm.slane %v827, 3
        %v837 = vmul.f32 %v825, %v829
        %v838 = vmul.f32 %v824, %v830
        %v839 = vmul.f32 %v823, %v831
        %v840 = vmul.f32 %v822, %v832
        %v841 = vpack.c.bf16 %v838, %v837
        %v842 = vpack.c.bf16 %v840, %v839
        %843 = vst [vmem:[#allocation3 + $0x90] sm:$0xff] %v841
        %844 = vst [vmem:[#allocation3 + $0x98] sm:$0xff] %v842
        %s845 = scalar_lea.vmem [#allocation7], 34
        %v846 = vld [vmem:[%s845] ss:$8 sm:$0xf]
        %v848 = vperm.slane %v846, 0
        %v849 = vperm.slane %v846, 1
        %v850 = vperm.slane %v846, 2
        %v851 = vperm.slane %v846, 3
        %852 = vrot.lane.b32.xlu0 %v848, 120
        %v853 = vpop.permute.xlu0 %852
        %854 = vrot.lane.b32.xlu0 %v849, 120
        %v855 = vpop.permute.xlu0 %854
        %856 = vrot.lane.b32.xlu0 %v850, 120
        %v857 = vpop.permute.xlu0 %856
        %858 = vrot.lane.b32.xlu0 %v851, 120
        %v859 = vpop.permute.xlu0 %858
        %vm860 = vcmask 982016
        %v861 = vsel %vm860, %v853, %v855
        %v862 = vsel %vm860, %v855, %v857
        %v863 = vsel %vm860, %v857, %v859
        %v869 = vmul.f32 %v785, %v853
        %v870 = vmul.f32 %v786, %v861
        %v871 = vmul.f32 %v787, %v862
        %v872 = vmul.f32 %v788, %v863
        %v873 = vmul.f32 %v789, %v859
        %v874 = vpack.c.bf16 %v870, %v869
        %v875 = vpack.c.bf16 %v872, %v871
        %v876 = vpack.c.bf16 %v873, %v873
        %880 = vrot.lane.b32.xlu0 %v874, 8
        %v881 = vpop.permute.xlu0 %880
        %882 = vrot.lane.b32.xlu0 %v875, 8
        %v883 = vpop.permute.xlu0 %882
        %884 = vrot.lane.b32.xlu0 %v876, 8
        %v885 = vpop.permute.xlu0 %884
        %v886 = vrot.slane %v881, 4
        %v887 = vrot.slane %v883, 4
        %v888 = vrot.slane %v885, 4
        %v889 = vsel %vm458, %v886, %v887
        %vm890 = vcmask 64512
        %v891 = vsel %vm890, %v881, %v889
        %v892 = vsel %vm458, %v887, %v888
        %v893 = vsel %vm890, %v883, %v892
        %896 = vst [vmem:[#allocation3 + $0xa0] sm:$0xff] %v891
        %897 = vst [vmem:[#allocation3 + $0xa8] sm:$0xff] %v893
        %898 = vrot.lane.b32.xlu0 %v806, 127
        %v899 = vpop.permute.xlu0 %898
        %900 = vrot.lane.b32.xlu0 %v807, 127
        %v901 = vpop.permute.xlu0 %900
        %902 = vrot.lane.b32.xlu0 %v808, 127
        %v903 = vpop.permute.xlu0 %902
        %904 = vrot.lane.b32.xlu0 %v809, 127
        %v905 = vpop.permute.xlu0 %904
        %v906 = vsel %vm476, %v903, %v905
        %v907 = vsel %vm476, %v901, %v903
        %v908 = vsel %vm476, %v899, %v901
        %v909 = vsel %vm476, %v905, %v899
        %s910 = scalar_lea.vmem [#allocation7], 35
        %v911 = vld [vmem:[%s910] ss:$8 sm:$0xf]
        %v913 = vperm.slane %v911, 0
        %v914 = vperm.slane %v911, 1
        %v915 = vperm.slane %v911, 2
        %v916 = vperm.slane %v911, 3
        %v921 = vmul.f32 %v908, %v913
        %v922 = vmul.f32 %v907, %v914
        %v923 = vmul.f32 %v906, %v915
        %v924 = vmul.f32 %v909, %v916
        %v925 = vpack.c.bf16 %v922, %v921
        %v926 = vpack.c.bf16 %v924, %v923
        %927 = vst [vmem:[#allocation3 + $0xb0] sm:$0xff] %v925
        %928 = vst [vmem:[#allocation3 + $0xb8] sm:$0xff] %v926
        %v929 = vld [vmem:[#allocation2 + $0x8] sm:$0xff]
        %v930 = vld [vmem:[#allocation2 + $0x10] sm:$0xff]
        %v931 = vld [vmem:[#allocation2 + $0x18] sm:$0xff]
        %v932 = vld [vmem:[#allocation2 + $0x20] sm:$0xff]
        %933 = vrot.lane.b32.xlu0 %v929, 1
        %v934 = vpop.permute.xlu0 %933
        %935 = vrot.lane.b32.xlu0 %v930, 1
        %v936 = vpop.permute.xlu0 %935
        %937 = vrot.lane.b32.xlu0 %v931, 1
        %v938 = vpop.permute.xlu0 %937
        %939 = vrot.lane.b32.xlu0 %v932, 1
        %v940 = vpop.permute.xlu0 %939
        %v941 = vsel %vm391, %v938, %v940
        %v942 = vsel %vm391, %v936, %v938
        %v943 = vsel %vm391, %v934, %v936
        %v944 = vsel %vm391, %v940, %v934
        %s945 = scalar_lea.vmem [#allocation7], 36
        %v946 = vld [vmem:[%s945] ss:$8 sm:$0xf]
        %v948 = vperm.slane %v946, 0
        %v949 = vperm.slane %v946, 1
        %v950 = vperm.slane %v946, 2
        %v951 = vperm.slane %v946, 3
        %v956 = vmul.f32 %v944, %v948
        %v957 = vmul.f32 %v943, %v949
        %v958 = vmul.f32 %v942, %v950
        %v959 = vmul.f32 %v941, %v951
        %v960 = vpack.c.bf16 %v957, %v956
        %v961 = vpack.c.bf16 %v959, %v958
        %962 = vst [vmem:[#allocation3 + $0xc0] sm:$0xff] %v960
        %963 = vst [vmem:[#allocation3 + $0xc8] sm:$0xff] %v961
        %s964 = scalar_lea.vmem [#allocation7], 37
        %v965 = vld [vmem:[%s964] ss:$8 sm:$0xf]
        %v967 = vperm.slane %v965, 0
        %v968 = vperm.slane %v965, 1
        %v969 = vperm.slane %v965, 2
        %v970 = vperm.slane %v965, 3
        %v975 = vmul.f32 %v929, %v967
        %v976 = vmul.f32 %v930, %v968
        %v977 = vmul.f32 %v931, %v969
        %v978 = vmul.f32 %v932, %v970
        %v979 = vpack.c.bf16 %v976, %v975
        %v980 = vpack.c.bf16 %v978, %v977
        %981 = vst [vmem:[#allocation3 + $0xd0] sm:$0xff] %v979
        %982 = vst [vmem:[#allocation3 + $0xd8] sm:$0xff] %v980
        %983 = vrot.lane.b32.xlu0 %v929, 127
        %v984 = vpop.permute.xlu0 %983
        %985 = vrot.lane.b32.xlu0 %v930, 127
        %v986 = vpop.permute.xlu0 %985
        %987 = vrot.lane.b32.xlu0 %v931, 127
        %v988 = vpop.permute.xlu0 %987
        %989 = vrot.lane.b32.xlu0 %v932, 127
        %v990 = vpop.permute.xlu0 %989
        %v991 = vsel %vm476, %v988, %v990
        %v992 = vsel %vm476, %v986, %v988
        %v993 = vsel %vm476, %v984, %v986
        %v994 = vsel %vm476, %v990, %v984
        %s995 = scalar_lea.vmem [#allocation7], 38
        %v996 = vld [vmem:[%s995] ss:$8 sm:$0xf]
        %v998 = vperm.slane %v996, 0
        %v999 = vperm.slane %v996, 1
        %v1000 = vperm.slane %v996, 2
        %v1001 = vperm.slane %v996, 3
        %v1006 = vmul.f32 %v993, %v998
        %v1007 = vmul.f32 %v992, %v999
        %v1008 = vmul.f32 %v991, %v1000
        %v1009 = vmul.f32 %v994, %v1001
        %v1010 = vpack.c.bf16 %v1007, %v1006
        %v1011 = vpack.c.bf16 %v1009, %v1008
        %1012 = vst [vmem:[#allocation3 + $0xe0] sm:$0xff] %v1010
        %1013 = vst [vmem:[#allocation3 + $0xe8] sm:$0xff] %v1011
        %v1014 = vld [vmem:[#allocation2 + $0x8] sm:$0xff]
        %v1015 = vld [vmem:[#allocation2 + $0x10] sm:$0xff]
        %v1016 = vld [vmem:[#allocation2 + $0x18] sm:$0xff]
        %v1017 = vld [vmem:[#allocation2 + $0x20] sm:$0xff]
        %v1018 = vld [vmem:[#allocation2 + $0x28] sm:$0xff]
        %1024 = vrot.lane.b32.xlu0 %v1014, 120
        %v1025 = vpop.permute.xlu0 %1024
        %1026 = vrot.lane.b32.xlu0 %v1015, 120
        %v1027 = vpop.permute.xlu0 %1026
        %1028 = vrot.lane.b32.xlu0 %v1016, 120
        %v1029 = vpop.permute.xlu0 %1028
        %1030 = vrot.lane.b32.xlu0 %v1017, 120
        %v1031 = vpop.permute.xlu0 %1030
        %1032 = vrot.lane.b32.xlu0 %v1018, 120
        %v1033 = vpop.permute.xlu0 %1032
        %v1034 = vsel %vm860, %v1025, %v1027
        %v1035 = vsel %vm860, %v1027, %v1029
        %v1036 = vsel %vm860, %v1029, %v1031
        %v1037 = vsel %vm860, %v1031, %v1033
        %1042 = vrot.lane.b32.xlu0 %v1034, 1
        %v1043 = vpop.permute.xlu0 %1042
        %1044 = vrot.lane.b32.xlu0 %v1035, 1
        %v1045 = vpop.permute.xlu0 %1044
        %1046 = vrot.lane.b32.xlu0 %v1036, 1
        %v1047 = vpop.permute.xlu0 %1046
        %1048 = vrot.lane.b32.xlu0 %v1037, 1
        %v1049 = vpop.permute.xlu0 %1048
        %v1050 = vsel %vm391, %v1047, %v1049
        %v1051 = vsel %vm391, %v1045, %v1047
        %v1052 = vsel %vm391, %v1043, %v1045
        %v1053 = vsel %vm391, %v1049, %v1043
        %s1054 = scalar_lea.vmem [#allocation7], 39
        %v1055 = vld [vmem:[%s1054] ss:$8 sm:$0xf]
        %v1057 = vperm.slane %v1055, 0
        %v1058 = vperm.slane %v1055, 1
        %v1059 = vperm.slane %v1055, 2
        %v1060 = vperm.slane %v1055, 3
        %v1065 = vmul.f32 %v1053, %v1057
        %v1066 = vmul.f32 %v1052, %v1058
        %v1067 = vmul.f32 %v1051, %v1059
        %v1068 = vmul.f32 %v1050, %v1060
        %v1069 = vpack.c.bf16 %v1066, %v1065
        %v1070 = vpack.c.bf16 %v1068, %v1067
        %1071 = vst [vmem:[#allocation3 + $0xf0] sm:$0xff] %v1069
        %1072 = vst [vmem:[#allocation3 + $0xf8] sm:$0xff] %v1070
        %s1073 = scalar_lea.vmem [#allocation7], 64
        %v1074 = vld [vmem:[%s1073] ss:$8 sm:$0xf]
        %v1076 = vperm.slane %v1074, 0
        %v1077 = vperm.slane %v1074, 1
        %v1078 = vperm.slane %v1074, 2
        %v1079 = vperm.slane %v1074, 3
        %1080 = vrot.lane.b32.xlu0 %v1076, 8
        %v1081 = vpop.permute.xlu0 %1080
        %1082 = vrot.lane.b32.xlu0 %v1077, 8
        %v1083 = vpop.permute.xlu0 %1082
        %1084 = vrot.lane.b32.xlu0 %v1078, 8
        %v1085 = vpop.permute.xlu0 %1084
        %1086 = vrot.lane.b32.xlu0 %v1079, 8
        %v1087 = vpop.permute.xlu0 %1086
        %v1088 = vsel %vm805, %v1081, %v1083
        %v1089 = vsel %vm805, %v1083, %v1085
        %v1090 = vsel %vm805, %v1085, %v1087
        %v1096 = vmul.f32 %v1014, %v1081
        %v1097 = vmul.f32 %v1015, %v1088
        %v1098 = vmul.f32 %v1016, %v1089
        %v1099 = vmul.f32 %v1017, %v1090
        %v1100 = vmul.f32 %v1018, %v1087
        %v1101 = vpack.c.bf16 %v1097, %v1096
        %v1102 = vpack.c.bf16 %v1099, %v1098
        %v1103 = vpack.c.bf16 %v1100, %v1100
        %1107 = vrot.lane.b32.xlu0 %v1101, 120
        %v1108 = vpop.permute.xlu0 %1107
        %1109 = vrot.lane.b32.xlu0 %v1102, 120
        %v1110 = vpop.permute.xlu0 %1109
        %1111 = vrot.lane.b32.xlu0 %v1103, 120
        %v1112 = vpop.permute.xlu0 %1111
        %v1113 = vrot.slane %v1108, 4
        %v1114 = vrot.slane %v1110, 4
        %v1115 = vrot.slane %v1112, 4
        %v1116 = vsel %vm458, %v1113, %v1114
        %vm1117 = vcmask 982016
        %v1118 = vsel %vm1117, %v1108, %v1116
        %v1119 = vsel %vm458, %v1114, %v1115
        %v1120 = vsel %vm1117, %v1110, %v1119
        %1123 = vst [vmem:[#allocation3 + $0x100] sm:$0xff] %v1118
        %1124 = vst [vmem:[#allocation3 + $0x108] sm:$0xff] %v1120
        %1125 = vrot.lane.b32.xlu0 %v1034, 127
        %v1126 = vpop.permute.xlu0 %1125
        %1127 = vrot.lane.b32.xlu0 %v1035, 127
        %v1128 = vpop.permute.xlu0 %1127
        %1129 = vrot.lane.b32.xlu0 %v1036, 127
        %v1130 = vpop.permute.xlu0 %1129
        %1131 = vrot.lane.b32.xlu0 %v1037, 127
        %v1132 = vpop.permute.xlu0 %1131
        %v1133 = vsel %vm476, %v1130, %v1132
        %v1134 = vsel %vm476, %v1128, %v1130
        %v1135 = vsel %vm476, %v1126, %v1128
        %v1136 = vsel %vm476, %v1132, %v1126
        %s1137 = scalar_lea.vmem [#allocation7], 65
        %v1138 = vld [vmem:[%s1137] ss:$8 sm:$0xf]
        %v1140 = vperm.slane %v1138, 0
        %v1141 = vperm.slane %v1138, 1
        %v1142 = vperm.slane %v1138, 2
        %v1143 = vperm.slane %v1138, 3
        %v1148 = vmul.f32 %v1135, %v1140
        %v1149 = vmul.f32 %v1134, %v1141
        %v1150 = vmul.f32 %v1133, %v1142
        %v1151 = vmul.f32 %v1136, %v1143
        %v1152 = vpack.c.bf16 %v1149, %v1148
        %v1153 = vpack.c.bf16 %v1151, %v1150
        %1154 = vst [vmem:[#allocation3 + $0x110] sm:$0xff] %v1152
        %1155 = vst [vmem:[#allocation3 + $0x118] sm:$0xff] %v1153
        %v1156 = vld [vmem:[#allocation2 + $0x8] sm:$0xff]
        %v1157 = vld [vmem:[#allocation2 + $0x10] sm:$0xff]
        %v1158 = vld [vmem:[#allocation2 + $0x18] sm:$0xff]
        %v1159 = vld [vmem:[#allocation2 + $0x20] sm:$0xff]
        %v1160 = vld [vmem:[#allocation2 + $0x28] sm:$0xff]
        %1166 = vrot.lane.b32.xlu0 %v1156, 72
        %v1167 = vpop.permute.xlu0 %1166
        %1168 = vrot.lane.b32.xlu0 %v1157, 72
        %v1169 = vpop.permute.xlu0 %1168
        %1170 = vrot.lane.b32.xlu0 %v1158, 72
        %v1171 = vpop.permute.xlu0 %1170
        %1172 = vrot.lane.b32.xlu0 %v1159, 72
        %v1173 = vpop.permute.xlu0 %1172
        %1174 = vrot.lane.b32.xlu0 %v1160, 72
        %v1175 = vpop.permute.xlu0 %1174
        %v1176 = vsel %vm372, %v1167, %v1169
        %v1177 = vsel %vm372, %v1169, %v1171
        %v1178 = vsel %vm372, %v1171, %v1173
        %v1179 = vsel %vm372, %v1173, %v1175
        %1184 = vrot.lane.b32.xlu0 %v1176, 1
        %v1185 = vpop.permute.xlu0 %1184
        %1186 = vrot.lane.b32.xlu0 %v1177, 1
        %v1187 = vpop.permute.xlu0 %1186
        %1188 = vrot.lane.b32.xlu0 %v1178, 1
        %v1189 = vpop.permute.xlu0 %1188
        %1190 = vrot.lane.b32.xlu0 %v1179, 1
        %v1191 = vpop.permute.xlu0 %1190
        %v1192 = vsel %vm391, %v1189, %v1191
        %v1193 = vsel %vm391, %v1187, %v1189
        %v1194 = vsel %vm391, %v1185, %v1187
        %v1195 = vsel %vm391, %v1191, %v1185
        %s1196 = scalar_lea.vmem [#allocation7], 66
        %v1197 = vld [vmem:[%s1196] ss:$8 sm:$0xf]
        %v1199 = vperm.slane %v1197, 0
        %v1200 = vperm.slane %v1197, 1
        %v1201 = vperm.slane %v1197, 2
        %v1202 = vperm.slane %v1197, 3
        %v1207 = vmul.f32 %v1195, %v1199
        %v1208 = vmul.f32 %v1194, %v1200
        %v1209 = vmul.f32 %v1193, %v1201
        %v1210 = vmul.f32 %v1192, %v1202
        %v1211 = vpack.c.bf16 %v1208, %v1207
        %v1212 = vpack.c.bf16 %v1210, %v1209
        %1213 = vst [vmem:[#allocation3 + $0x120] sm:$0xff] %v1211
        %1214 = vst [vmem:[#allocation3 + $0x128] sm:$0xff] %v1212
        %s1215 = scalar_lea.vmem [#allocation7], 67
        %v1216 = vld [vmem:[%s1215] ss:$8 sm:$0xf]
        %v1218 = vperm.slane %v1216, 0
        %v1219 = vperm.slane %v1216, 1
        %v1220 = vperm.slane %v1216, 2
        %v1221 = vperm.slane %v1216, 3
        %1222 = vrot.lane.b32.xlu0 %v1218, 56
        %v1223 = vpop.permute.xlu0 %1222
        %1224 = vrot.lane.b32.xlu0 %v1219, 56
        %v1225 = vpop.permute.xlu0 %1224
        %1226 = vrot.lane.b32.xlu0 %v1220, 56
        %v1227 = vpop.permute.xlu0 %1226
        %1228 = vrot.lane.b32.xlu0 %v1221, 56
        %v1229 = vpop.permute.xlu0 %1228
        %v1230 = vsel %vm429, %v1223, %v1225
        %v1231 = vsel %vm429, %v1225, %v1227
        %v1232 = vsel %vm429, %v1227, %v1229
        %v1238 = vmul.f32 %v1156, %v1223
        %v1239 = vmul.f32 %v1157, %v1230
        %v1240 = vmul.f32 %v1158, %v1231
        %v1241 = vmul.f32 %v1159, %v1232
        %v1242 = vmul.f32 %v1160, %v1229
        %v1243 = vpack.c.bf16 %v1239, %v1238
        %v1244 = vpack.c.bf16 %v1241, %v1240
        %v1245 = vpack.c.bf16 %v1242, %v1242
        %1249 = vrot.lane.b32.xlu0 %v1243, 72
        %v1250 = vpop.permute.xlu0 %1249
        %1251 = vrot.lane.b32.xlu0 %v1244, 72
        %v1252 = vpop.permute.xlu0 %1251
        %1253 = vrot.lane.b32.xlu0 %v1245, 72
        %v1254 = vpop.permute.xlu0 %1253
        %v1255 = vrot.slane %v1250, 4
        %v1256 = vrot.slane %v1252, 4
        %v1257 = vrot.slane %v1254, 4
        %v1258 = vsel %vm458, %v1255, %v1256
        %v1259 = vsel %vm460, %v1250, %v1258
        %v1260 = vsel %vm458, %v1256, %v1257
        %v1261 = vsel %vm460, %v1252, %v1260
        %1264 = vst [vmem:[#allocation3 + $0x130] sm:$0xff] %v1259
        %1265 = vst [vmem:[#allocation3 + $0x138] sm:$0xff] %v1261
        %1266 = vrot.lane.b32.xlu0 %v1176, 127
        %v1267 = vpop.permute.xlu0 %1266
        %1268 = vrot.lane.b32.xlu0 %v1177, 127
        %v1269 = vpop.permute.xlu0 %1268
        %1270 = vrot.lane.b32.xlu0 %v1178, 127
        %v1271 = vpop.permute.xlu0 %1270
        %1272 = vrot.lane.b32.xlu0 %v1179, 127
        %v1273 = vpop.permute.xlu0 %1272
        %v1274 = vsel %vm476, %v1271, %v1273
        %v1275 = vsel %vm476, %v1269, %v1271
        %v1276 = vsel %vm476, %v1267, %v1269
        %v1277 = vsel %vm476, %v1273, %v1267
        %s1278 = scalar_lea.vmem [#allocation7], 68
        %v1279 = vld [vmem:[%s1278] ss:$8 sm:$0xf]
        %v1281 = vperm.slane %v1279, 0
        %v1282 = vperm.slane %v1279, 1
        %v1283 = vperm.slane %v1279, 2
        %v1284 = vperm.slane %v1279, 3
        %v1289 = vmul.f32 %v1276, %v1281
        %v1290 = vmul.f32 %v1275, %v1282
        %v1291 = vmul.f32 %v1274, %v1283
        %v1292 = vmul.f32 %v1277, %v1284
        %v1293 = vpack.c.bf16 %v1290, %v1289
        %v1294 = vpack.c.bf16 %v1292, %v1291
        %1295 = vst [vmem:[#allocation3 + $0x140] sm:$0xff] %v1293
        %1296 = vst [vmem:[#allocation3 + $0x148] sm:$0xff] %v1294
        %v1297 = vld [vmem:[#allocation2 + $0x8] sm:$0xff]
        %v1298 = vld [vmem:[#allocation2 + $0x10] sm:$0xff]
        %v1299 = vld [vmem:[#allocation2 + $0x18] sm:$0xff]
        %v1300 = vld [vmem:[#allocation2 + $0x20] sm:$0xff]
        %v1301 = vld [vmem:[#allocation2 + $0x28] sm:$0xff]
        %1307 = vrot.lane.b32.xlu0 %v1297, 64
        %v1308 = vpop.permute.xlu0 %1307
        %1309 = vrot.lane.b32.xlu0 %v1298, 64
        %v1310 = vpop.permute.xlu0 %1309
        %1311 = vrot.lane.b32.xlu0 %v1299, 64
        %v1312 = vpop.permute.xlu0 %1311
        %1313 = vrot.lane.b32.xlu0 %v1300, 64
        %v1314 = vpop.permute.xlu0 %1313
        %1315 = vrot.lane.b32.xlu0 %v1301, 64
        %v1316 = vpop.permute.xlu0 %1315
        %v1317 = vsel %vm520, %v1308, %v1310
        %v1318 = vsel %vm520, %v1310, %v1312
        %v1319 = vsel %vm520, %v1312, %v1314
        %v1320 = vsel %vm520, %v1314, %v1316
        %1325 = vrot.lane.b32.xlu0 %v1317, 1
        %v1326 = vpop.permute.xlu0 %1325
        %1327 = vrot.lane.b32.xlu0 %v1318, 1
        %v1328 = vpop.permute.xlu0 %1327
        %1329 = vrot.lane.b32.xlu0 %v1319, 1
        %v1330 = vpop.permute.xlu0 %1329
        %1331 = vrot.lane.b32.xlu0 %v1320, 1
        %v1332 = vpop.permute.xlu0 %1331
        %v1333 = vsel %vm391, %v1330, %v1332
        %v1334 = vsel %vm391, %v1328, %v1330
        %v1335 = vsel %vm391, %v1326, %v1328
        %v1336 = vsel %vm391, %v1332, %v1326
        %s1337 = scalar_lea.vmem [#allocation7], 69
        %v1338 = vld [vmem:[%s1337] ss:$8 sm:$0xf]
        %v1340 = vperm.slane %v1338, 0
        %v1341 = vperm.slane %v1338, 1
        %v1342 = vperm.slane %v1338, 2
        %v1343 = vperm.slane %v1338, 3
        %v1348 = vmul.f32 %v1336, %v1340
        %v1349 = vmul.f32 %v1335, %v1341
        %v1350 = vmul.f32 %v1334, %v1342
        %v1351 = vmul.f32 %v1333, %v1343
        %v1352 = vpack.c.bf16 %v1349, %v1348
        %v1353 = vpack.c.bf16 %v1351, %v1350
        %1354 = vst [vmem:[#allocation3 + $0x150] sm:$0xff] %v1352
        %1355 = vst [vmem:[#allocation3 + $0x158] sm:$0xff] %v1353
        %s1356 = scalar_lea.vmem [#allocation7], 70
        %v1357 = vld [vmem:[%s1356] ss:$8 sm:$0xf]
        %v1359 = vperm.slane %v1357, 0
        %v1360 = vperm.slane %v1357, 1
        %v1361 = vperm.slane %v1357, 2
        %v1362 = vperm.slane %v1357, 3
        %1363 = vrot.lane.b32.xlu0 %v1359, 64
        %v1364 = vpop.permute.xlu0 %1363
        %1365 = vrot.lane.b32.xlu0 %v1360, 64
        %v1366 = vpop.permute.xlu0 %1365
        %1367 = vrot.lane.b32.xlu0 %v1361, 64
        %v1368 = vpop.permute.xlu0 %1367
        %1369 = vrot.lane.b32.xlu0 %v1362, 64
        %v1370 = vpop.permute.xlu0 %1369
        %v1371 = vsel %vm520, %v1364, %v1366
        %v1372 = vsel %vm520, %v1366, %v1368
        %v1373 = vsel %vm520, %v1368, %v1370
        %v1379 = vmul.f32 %v1297, %v1364
        %v1380 = vmul.f32 %v1298, %v1371
        %v1381 = vmul.f32 %v1299, %v1372
        %v1382 = vmul.f32 %v1300, %v1373
        %v1383 = vmul.f32 %v1301, %v1370
        %v1384 = vpack.c.bf16 %v1380, %v1379
        %v1385 = vpack.c.bf16 %v1382, %v1381
        %v1386 = vpack.c.bf16 %v1383, %v1383
        %1390 = vrot.lane.b32.xlu0 %v1384, 64
        %v1391 = vpop.permute.xlu0 %1390
        %1392 = vrot.lane.b32.xlu0 %v1385, 64
        %v1393 = vpop.permute.xlu0 %1392
        %1394 = vrot.lane.b32.xlu0 %v1386, 64
        %v1395 = vpop.permute.xlu0 %1394
        %v1396 = vrot.slane %v1391, 4
        %v1397 = vrot.slane %v1393, 4
        %v1398 = vrot.slane %v1395, 4
        %v1399 = vsel %vm458, %v1396, %v1397
        %v1400 = vsel %vm604, %v1391, %v1399
        %v1401 = vsel %vm458, %v1397, %v1398
        %v1402 = vsel %vm604, %v1393, %v1401
        %1405 = vst [vmem:[#allocation3 + $0x160] sm:$0xff] %v1400
        %1406 = vst [vmem:[#allocation3 + $0x168] sm:$0xff] %v1402
        %1407 = vrot.lane.b32.xlu0 %v1317, 127
        %v1408 = vpop.permute.xlu0 %1407
        %1409 = vrot.lane.b32.xlu0 %v1318, 127
        %v1410 = vpop.permute.xlu0 %1409
        %1411 = vrot.lane.b32.xlu0 %v1319, 127
        %v1412 = vpop.permute.xlu0 %1411
        %1413 = vrot.lane.b32.xlu0 %v1320, 127
        %v1414 = vpop.permute.xlu0 %1413
        %v1415 = vsel %vm476, %v1412, %v1414
        %v1416 = vsel %vm476, %v1410, %v1412
        %v1417 = vsel %vm476, %v1408, %v1410
        %v1418 = vsel %vm476, %v1414, %v1408
        %s1419 = scalar_lea.vmem [#allocation7], 71
        %v1420 = vld [vmem:[%s1419] ss:$8 sm:$0xf]
        %v1422 = vperm.slane %v1420, 0
        %v1423 = vperm.slane %v1420, 1
        %v1424 = vperm.slane %v1420, 2
        %v1425 = vperm.slane %v1420, 3
        %v1430 = vmul.f32 %v1417, %v1422
        %v1431 = vmul.f32 %v1416, %v1423
        %v1432 = vmul.f32 %v1415, %v1424
        %v1433 = vmul.f32 %v1418, %v1425
        %v1434 = vpack.c.bf16 %v1431, %v1430
        %v1435 = vpack.c.bf16 %v1433, %v1432
        %1436 = vst [vmem:[#allocation3 + $0x170] sm:$0xff] %v1434
        %1437 = vst [vmem:[#allocation3 + $0x178] sm:$0xff] %v1435
        %v1438 = vld [vmem:[#allocation2 + $0x8] sm:$0xff]
        %v1439 = vld [vmem:[#allocation2 + $0x10] sm:$0xff]
        %v1440 = vld [vmem:[#allocation2 + $0x18] sm:$0xff]
        %v1441 = vld [vmem:[#allocation2 + $0x20] sm:$0xff]
        %v1442 = vld [vmem:[#allocation2 + $0x28] sm:$0xff]
        %1448 = vrot.lane.b32.xlu0 %v1438, 56
        %v1449 = vpop.permute.xlu0 %1448
        %1450 = vrot.lane.b32.xlu0 %v1439, 56
        %v1451 = vpop.permute.xlu0 %1450
        %1452 = vrot.lane.b32.xlu0 %v1440, 56
        %v1453 = vpop.permute.xlu0 %1452
        %1454 = vrot.lane.b32.xlu0 %v1441, 56
        %v1455 = vpop.permute.xlu0 %1454
        %1456 = vrot.lane.b32.xlu0 %v1442, 56
        %v1457 = vpop.permute.xlu0 %1456
        %v1458 = vsel %vm429, %v1449, %v1451
        %v1459 = vsel %vm429, %v1451, %v1453
        %v1460 = vsel %vm429, %v1453, %v1455
        %v1461 = vsel %vm429, %v1455, %v1457
        %1466 = vrot.lane.b32.xlu0 %v1458, 1
        %v1467 = vpop.permute.xlu0 %1466
        %1468 = vrot.lane.b32.xlu0 %v1459, 1
        %v1469 = vpop.permute.xlu0 %1468
        %1470 = vrot.lane.b32.xlu0 %v1460, 1
        %v1471 = vpop.permute.xlu0 %1470
        %1472 = vrot.lane.b32.xlu0 %v1461, 1
        %v1473 = vpop.permute.xlu0 %1472
        %v1474 = vsel %vm391, %v1471, %v1473
        %v1475 = vsel %vm391, %v1469, %v1471
        %v1476 = vsel %vm391, %v1467, %v1469
        %v1477 = vsel %vm391, %v1473, %v1467
        %s1478 = scalar_lea.vmem [#allocation7], 96
        %v1479 = vld [vmem:[%s1478] ss:$8 sm:$0xf]
        %v1481 = vperm.slane %v1479, 0
        %v1482 = vperm.slane %v1479, 1
        %v1483 = vperm.slane %v1479, 2
        %v1484 = vperm.slane %v1479, 3
        %v1489 = vmul.f32 %v1477, %v1481
        %v1490 = vmul.f32 %v1476, %v1482
        %v1491 = vmul.f32 %v1475, %v1483
        %v1492 = vmul.f32 %v1474, %v1484
        %v1493 = vpack.c.bf16 %v1490, %v1489
        %v1494 = vpack.c.bf16 %v1492, %v1491
        %1495 = vst [vmem:[#allocation3 + $0x180] sm:$0xff] %v1493
        %1496 = vst [vmem:[#allocation3 + $0x188] sm:$0xff] %v1494
        %s1497 = scalar_lea.vmem [#allocation7], 97
        %v1498 = vld [vmem:[%s1497] ss:$8 sm:$0xf]
        %v1500 = vperm.slane %v1498, 0
        %v1501 = vperm.slane %v1498, 1
        %v1502 = vperm.slane %v1498, 2
        %v1503 = vperm.slane %v1498, 3
        %1504 = vrot.lane.b32.xlu0 %v1500, 72
        %v1505 = vpop.permute.xlu0 %1504
        %1506 = vrot.lane.b32.xlu0 %v1501, 72
        %v1507 = vpop.permute.xlu0 %1506
        %1508 = vrot.lane.b32.xlu0 %v1502, 72
        %v1509 = vpop.permute.xlu0 %1508
        %1510 = vrot.lane.b32.xlu0 %v1503, 72
        %v1511 = vpop.permute.xlu0 %1510
        %v1512 = vsel %vm372, %v1505, %v1507
        %v1513 = vsel %vm372, %v1507, %v1509
        %v1514 = vsel %vm372, %v1509, %v1511
        %v1520 = vmul.f32 %v1438, %v1505
        %v1521 = vmul.f32 %v1439, %v1512
        %v1522 = vmul.f32 %v1440, %v1513
        %v1523 = vmul.f32 %v1441, %v1514
        %v1524 = vmul.f32 %v1442, %v1511
        %v1525 = vpack.c.bf16 %v1521, %v1520
        %v1526 = vpack.c.bf16 %v1523, %v1522
        %v1527 = vpack.c.bf16 %v1524, %v1524
        %1531 = vrot.lane.b32.xlu0 %v1525, 56
        %v1532 = vpop.permute.xlu0 %1531
        %1533 = vrot.lane.b32.xlu0 %v1526, 56
        %v1534 = vpop.permute.xlu0 %1533
        %1535 = vrot.lane.b32.xlu0 %v1527, 56
        %v1536 = vpop.permute.xlu0 %1535
        %v1537 = vrot.slane %v1532, 4
        %v1538 = vrot.slane %v1534, 4
        %v1539 = vrot.slane %v1536, 4
        %v1540 = vsel %vm458, %v1537, %v1538
        %v1541 = vsel %vm746, %v1532, %v1540
        %v1542 = vsel %vm458, %v1538, %v1539
        %v1543 = vsel %vm746, %v1534, %v1542
        %1546 = vst [vmem:[#allocation3 + $0x190] sm:$0xff] %v1541
        %1547 = vst [vmem:[#allocation3 + $0x198] sm:$0xff] %v1543
        %1548 = vrot.lane.b32.xlu0 %v1458, 127
        %v1549 = vpop.permute.xlu0 %1548
        %1550 = vrot.lane.b32.xlu0 %v1459, 127
        %v1551 = vpop.permute.xlu0 %1550
        %1552 = vrot.lane.b32.xlu0 %v1460, 127
        %v1553 = vpop.permute.xlu0 %1552
        %1554 = vrot.lane.b32.xlu0 %v1461, 127
        %v1555 = vpop.permute.xlu0 %1554
        %v1556 = vsel %vm476, %v1553, %v1555
        %v1557 = vsel %vm476, %v1551, %v1553
        %v1558 = vsel %vm476, %v1549, %v1551
        %v1559 = vsel %vm476, %v1555, %v1549
        %s1560 = scalar_lea.vmem [#allocation7], 98
        %v1561 = vld [vmem:[%s1560] ss:$8 sm:$0xf]
        %v1563 = vperm.slane %v1561, 0
        %v1564 = vperm.slane %v1561, 1
        %v1565 = vperm.slane %v1561, 2
        %v1566 = vperm.slane %v1561, 3
        %v1571 = vmul.f32 %v1558, %v1563
        %v1572 = vmul.f32 %v1557, %v1564
        %v1573 = vmul.f32 %v1556, %v1565
        %v1574 = vmul.f32 %v1559, %v1566
        %v1575 = vpack.c.bf16 %v1572, %v1571
        %v1576 = vpack.c.bf16 %v1574, %v1573
        %1577 = vst [vmem:[#allocation3 + $0x1a0] sm:$0xff] %v1575
        %1578 = vst [vmem:[#allocation3 + $0x1a8] sm:$0xff] %v1576
        %v1579 = vld [vmem:[%s2] sm:$0xff]
        %v1580 = vld [vmem:[#allocation3] sm:$0xff]
        %v1581 = vld [vmem:[#allocation3 + $0x8] sm:$0xff]
        %v1582 = vld [vmem:[#allocation3 + $0x10] sm:$0xff]
        %v1583 = vld [vmem:[#allocation3 + $0x18] sm:$0xff]
        %v1584 = vld [vmem:[#allocation3 + $0x20] sm:$0xff]
        %v1585 = vld [vmem:[#allocation3 + $0x28] sm:$0xff]
        %v1586 = vld [vmem:[#allocation3 + $0x30] sm:$0xff]
        %v1587 = vld [vmem:[#allocation3 + $0x38] sm:$0xff]
        %v1588 = vld [vmem:[#allocation3 + $0x40] sm:$0xff]
        %v1589 = vld [vmem:[#allocation3 + $0x48] sm:$0xff]
        %v1590 = vld [vmem:[#allocation3 + $0x50] sm:$0xff]
        %v1591 = vld [vmem:[#allocation3 + $0x58] sm:$0xff]
        %v1592 = vld [vmem:[#allocation3 + $0x60] sm:$0xff]
        %v1593 = vld [vmem:[#allocation3 + $0x68] sm:$0xff]
        %v1594 = vld [vmem:[#allocation3 + $0x70] sm:$0xff]
        %v1595 = vld [vmem:[#allocation3 + $0x78] sm:$0xff]
        %v1596 = vld [vmem:[#allocation3 + $0x80] sm:$0xff]
        %v1597 = vld [vmem:[#allocation3 + $0x88] sm:$0xff]
        %v1598 = vld [vmem:[#allocation3 + $0x90] sm:$0xff]
        %v1599 = vld [vmem:[#allocation3 + $0x98] sm:$0xff]
        %v1600 = vld [vmem:[#allocation3 + $0xa0] sm:$0xff]
        %v1601 = vld [vmem:[#allocation3 + $0xa8] sm:$0xff]
        %v1602 = vld [vmem:[#allocation3 + $0xb0] sm:$0xff]
        %v1603 = vld [vmem:[#allocation3 + $0xb8] sm:$0xff]
        %v1604 = vld [vmem:[#allocation3 + $0xc0] sm:$0xff]
        %v1605 = vld [vmem:[#allocation3 + $0xc8] sm:$0xff]
        %v1606 = vld [vmem:[#allocation3 + $0xd0] sm:$0xff]
        %v1607 = vld [vmem:[#allocation3 + $0xd8] sm:$0xff]
        %v1608 = vld [vmem:[#allocation3 + $0xe0] sm:$0xff]
        %v1609 = vld [vmem:[#allocation3 + $0xe8] sm:$0xff]
        %v1610 = vld [vmem:[#allocation3 + $0xf0] sm:$0xff]
        %v1611 = vld [vmem:[#allocation3 + $0xf8] sm:$0xff]
        %v1612 = vld [vmem:[#allocation3 + $0x100] sm:$0xff]
        %v1613 = vld [vmem:[#allocation3 + $0x108] sm:$0xff]
        %v1614 = vld [vmem:[#allocation3 + $0x110] sm:$0xff]
        %v1615 = vld [vmem:[#allocation3 + $0x118] sm:$0xff]
        %v1616 = vld [vmem:[#allocation3 + $0x120] sm:$0xff]
        %v1617 = vld [vmem:[#allocation3 + $0x128] sm:$0xff]
        %v1618 = vld [vmem:[#allocation3 + $0x130] sm:$0xff]
        %v1619 = vld [vmem:[#allocation3 + $0x138] sm:$0xff]
        %v1620 = vld [vmem:[#allocation3 + $0x140] sm:$0xff]
        %v1621 = vld [vmem:[#allocation3 + $0x148] sm:$0xff]
        %v1622 = vld [vmem:[#allocation3 + $0x150] sm:$0xff]
        %v1623 = vld [vmem:[#allocation3 + $0x158] sm:$0xff]
        %v1624 = vld [vmem:[#allocation3 + $0x160] sm:$0xff]
        %v1625 = vld [vmem:[#allocation3 + $0x168] sm:$0xff]
        %v1626 = vld [vmem:[#allocation3 + $0x170] sm:$0xff]
        %v1627 = vld [vmem:[#allocation3 + $0x178] sm:$0xff]
        %v1628 = vld [vmem:[#allocation3 + $0x180] sm:$0xff]
        %v1629 = vld [vmem:[#allocation3 + $0x188] sm:$0xff]
        %v1630 = vld [vmem:[#allocation3 + $0x190] sm:$0xff]
        %v1631 = vld [vmem:[#allocation3 + $0x198] sm:$0xff]
        %v1632 = vld [vmem:[#allocation3 + $0x1a0] sm:$0xff]
        %v1633 = vld [vmem:[#allocation3 + $0x1a8] sm:$0xff]
        %v1634 = vld [vmem:[%s3] sm:$0xff]
        %1636 = vset.pattern.permute.xlu0 0
        %1637 = vperm.xlu0 %1636, %v1634
        %v1638 = vpop.permute.xlu0 %1637
        %v1641 = vunpack.c.l.b16 %v1579
        %v1642 = vunpack.c.h.b16 %v1579
        %v1643 = vpack.c.b16 %v1641, %v1641
        %v1644 = vpack.c.b16 %v1642, %v1642
        %v1700 = vunpack.c.l.b16 %v1580
        %v1701 = vunpack.c.h.b16 %v1580
        %v1702 = vunpack.c.l.b16 %v1581
        %v1703 = vunpack.c.h.b16 %v1581
        %v1704 = vunpack.c.l.b16 %v1582
        %v1705 = vunpack.c.h.b16 %v1582
        %v1706 = vunpack.c.l.b16 %v1583
        %v1707 = vunpack.c.h.b16 %v1583
        %v1708 = vunpack.c.l.b16 %v1584
        %v1709 = vunpack.c.h.b16 %v1584
        %v1710 = vunpack.c.l.b16 %v1585
        %v1711 = vunpack.c.h.b16 %v1585
        %v1712 = vunpack.c.l.b16 %v1586
        %v1713 = vunpack.c.h.b16 %v1586
        %v1714 = vunpack.c.l.b16 %v1587
        %v1715 = vunpack.c.h.b16 %v1587
        %v1716 = vunpack.c.l.b16 %v1588
        %v1717 = vunpack.c.h.b16 %v1588
        %v1718 = vunpack.c.l.b16 %v1589
        %v1719 = vunpack.c.h.b16 %v1589
        %v1720 = vunpack.c.l.b16 %v1590
        %v1721 = vunpack.c.h.b16 %v1590
        %v1722 = vunpack.c.l.b16 %v1591
        %v1723 = vunpack.c.h.b16 %v1591
        %v1724 = vunpack.c.l.b16 %v1592
        %v1725 = vunpack.c.h.b16 %v1592
        %v1726 = vunpack.c.l.b16 %v1593
        %v1727 = vunpack.c.h.b16 %v1593
        %v1728 = vunpack.c.l.b16 %v1594
        %v1729 = vunpack.c.h.b16 %v1594
        %v1730 = vunpack.c.l.b16 %v1595
        %v1731 = vunpack.c.h.b16 %v1595
        %v1732 = vunpack.c.l.b16 %v1596
        %v1733 = vunpack.c.h.b16 %v1596
        %v1734 = vunpack.c.l.b16 %v1597
        %v1735 = vunpack.c.h.b16 %v1597
        %v1736 = vunpack.c.l.b16 %v1598
        %v1737 = vunpack.c.h.b16 %v1598
        %v1738 = vunpack.c.l.b16 %v1599
        %v1739 = vunpack.c.h.b16 %v1599
        %v1740 = vunpack.c.l.b16 %v1600
        %v1741 = vunpack.c.h.b16 %v1600
        %v1742 = vunpack.c.l.b16 %v1601
        %v1743 = vunpack.c.h.b16 %v1601
        %v1744 = vunpack.c.l.b16 %v1602
        %v1745 = vunpack.c.h.b16 %v1602
        %v1746 = vunpack.c.l.b16 %v1603
        %v1747 = vunpack.c.h.b16 %v1603
        %v1748 = vunpack.c.l.b16 %v1604
        %v1749 = vunpack.c.h.b16 %v1604
        %v1750 = vunpack.c.l.b16 %v1605
        %v1751 = vunpack.c.h.b16 %v1605
        %v1752 = vunpack.c.l.b16 %v1606
        %v1753 = vunpack.c.h.b16 %v1606
        %v1754 = vunpack.c.l.b16 %v1607
        %v1755 = vunpack.c.h.b16 %v1607
        %v1756 = vunpack.c.l.b16 %v1608
        %v1757 = vunpack.c.h.b16 %v1608
        %v1758 = vunpack.c.l.b16 %v1609
        %v1759 = vunpack.c.h.b16 %v1609
        %v1760 = vunpack.c.l.b16 %v1610
        %v1761 = vunpack.c.h.b16 %v1610
        %v1762 = vunpack.c.l.b16 %v1611
        %v1763 = vunpack.c.h.b16 %v1611
        %v1764 = vunpack.c.l.b16 %v1612
        %v1765 = vunpack.c.h.b16 %v1612
        %v1766 = vunpack.c.l.b16 %v1613
        %v1767 = vunpack.c.h.b16 %v1613
        %v1768 = vunpack.c.l.b16 %v1614
        %v1769 = vunpack.c.h.b16 %v1614
        %v1770 = vunpack.c.l.b16 %v1615
        %v1771 = vunpack.c.h.b16 %v1615
        %v1772 = vunpack.c.l.b16 %v1616
        %v1773 = vunpack.c.h.b16 %v1616
        %v1774 = vunpack.c.l.b16 %v1617
        %v1775 = vunpack.c.h.b16 %v1617
        %v1776 = vunpack.c.l.b16 %v1618
        %v1777 = vunpack.c.h.b16 %v1618
        %v1778 = vunpack.c.l.b16 %v1619
        %v1779 = vunpack.c.h.b16 %v1619
        %v1780 = vunpack.c.l.b16 %v1620
        %v1781 = vunpack.c.h.b16 %v1620
        %v1782 = vunpack.c.l.b16 %v1621
        %v1783 = vunpack.c.h.b16 %v1621
        %v1784 = vunpack.c.l.b16 %v1622
        %v1785 = vunpack.c.h.b16 %v1622
        %v1786 = vunpack.c.l.b16 %v1623
        %v1787 = vunpack.c.h.b16 %v1623
        %v1788 = vunpack.c.l.b16 %v1624
        %v1789 = vunpack.c.h.b16 %v1624
        %v1790 = vunpack.c.l.b16 %v1625
        %v1791 = vunpack.c.h.b16 %v1625
        %v1792 = vunpack.c.l.b16 %v1626
        %v1793 = vunpack.c.h.b16 %v1626
        %v1794 = vunpack.c.l.b16 %v1627
        %v1795 = vunpack.c.h.b16 %v1627
        %v1796 = vunpack.c.l.b16 %v1628
        %v1797 = vunpack.c.h.b16 %v1628
        %v1798 = vunpack.c.l.b16 %v1629
        %v1799 = vunpack.c.h.b16 %v1629
        %v1800 = vunpack.c.l.b16 %v1630
        %v1801 = vunpack.c.h.b16 %v1630
        %v1802 = vunpack.c.l.b16 %v1631
        %v1803 = vunpack.c.h.b16 %v1631
        %v1804 = vunpack.c.l.b16 %v1632
        %v1805 = vunpack.c.h.b16 %v1632
        %v1806 = vunpack.c.l.b16 %v1633
        %v1807 = vunpack.c.h.b16 %v1633
        %v1808 = vpack.c.b16 %v1704, %v1700
        %v1809 = vpack.c.b16 %v1705, %v1701
        %v1810 = vpack.c.b16 %v1706, %v1702
        %v1811 = vpack.c.b16 %v1707, %v1703
        %v1812 = vpack.c.b16 %v1712, %v1708
        %v1813 = vpack.c.b16 %v1713, %v1709
        %v1814 = vpack.c.b16 %v1714, %v1710
        %v1815 = vpack.c.b16 %v1715, %v1711
        %v1816 = vpack.c.b16 %v1720, %v1716
        %v1817 = vpack.c.b16 %v1721, %v1717
        %v1818 = vpack.c.b16 %v1722, %v1718
        %v1819 = vpack.c.b16 %v1723, %v1719
        %v1820 = vpack.c.b16 %v1728, %v1724
        %v1821 = vpack.c.b16 %v1729, %v1725
        %v1822 = vpack.c.b16 %v1730, %v1726
        %v1823 = vpack.c.b16 %v1731, %v1727
        %v1824 = vpack.c.b16 %v1736, %v1732
        %v1825 = vpack.c.b16 %v1737, %v1733
        %v1826 = vpack.c.b16 %v1738, %v1734
        %v1827 = vpack.c.b16 %v1739, %v1735
        %v1828 = vpack.c.b16 %v1744, %v1740
        %v1829 = vpack.c.b16 %v1745, %v1741
        %v1830 = vpack.c.b16 %v1746, %v1742
        %v1831 = vpack.c.b16 %v1747, %v1743
        %v1832 = vpack.c.b16 %v1752, %v1748
        %v1833 = vpack.c.b16 %v1753, %v1749
        %v1834 = vpack.c.b16 %v1754, %v1750
        %v1835 = vpack.c.b16 %v1755, %v1751
        %v1836 = vpack.c.b16 %v1760, %v1756
        %v1837 = vpack.c.b16 %v1761, %v1757
        %v1838 = vpack.c.b16 %v1762, %v1758
        %v1839 = vpack.c.b16 %v1763, %v1759
        %v1840 = vpack.c.b16 %v1768, %v1764
        %v1841 = vpack.c.b16 %v1769, %v1765
        %v1842 = vpack.c.b16 %v1770, %v1766
        %v1843 = vpack.c.b16 %v1771, %v1767
        %v1844 = vpack.c.b16 %v1776, %v1772
        %v1845 = vpack.c.b16 %v1777, %v1773
        %v1846 = vpack.c.b16 %v1778, %v1774
        %v1847 = vpack.c.b16 %v1779, %v1775
        %v1848 = vpack.c.b16 %v1784, %v1780
        %v1849 = vpack.c.b16 %v1785, %v1781
        %v1850 = vpack.c.b16 %v1786, %v1782
        %v1851 = vpack.c.b16 %v1787, %v1783
        %v1852 = vpack.c.b16 %v1792, %v1788
        %v1853 = vpack.c.b16 %v1793, %v1789
        %v1854 = vpack.c.b16 %v1794, %v1790
        %v1855 = vpack.c.b16 %v1795, %v1791
        %v1856 = vpack.c.b16 %v1800, %v1796
        %v1857 = vpack.c.b16 %v1801, %v1797
        %v1858 = vpack.c.b16 %v1802, %v1798
        %v1859 = vpack.c.b16 %v1803, %v1799
        %v1860 = vpack.c.b16 %v1804, %v1804
        %v1861 = vpack.c.b16 %v1805, %v1805
        %v1862 = vpack.c.b16 %v1806, %v1806
        %v1863 = vpack.c.b16 %v1807, %v1807
        %vm1916 = vcmask 719872
        %v1918 = vsel %vm1916, %v1644, 0
        %vm1920 = vcmask 1043456
        %v1922 = vsel %vm1920, %v1860, 0
        %v1925 = vsel %vm1920, %v1861, 0
        %v1928 = vsel %vm1920, %v1862, 0
        %v1931 = vsel %vm1920, %v1863, 0
        %1933 = vmatpush.bf16.msra.mxu0 %v1836
        %1934 = vmatpush.bf16.msra.mxu0 %v1832
        %1935 = vmatpush.bf16.msra.mxu0 %v1828
        %1936 = vmatpush.bf16.msra.mxu0 %v1824
        %1937 = vmatpush.bf16.msra.mxu0 %v1820
        %1938 = vmatpush.bf16.msra.mxu0 %v1816
        %1939 = vmatpush.bf16.msra.mxu0 %v1812
        %1940 = vmatpush.bf16.msra.mxu0 %v1808
        %1941 = vmatmul.bf16.gmra.mxu0 %v1643
        %v1942 = vpop.f32.mrf.mxu0
        %v1943 = vadd.f32 %v1638, %v1942
        %v1944 = vpop.f32.mrf.mxu0
        %1945 = vdwg.mxu0
        %1946 = vmatpush.bf16.msra.mxu0 0
        %1947 = vmatpush.bf16.msra.mxu0 0
        %1948 = vmatpush.bf16.msra.mxu0 %v1922
        %1949 = vmatpush.bf16.msra.mxu0 %v1856
        %1950 = vmatpush.bf16.msra.mxu0 %v1852
        %1951 = vmatpush.bf16.msra.mxu0 %v1848
        %1952 = vmatpush.bf16.msra.mxu0 %v1844
        %1953 = vmatpush.bf16.msra.mxu0 %v1840
        %1954 = vmatmul.bf16.gmra.mxu0 %v1918
        %v1955 = vpop.f32.mrf.mxu0
        %v1956 = vadd.f32 %v1943, %v1955
        %v1957 = vpop.f32.mrf.mxu0
        %1958 = vdwg.mxu0
        %1959 = vmatpush.bf16.msra.mxu0 %v1837
        %1960 = vmatpush.bf16.msra.mxu0 %v1833
        %1961 = vmatpush.bf16.msra.mxu0 %v1829
        %1962 = vmatpush.bf16.msra.mxu0 %v1825
        %1963 = vmatpush.bf16.msra.mxu0 %v1821
        %1964 = vmatpush.bf16.msra.mxu0 %v1817
        %1965 = vmatpush.bf16.msra.mxu0 %v1813
        %1966 = vmatpush.bf16.msra.mxu0 %v1809
        %1967 = vmatmul.bf16.gmra.mxu0 %v1643
        %v1968 = vpop.f32.mrf.mxu0
        %v1969 = vadd.f32 %v1638, %v1968
        %v1970 = vpop.f32.mrf.mxu0
        %1971 = vdwg.mxu0
        %1972 = vmatpush.bf16.msra.mxu0 0
        %1973 = vmatpush.bf16.msra.mxu0 0
        %1974 = vmatpush.bf16.msra.mxu0 %v1925
        %1975 = vmatpush.bf16.msra.mxu0 %v1857
        %1976 = vmatpush.bf16.msra.mxu0 %v1853
        %1977 = vmatpush.bf16.msra.mxu0 %v1849
        %1978 = vmatpush.bf16.msra.mxu0 %v1845
        %1979 = vmatpush.bf16.msra.mxu0 %v1841
        %1980 = vmatmul.bf16.gmra.mxu0 %v1918
        %v1981 = vpop.f32.mrf.mxu0
        %v1982 = vadd.f32 %v1969, %v1981
        %v1983 = vpop.f32.mrf.mxu0
        %1984 = vdwg.mxu0
        %1985 = vmatpush.bf16.msra.mxu0 %v1838
        %1986 = vmatpush.bf16.msra.mxu0 %v1834
        %1987 = vmatpush.bf16.msra.mxu0 %v1830
        %1988 = vmatpush.bf16.msra.mxu0 %v1826
        %1989 = vmatpush.bf16.msra.mxu0 %v1822
        %1990 = vmatpush.bf16.msra.mxu0 %v1818
        %1991 = vmatpush.bf16.msra.mxu0 %v1814
        %1992 = vmatpush.bf16.msra.mxu0 %v1810
        %1993 = vmatmul.bf16.gmra.mxu0 %v1643
        %v1994 = vpop.f32.mrf.mxu0
        %v1995 = vadd.f32 %v1638, %v1994
        %v1996 = vpop.f32.mrf.mxu0
        %1997 = vdwg.mxu0
        %1998 = vmatpush.bf16.msra.mxu0 0
        %1999 = vmatpush.bf16.msra.mxu0 0
        %2000 = vmatpush.bf16.msra.mxu0 %v1928
        %2001 = vmatpush.bf16.msra.mxu0 %v1858
        %2002 = vmatpush.bf16.msra.mxu0 %v1854
        %2003 = vmatpush.bf16.msra.mxu0 %v1850
        %2004 = vmatpush.bf16.msra.mxu0 %v1846
        %2005 = vmatpush.bf16.msra.mxu0 %v1842
        %2006 = vmatmul.bf16.gmra.mxu0 %v1918
        %v2007 = vpop.f32.mrf.mxu0
        %v2008 = vadd.f32 %v1995, %v2007
        %v2009 = vpop.f32.mrf.mxu0
        %2010 = vdwg.mxu0
        %2011 = vmatpush.bf16.msra.mxu0 %v1839
        %2012 = vmatpush.bf16.msra.mxu0 %v1835
        %2013 = vmatpush.bf16.msra.mxu0 %v1831
        %2014 = vmatpush.bf16.msra.mxu0 %v1827
        %2015 = vmatpush.bf16.msra.mxu0 %v1823
        %2016 = vmatpush.bf16.msra.mxu0 %v1819
        %2017 = vmatpush.bf16.msra.mxu0 %v1815
        %2018 = vmatpush.bf16.msra.mxu0 %v1811
        %2019 = vmatmul.bf16.gmra.mxu0 %v1643
        %v2020 = vpop.f32.mrf.mxu0
        %v2021 = vadd.f32 %v1638, %v2020
        %v2022 = vpop.f32.mrf.mxu0
        %2023 = vdwg.mxu0
        %2024 = vmatpush.bf16.msra.mxu0 0
        %2025 = vmatpush.bf16.msra.mxu0 0
        %2026 = vmatpush.bf16.msra.mxu0 %v1931
        %2027 = vmatpush.bf16.msra.mxu0 %v1859
        %2028 = vmatpush.bf16.msra.mxu0 %v1855
        %2029 = vmatpush.bf16.msra.mxu0 %v1851
        %2030 = vmatpush.bf16.msra.mxu0 %v1847
        %2031 = vmatpush.bf16.msra.mxu0 %v1843
        %2032 = vmatmul.bf16.gmra.mxu0 %v1918
        %v2033 = vpop.f32.mrf.mxu0
        %v2034 = vadd.f32 %v2021, %v2033
        %v2035 = vpop.f32.mrf.mxu0
        %2036 = vdwg.mxu0
        %v2037 = vmax.f32 %v1956, 0.0
        %v2038 = vmax.f32 %v1982, 0.0
        %v2039 = vmax.f32 %v2008, 0.0
        %v2040 = vmax.f32 %v2034, 0.0
        %2041 = vst [vmem:[#allocation2 + $0x8] sm:$0xff] %v2037
        %2042 = vst [vmem:[#allocation2 + $0x10] sm:$0xff] %v2038
        %2043 = vst [vmem:[#allocation2 + $0x18] sm:$0xff] %v2039
        %2044 = vst [vmem:[#allocation2 + $0x20] sm:$0xff] %v2040
        %v2045 = vld [vmem:[#allocation2] sm:$0xff]
        %v2046 = vld [vmem:[#allocation2 + $0x8] sm:$0xff]
        %v2047 = vld [vmem:[#allocation2 + $0x10] sm:$0xff]
        %v2048 = vld [vmem:[#allocation2 + $0x18] sm:$0xff]
        %v2049 = vld [vmem:[#allocation2 + $0x20] sm:$0xff]
        %2055 = vrot.lane.b32.xlu0 %v2045, 72
        %v2056 = vpop.permute.xlu0 %2055
        %2057 = vrot.lane.b32.xlu0 %v2046, 72
        %v2058 = vpop.permute.xlu0 %2057
        %2059 = vrot.lane.b32.xlu0 %v2047, 72
        %v2060 = vpop.permute.xlu0 %2059
        %2061 = vrot.lane.b32.xlu0 %v2048, 72
        %v2062 = vpop.permute.xlu0 %2061
        %2063 = vrot.lane.b32.xlu0 %v2049, 72
        %v2064 = vpop.permute.xlu0 %2063
        %v2065 = vsel %vm372, %v2056, %v2058
        %v2066 = vsel %vm372, %v2058, %v2060
        %v2067 = vsel %vm372, %v2060, %v2062
        %v2068 = vsel %vm372, %v2062, %v2064
        %2073 = vrot.lane.b32.xlu0 %v2065, 1
        %v2074 = vpop.permute.xlu0 %2073
        %2075 = vrot.lane.b32.xlu0 %v2066, 1
        %v2076 = vpop.permute.xlu0 %2075
        %2077 = vrot.lane.b32.xlu0 %v2067, 1
        %v2078 = vpop.permute.xlu0 %2077
        %2079 = vrot.lane.b32.xlu0 %v2068, 1
        %v2080 = vpop.permute.xlu0 %2079
        %v2081 = vsel %vm391, %v2078, %v2080
        %v2082 = vsel %vm391, %v2076, %v2078
        %v2083 = vsel %vm391, %v2074, %v2076
        %v2084 = vsel %vm391, %v2080, %v2074
        %v2085 = vld [vmem:[#allocation7] ss:$8 sm:$0xf]
        %v2087 = vperm.slane %v2085, 0
        %v2088 = vperm.slane %v2085, 1
        %v2089 = vperm.slane %v2085, 2
        %v2090 = vperm.slane %v2085, 3
        %v2095 = vmul.f32 %v2084, %v2087
        %v2096 = vmul.f32 %v2083, %v2088
        %v2097 = vmul.f32 %v2082, %v2089
        %v2098 = vmul.f32 %v2081, %v2090
        %v2099 = vpack.c.bf16 %v2096, %v2095
        %v2100 = vpack.c.bf16 %v2098, %v2097
        %2101 = vst [vmem:[#allocation3] sm:$0xff] %v2099
        %2102 = vst [vmem:[#allocation3 + $0x8] sm:$0xff] %v2100
        %v2103 = vld [vmem:[%s414] ss:$8 sm:$0xf]
        %v2105 = vperm.slane %v2103, 0
        %v2106 = vperm.slane %v2103, 1
        %v2107 = vperm.slane %v2103, 2
        %v2108 = vperm.slane %v2103, 3
        %2109 = vrot.lane.b32.xlu0 %v2105, 56
        %v2110 = vpop.permute.xlu0 %2109
        %2111 = vrot.lane.b32.xlu0 %v2106, 56
        %v2112 = vpop.permute.xlu0 %2111
        %2113 = vrot.lane.b32.xlu0 %v2107, 56
        %v2114 = vpop.permute.xlu0 %2113
        %2115 = vrot.lane.b32.xlu0 %v2108, 56
        %v2116 = vpop.permute.xlu0 %2115
        %v2117 = vsel %vm429, %v2110, %v2112
        %v2118 = vsel %vm429, %v2112, %v2114
        %v2119 = vsel %vm429, %v2114, %v2116
        %v2125 = vmul.f32 %v2045, %v2110
        %v2126 = vmul.f32 %v2046, %v2117
        %v2127 = vmul.f32 %v2047, %v2118
        %v2128 = vmul.f32 %v2048, %v2119
        %v2129 = vmul.f32 %v2049, %v2116
        %v2130 = vpack.c.bf16 %v2126, %v2125
        %v2131 = vpack.c.bf16 %v2128, %v2127
        %v2132 = vpack.c.bf16 %v2129, %v2129
        %2136 = vrot.lane.b32.xlu0 %v2130, 72
        %v2137 = vpop.permute.xlu0 %2136
        %2138 = vrot.lane.b32.xlu0 %v2131, 72
        %v2139 = vpop.permute.xlu0 %2138
        %2140 = vrot.lane.b32.xlu0 %v2132, 72
        %v2141 = vpop.permute.xlu0 %2140
        %v2142 = vrot.slane %v2137, 4
        %v2143 = vrot.slane %v2139, 4
        %v2144 = vrot.slane %v2141, 4
        %v2145 = vsel %vm458, %v2142, %v2143
        %v2146 = vsel %vm460, %v2137, %v2145
        %v2147 = vsel %vm458, %v2143, %v2144
        %v2148 = vsel %vm460, %v2139, %v2147
        %2151 = vst [vmem:[#allocation3 + $0x10] sm:$0xff] %v2146
        %2152 = vst [vmem:[#allocation3 + $0x18] sm:$0xff] %v2148
        %2153 = vrot.lane.b32.xlu0 %v2065, 127
        %v2154 = vpop.permute.xlu0 %2153
        %2155 = vrot.lane.b32.xlu0 %v2066, 127
        %v2156 = vpop.permute.xlu0 %2155
        %2157 = vrot.lane.b32.xlu0 %v2067, 127
        %v2158 = vpop.permute.xlu0 %2157
        %2159 = vrot.lane.b32.xlu0 %v2068, 127
        %v2160 = vpop.permute.xlu0 %2159
        %v2161 = vsel %vm476, %v2158, %v2160
        %v2162 = vsel %vm476, %v2156, %v2158
        %v2163 = vsel %vm476, %v2154, %v2156
        %v2164 = vsel %vm476, %v2160, %v2154
        %v2165 = vld [vmem:[%s481] ss:$8 sm:$0xf]
        %v2167 = vperm.slane %v2165, 0
        %v2168 = vperm.slane %v2165, 1
        %v2169 = vperm.slane %v2165, 2
        %v2170 = vperm.slane %v2165, 3
        %v2175 = vmul.f32 %v2163, %v2167
        %v2176 = vmul.f32 %v2162, %v2168
        %v2177 = vmul.f32 %v2161, %v2169
        %v2178 = vmul.f32 %v2164, %v2170
        %v2179 = vpack.c.bf16 %v2176, %v2175
        %v2180 = vpack.c.bf16 %v2178, %v2177
        %2181 = vst [vmem:[#allocation3 + $0x20] sm:$0xff] %v2179
        %2182 = vst [vmem:[#allocation3 + $0x28] sm:$0xff] %v2180
        %v2183 = vld [vmem:[#allocation2] sm:$0xff]
        %v2184 = vld [vmem:[#allocation2 + $0x8] sm:$0xff]
        %v2185 = vld [vmem:[#allocation2 + $0x10] sm:$0xff]
        %v2186 = vld [vmem:[#allocation2 + $0x18] sm:$0xff]
        %v2187 = vld [vmem:[#allocation2 + $0x20] sm:$0xff]
        %2193 = vrot.lane.b32.xlu0 %v2183, 64
        %v2194 = vpop.permute.xlu0 %2193
        %2195 = vrot.lane.b32.xlu0 %v2184, 64
        %v2196 = vpop.permute.xlu0 %2195
        %2197 = vrot.lane.b32.xlu0 %v2185, 64
        %v2198 = vpop.permute.xlu0 %2197
        %2199 = vrot.lane.b32.xlu0 %v2186, 64
        %v2200 = vpop.permute.xlu0 %2199
        %2201 = vrot.lane.b32.xlu0 %v2187, 64
        %v2202 = vpop.permute.xlu0 %2201
        %v2203 = vsel %vm520, %v2194, %v2196
        %v2204 = vsel %vm520, %v2196, %v2198
        %v2205 = vsel %vm520, %v2198, %v2200
        %v2206 = vsel %vm520, %v2200, %v2202
        %2211 = vrot.lane.b32.xlu0 %v2203, 1
        %v2212 = vpop.permute.xlu0 %2211
        %2213 = vrot.lane.b32.xlu0 %v2204, 1
        %v2214 = vpop.permute.xlu0 %2213
        %2215 = vrot.lane.b32.xlu0 %v2205, 1
        %v2216 = vpop.permute.xlu0 %2215
        %2217 = vrot.lane.b32.xlu0 %v2206, 1
        %v2218 = vpop.permute.xlu0 %2217
        %v2219 = vsel %vm391, %v2216, %v2218
        %v2220 = vsel %vm391, %v2214, %v2216
        %v2221 = vsel %vm391, %v2212, %v2214
        %v2222 = vsel %vm391, %v2218, %v2212
        %v2223 = vld [vmem:[%s541] ss:$8 sm:$0xf]
        %v2225 = vperm.slane %v2223, 0
        %v2226 = vperm.slane %v2223, 1
        %v2227 = vperm.slane %v2223, 2
        %v2228 = vperm.slane %v2223, 3
        %v2233 = vmul.f32 %v2222, %v2225
        %v2234 = vmul.f32 %v2221, %v2226
        %v2235 = vmul.f32 %v2220, %v2227
        %v2236 = vmul.f32 %v2219, %v2228
        %v2237 = vpack.c.bf16 %v2234, %v2233
        %v2238 = vpack.c.bf16 %v2236, %v2235
        %2239 = vst [vmem:[#allocation3 + $0x30] sm:$0xff] %v2237
        %2240 = vst [vmem:[#allocation3 + $0x38] sm:$0xff] %v2238
        %v2241 = vld [vmem:[%s560] ss:$8 sm:$0xf]
        %v2243 = vperm.slane %v2241, 0
        %v2244 = vperm.slane %v2241, 1
        %v2245 = vperm.slane %v2241, 2
        %v2246 = vperm.slane %v2241, 3
        %2247 = vrot.lane.b32.xlu0 %v2243, 64
        %v2248 = vpop.permute.xlu0 %2247
        %2249 = vrot.lane.b32.xlu0 %v2244, 64
        %v2250 = vpop.permute.xlu0 %2249
        %2251 = vrot.lane.b32.xlu0 %v2245, 64
        %v2252 = vpop.permute.xlu0 %2251
        %2253 = vrot.lane.b32.xlu0 %v2246, 64
        %v2254 = vpop.permute.xlu0 %2253
        %v2255 = vsel %vm520, %v2248, %v2250
        %v2256 = vsel %vm520, %v2250, %v2252
        %v2257 = vsel %vm520, %v2252, %v2254
        %v2263 = vmul.f32 %v2183, %v2248
        %v2264 = vmul.f32 %v2184, %v2255
        %v2265 = vmul.f32 %v2185, %v2256
        %v2266 = vmul.f32 %v2186, %v2257
        %v2267 = vmul.f32 %v2187, %v2254
        %v2268 = vpack.c.bf16 %v2264, %v2263
        %v2269 = vpack.c.bf16 %v2266, %v2265
        %v2270 = vpack.c.bf16 %v2267, %v2267
        %2274 = vrot.lane.b32.xlu0 %v2268, 64
        %v2275 = vpop.permute.xlu0 %2274
        %2276 = vrot.lane.b32.xlu0 %v2269, 64
        %v2277 = vpop.permute.xlu0 %2276
        %2278 = vrot.lane.b32.xlu0 %v2270, 64
        %v2279 = vpop.permute.xlu0 %2278
        %v2280 = vrot.slane %v2275, 4
        %v2281 = vrot.slane %v2277, 4
        %v2282 = vrot.slane %v2279, 4
        %v2283 = vsel %vm458, %v2280, %v2281
        %v2284 = vsel %vm604, %v2275, %v2283
        %v2285 = vsel %vm458, %v2281, %v2282
        %v2286 = vsel %vm604, %v2277, %v2285
        %2289 = vst [vmem:[#allocation3 + $0x40] sm:$0xff] %v2284
        %2290 = vst [vmem:[#allocation3 + $0x48] sm:$0xff] %v2286
        %2291 = vrot.lane.b32.xlu0 %v2203, 127
        %v2292 = vpop.permute.xlu0 %2291
        %2293 = vrot.lane.b32.xlu0 %v2204, 127
        %v2294 = vpop.permute.xlu0 %2293
        %2295 = vrot.lane.b32.xlu0 %v2205, 127
        %v2296 = vpop.permute.xlu0 %2295
        %2297 = vrot.lane.b32.xlu0 %v2206, 127
        %v2298 = vpop.permute.xlu0 %2297
        %v2299 = vsel %vm476, %v2296, %v2298
        %v2300 = vsel %vm476, %v2294, %v2296
        %v2301 = vsel %vm476, %v2292, %v2294
        %v2302 = vsel %vm476, %v2298, %v2292
        %v2303 = vld [vmem:[%s624] ss:$8 sm:$0xf]
        %v2305 = vperm.slane %v2303, 0
        %v2306 = vperm.slane %v2303, 1
        %v2307 = vperm.slane %v2303, 2
        %v2308 = vperm.slane %v2303, 3
        %v2313 = vmul.f32 %v2301, %v2305
        %v2314 = vmul.f32 %v2300, %v2306
        %v2315 = vmul.f32 %v2299, %v2307
        %v2316 = vmul.f32 %v2302, %v2308
        %v2317 = vpack.c.bf16 %v2314, %v2313
        %v2318 = vpack.c.bf16 %v2316, %v2315
        %2319 = vst [vmem:[#allocation3 + $0x50] sm:$0xff] %v2317
        %2320 = vst [vmem:[#allocation3 + $0x58] sm:$0xff] %v2318
        %v2321 = vld [vmem:[#allocation2] sm:$0xff]
        %v2322 = vld [vmem:[#allocation2 + $0x8] sm:$0xff]
        %v2323 = vld [vmem:[#allocation2 + $0x10] sm:$0xff]
        %v2324 = vld [vmem:[#allocation2 + $0x18] sm:$0xff]
        %v2325 = vld [vmem:[#allocation2 + $0x20] sm:$0xff]
        %2331 = vrot.lane.b32.xlu0 %v2321, 56
        %v2332 = vpop.permute.xlu0 %2331
        %2333 = vrot.lane.b32.xlu0 %v2322, 56
        %v2334 = vpop.permute.xlu0 %2333
        %2335 = vrot.lane.b32.xlu0 %v2323, 56
        %v2336 = vpop.permute.xlu0 %2335
        %2337 = vrot.lane.b32.xlu0 %v2324, 56
        %v2338 = vpop.permute.xlu0 %2337
        %2339 = vrot.lane.b32.xlu0 %v2325, 56
        %v2340 = vpop.permute.xlu0 %2339
        %v2341 = vsel %vm429, %v2332, %v2334
        %v2342 = vsel %vm429, %v2334, %v2336
        %v2343 = vsel %vm429, %v2336, %v2338
        %v2344 = vsel %vm429, %v2338, %v2340
        %2349 = vrot.lane.b32.xlu0 %v2341, 1
        %v2350 = vpop.permute.xlu0 %2349
        %2351 = vrot.lane.b32.xlu0 %v2342, 1
        %v2352 = vpop.permute.xlu0 %2351
        %2353 = vrot.lane.b32.xlu0 %v2343, 1
        %v2354 = vpop.permute.xlu0 %2353
        %2355 = vrot.lane.b32.xlu0 %v2344, 1
        %v2356 = vpop.permute.xlu0 %2355
        %v2357 = vsel %vm391, %v2354, %v2356
        %v2358 = vsel %vm391, %v2352, %v2354
        %v2359 = vsel %vm391, %v2350, %v2352
        %v2360 = vsel %vm391, %v2356, %v2350
        %v2361 = vld [vmem:[%s683] ss:$8 sm:$0xf]
        %v2363 = vperm.slane %v2361, 0
        %v2364 = vperm.slane %v2361, 1
        %v2365 = vperm.slane %v2361, 2
        %v2366 = vperm.slane %v2361, 3
        %v2371 = vmul.f32 %v2360, %v2363
        %v2372 = vmul.f32 %v2359, %v2364
        %v2373 = vmul.f32 %v2358, %v2365
        %v2374 = vmul.f32 %v2357, %v2366
        %v2375 = vpack.c.bf16 %v2372, %v2371
        %v2376 = vpack.c.bf16 %v2374, %v2373
        %2377 = vst [vmem:[#allocation3 + $0x60] sm:$0xff] %v2375
        %2378 = vst [vmem:[#allocation3 + $0x68] sm:$0xff] %v2376
        %v2379 = vld [vmem:[%s702] ss:$8 sm:$0xf]
        %v2381 = vperm.slane %v2379, 0
        %v2382 = vperm.slane %v2379, 1
        %v2383 = vperm.slane %v2379, 2
        %v2384 = vperm.slane %v2379, 3
        %2385 = vrot.lane.b32.xlu0 %v2381, 72
        %v2386 = vpop.permute.xlu0 %2385
        %2387 = vrot.lane.b32.xlu0 %v2382, 72
        %v2388 = vpop.permute.xlu0 %2387
        %2389 = vrot.lane.b32.xlu0 %v2383, 72
        %v2390 = vpop.permute.xlu0 %2389
        %2391 = vrot.lane.b32.xlu0 %v2384, 72
        %v2392 = vpop.permute.xlu0 %2391
        %v2393 = vsel %vm372, %v2386, %v2388
        %v2394 = vsel %vm372, %v2388, %v2390
        %v2395 = vsel %vm372, %v2390, %v2392
        %v2401 = vmul.f32 %v2321, %v2386
        %v2402 = vmul.f32 %v2322, %v2393
        %v2403 = vmul.f32 %v2323, %v2394
        %v2404 = vmul.f32 %v2324, %v2395
        %v2405 = vmul.f32 %v2325, %v2392
        %v2406 = vpack.c.bf16 %v2402, %v2401
        %v2407 = vpack.c.bf16 %v2404, %v2403
        %v2408 = vpack.c.bf16 %v2405, %v2405
        %2412 = vrot.lane.b32.xlu0 %v2406, 56
        %v2413 = vpop.permute.xlu0 %2412
        %2414 = vrot.lane.b32.xlu0 %v2407, 56
        %v2415 = vpop.permute.xlu0 %2414
        %2416 = vrot.lane.b32.xlu0 %v2408, 56
        %v2417 = vpop.permute.xlu0 %2416
        %v2418 = vrot.slane %v2413, 4
        %v2419 = vrot.slane %v2415, 4
        %v2420 = vrot.slane %v2417, 4
        %v2421 = vsel %vm458, %v2418, %v2419
        %v2422 = vsel %vm746, %v2413, %v2421
        %v2423 = vsel %vm458, %v2419, %v2420
        %v2424 = vsel %vm746, %v2415, %v2423
        %2427 = vst [vmem:[#allocation3 + $0x70] sm:$0xff] %v2422
        %2428 = vst [vmem:[#allocation3 + $0x78] sm:$0xff] %v2424
        %2429 = vrot.lane.b32.xlu0 %v2341, 127
        %v2430 = vpop.permute.xlu0 %2429
        %2431 = vrot.lane.b32.xlu0 %v2342, 127
        %v2432 = vpop.permute.xlu0 %2431
        %2433 = vrot.lane.b32.xlu0 %v2343, 127
        %v2434 = vpop.permute.xlu0 %2433
        %2435 = vrot.lane.b32.xlu0 %v2344, 127
        %v2436 = vpop.permute.xlu0 %2435
        %v2437 = vsel %vm476, %v2434, %v2436
        %v2438 = vsel %vm476, %v2432, %v2434
        %v2439 = vsel %vm476, %v2430, %v2432
        %v2440 = vsel %vm476, %v2436, %v2430
        %v2441 = vld [vmem:[%s766] ss:$8 sm:$0xf]
        %v2443 = vperm.slane %v2441, 0
        %v2444 = vperm.slane %v2441, 1
        %v2445 = vperm.slane %v2441, 2
        %v2446 = vperm.slane %v2441, 3
        %v2451 = vmul.f32 %v2439, %v2443
        %v2452 = vmul.f32 %v2438, %v2444
        %v2453 = vmul.f32 %v2437, %v2445
        %v2454 = vmul.f32 %v2440, %v2446
        %v2455 = vpack.c.bf16 %v2452, %v2451
        %v2456 = vpack.c.bf16 %v2454, %v2453
        %2457 = vst [vmem:[#allocation3 + $0x80] sm:$0xff] %v2455
        %2458 = vst [vmem:[#allocation3 + $0x88] sm:$0xff] %v2456
        %v2459 = vld [vmem:[#allocation2] sm:$0xff]
        %v2460 = vld [vmem:[#allocation2 + $0x8] sm:$0xff]
        %v2461 = vld [vmem:[#allocation2 + $0x10] sm:$0xff]
        %v2462 = vld [vmem:[#allocation2 + $0x18] sm:$0xff]
        %v2463 = vld [vmem:[#allocation2 + $0x20] sm:$0xff]
        %2469 = vrot.lane.b32.xlu0 %v2459, 8
        %v2470 = vpop.permute.xlu0 %2469
        %2471 = vrot.lane.b32.xlu0 %v2460, 8
        %v2472 = vpop.permute.xlu0 %2471
        %2473 = vrot.lane.b32.xlu0 %v2461, 8
        %v2474 = vpop.permute.xlu0 %2473
        %2475 = vrot.lane.b32.xlu0 %v2462, 8
        %v2476 = vpop.permute.xlu0 %2475
        %2477 = vrot.lane.b32.xlu0 %v2463, 8
        %v2478 = vpop.permute.xlu0 %2477
        %v2479 = vsel %vm805, %v2470, %v2472
        %v2480 = vsel %vm805, %v2472, %v2474
        %v2481 = vsel %vm805, %v2474, %v2476
        %v2482 = vsel %vm805, %v2476, %v2478
        %2487 = vrot.lane.b32.xlu0 %v2479, 1
        %v2488 = vpop.permute.xlu0 %2487
        %2489 = vrot.lane.b32.xlu0 %v2480, 1
        %v2490 = vpop.permute.xlu0 %2489
        %2491 = vrot.lane.b32.xlu0 %v2481, 1
        %v2492 = vpop.permute.xlu0 %2491
        %2493 = vrot.lane.b32.xlu0 %v2482, 1
        %v2494 = vpop.permute.xlu0 %2493
        %v2495 = vsel %vm391, %v2492, %v2494
        %v2496 = vsel %vm391, %v2490, %v2492
        %v2497 = vsel %vm391, %v2488, %v2490
        %v2498 = vsel %vm391, %v2494, %v2488
        %v2499 = vld [vmem:[%s826] ss:$8 sm:$0xf]
        %v2501 = vperm.slane %v2499, 0
        %v2502 = vperm.slane %v2499, 1
        %v2503 = vperm.slane %v2499, 2
        %v2504 = vperm.slane %v2499, 3
        %v2509 = vmul.f32 %v2498, %v2501
        %v2510 = vmul.f32 %v2497, %v2502
        %v2511 = vmul.f32 %v2496, %v2503
        %v2512 = vmul.f32 %v2495, %v2504
        %v2513 = vpack.c.bf16 %v2510, %v2509
        %v2514 = vpack.c.bf16 %v2512, %v2511
        %2515 = vst [vmem:[#allocation3 + $0x90] sm:$0xff] %v2513
        %2516 = vst [vmem:[#allocation3 + $0x98] sm:$0xff] %v2514
        %v2517 = vld [vmem:[%s845] ss:$8 sm:$0xf]
        %v2519 = vperm.slane %v2517, 0
        %v2520 = vperm.slane %v2517, 1
        %v2521 = vperm.slane %v2517, 2
        %v2522 = vperm.slane %v2517, 3
        %2523 = vrot.lane.b32.xlu0 %v2519, 120
        %v2524 = vpop.permute.xlu0 %2523
        %2525 = vrot.lane.b32.xlu0 %v2520, 120
        %v2526 = vpop.permute.xlu0 %2525
        %2527 = vrot.lane.b32.xlu0 %v2521, 120
        %v2528 = vpop.permute.xlu0 %2527
        %2529 = vrot.lane.b32.xlu0 %v2522, 120
        %v2530 = vpop.permute.xlu0 %2529
        %v2531 = vsel %vm860, %v2524, %v2526
        %v2532 = vsel %vm860, %v2526, %v2528
        %v2533 = vsel %vm860, %v2528, %v2530
        %v2539 = vmul.f32 %v2459, %v2524
        %v2540 = vmul.f32 %v2460, %v2531
        %v2541 = vmul.f32 %v2461, %v2532
        %v2542 = vmul.f32 %v2462, %v2533
        %v2543 = vmul.f32 %v2463, %v2530
        %v2544 = vpack.c.bf16 %v2540, %v2539
        %v2545 = vpack.c.bf16 %v2542, %v2541
        %v2546 = vpack.c.bf16 %v2543, %v2543
        %2550 = vrot.lane.b32.xlu0 %v2544, 8
        %v2551 = vpop.permute.xlu0 %2550
        %2552 = vrot.lane.b32.xlu0 %v2545, 8
        %v2553 = vpop.permute.xlu0 %2552
        %2554 = vrot.lane.b32.xlu0 %v2546, 8
        %v2555 = vpop.permute.xlu0 %2554
        %v2556 = vrot.slane %v2551, 4
        %v2557 = vrot.slane %v2553, 4
        %v2558 = vrot.slane %v2555, 4
        %v2559 = vsel %vm458, %v2556, %v2557
        %v2560 = vsel %vm890, %v2551, %v2559
        %v2561 = vsel %vm458, %v2557, %v2558
        %v2562 = vsel %vm890, %v2553, %v2561
        %2565 = vst [vmem:[#allocation3 + $0xa0] sm:$0xff] %v2560
        %2566 = vst [vmem:[#allocation3 + $0xa8] sm:$0xff] %v2562
        %2567 = vrot.lane.b32.xlu0 %v2479, 127
        %v2568 = vpop.permute.xlu0 %2567
        %2569 = vrot.lane.b32.xlu0 %v2480, 127
        %v2570 = vpop.permute.xlu0 %2569
        %2571 = vrot.lane.b32.xlu0 %v2481, 127
        %v2572 = vpop.permute.xlu0 %2571
        %2573 = vrot.lane.b32.xlu0 %v2482, 127
        %v2574 = vpop.permute.xlu0 %2573
        %v2575 = vsel %vm476, %v2572, %v2574
        %v2576 = vsel %vm476, %v2570, %v2572
        %v2577 = vsel %vm476, %v2568, %v2570
        %v2578 = vsel %vm476, %v2574, %v2568
        %v2579 = vld [vmem:[%s910] ss:$8 sm:$0xf]
        %v2581 = vperm.slane %v2579, 0
        %v2582 = vperm.slane %v2579, 1
        %v2583 = vperm.slane %v2579, 2
        %v2584 = vperm.slane %v2579, 3
        %v2589 = vmul.f32 %v2577, %v2581
        %v2590 = vmul.f32 %v2576, %v2582
        %v2591 = vmul.f32 %v2575, %v2583
        %v2592 = vmul.f32 %v2578, %v2584
        %v2593 = vpack.c.bf16 %v2590, %v2589
        %v2594 = vpack.c.bf16 %v2592, %v2591
        %2595 = vst [vmem:[#allocation3 + $0xb0] sm:$0xff] %v2593
        %2596 = vst [vmem:[#allocation3 + $0xb8] sm:$0xff] %v2594
        %v2597 = vld [vmem:[#allocation2 + $0x8] sm:$0xff]
        %v2598 = vld [vmem:[#allocation2 + $0x10] sm:$0xff]
        %v2599 = vld [vmem:[#allocation2 + $0x18] sm:$0xff]
        %v2600 = vld [vmem:[#allocation2 + $0x20] sm:$0xff]
        %2601 = vrot.lane.b32.xlu0 %v2597, 1
        %v2602 = vpop.permute.xlu0 %2601
        %2603 = vrot.lane.b32.xlu0 %v2598, 1
        %v2604 = vpop.permute.xlu0 %2603
        %2605 = vrot.lane.b32.xlu0 %v2599, 1
        %v2606 = vpop.permute.xlu0 %2605
        %2607 = vrot.lane.b32.xlu0 %v2600, 1
        %v2608 = vpop.permute.xlu0 %2607
        %v2609 = vsel %vm391, %v2606, %v2608
        %v2610 = vsel %vm391, %v2604, %v2606
        %v2611 = vsel %vm391, %v2602, %v2604
        %v2612 = vsel %vm391, %v2608, %v2602
        %v2613 = vld [vmem:[%s945] ss:$8 sm:$0xf]
        %v2615 = vperm.slane %v2613, 0
        %v2616 = vperm.slane %v2613, 1
        %v2617 = vperm.slane %v2613, 2
        %v2618 = vperm.slane %v2613, 3
        %v2623 = vmul.f32 %v2612, %v2615
        %v2624 = vmul.f32 %v2611, %v2616
        %v2625 = vmul.f32 %v2610, %v2617
        %v2626 = vmul.f32 %v2609, %v2618
        %v2627 = vpack.c.bf16 %v2624, %v2623
        %v2628 = vpack.c.bf16 %v2626, %v2625
        %2629 = vst [vmem:[#allocation3 + $0xc0] sm:$0xff] %v2627
        %2630 = vst [vmem:[#allocation3 + $0xc8] sm:$0xff] %v2628
        %v2631 = vld [vmem:[%s964] ss:$8 sm:$0xf]
        %v2633 = vperm.slane %v2631, 0
        %v2634 = vperm.slane %v2631, 1
        %v2635 = vperm.slane %v2631, 2
        %v2636 = vperm.slane %v2631, 3
        %v2641 = vmul.f32 %v2597, %v2633
        %v2642 = vmul.f32 %v2598, %v2634
        %v2643 = vmul.f32 %v2599, %v2635
        %v2644 = vmul.f32 %v2600, %v2636
        %v2645 = vpack.c.bf16 %v2642, %v2641
        %v2646 = vpack.c.bf16 %v2644, %v2643
        %2647 = vst [vmem:[#allocation3 + $0xd0] sm:$0xff] %v2645
        %2648 = vst [vmem:[#allocation3 + $0xd8] sm:$0xff] %v2646
        %2649 = vrot.lane.b32.xlu0 %v2597, 127
        %v2650 = vpop.permute.xlu0 %2649
        %2651 = vrot.lane.b32.xlu0 %v2598, 127
        %v2652 = vpop.permute.xlu0 %2651
        %2653 = vrot.lane.b32.xlu0 %v2599, 127
        %v2654 = vpop.permute.xlu0 %2653
        %2655 = vrot.lane.b32.xlu0 %v2600, 127
        %v2656 = vpop.permute.xlu0 %2655
        %v2657 = vsel %vm476, %v2654, %v2656
        %v2658 = vsel %vm476, %v2652, %v2654
        %v2659 = vsel %vm476, %v2650, %v2652
        %v2660 = vsel %vm476, %v2656, %v2650
        %v2661 = vld [vmem:[%s995] ss:$8 sm:$0xf]
        %v2663 = vperm.slane %v2661, 0
        %v2664 = vperm.slane %v2661, 1
        %v2665 = vperm.slane %v2661, 2
        %v2666 = vperm.slane %v2661, 3
        %v2671 = vmul.f32 %v2659, %v2663
        %v2672 = vmul.f32 %v2658, %v2664
        %v2673 = vmul.f32 %v2657, %v2665
        %v2674 = vmul.f32 %v2660, %v2666
        %v2675 = vpack.c.bf16 %v2672, %v2671
        %v2676 = vpack.c.bf16 %v2674, %v2673
        %2677 = vst [vmem:[#allocation3 + $0xe0] sm:$0xff] %v2675
        %2678 = vst [vmem:[#allocation3 + $0xe8] sm:$0xff] %v2676
        %v2679 = vld [vmem:[#allocation2 + $0x8] sm:$0xff]
        %v2680 = vld [vmem:[#allocation2 + $0x10] sm:$0xff]
        %v2681 = vld [vmem:[#allocation2 + $0x18] sm:$0xff]
        %v2682 = vld [vmem:[#allocation2 + $0x20] sm:$0xff]
        %v2683 = vld [vmem:[#allocation2 + $0x28] sm:$0xff]
        %2689 = vrot.lane.b32.xlu0 %v2679, 120
        %v2690 = vpop.permute.xlu0 %2689
        %2691 = vrot.lane.b32.xlu0 %v2680, 120
        %v2692 = vpop.permute.xlu0 %2691
        %2693 = vrot.lane.b32.xlu0 %v2681, 120
        %v2694 = vpop.permute.xlu0 %2693
        %2695 = vrot.lane.b32.xlu0 %v2682, 120
        %v2696 = vpop.permute.xlu0 %2695
        %2697 = vrot.lane.b32.xlu0 %v2683, 120
        %v2698 = vpop.permute.xlu0 %2697
        %v2699 = vsel %vm860, %v2690, %v2692
        %v2700 = vsel %vm860, %v2692, %v2694
        %v2701 = vsel %vm860, %v2694, %v2696
        %v2702 = vsel %vm860, %v2696, %v2698
        %2707 = vrot.lane.b32.xlu0 %v2699, 1
        %v2708 = vpop.permute.xlu0 %2707
        %2709 = vrot.lane.b32.xlu0 %v2700, 1
        %v2710 = vpop.permute.xlu0 %2709
        %2711 = vrot.lane.b32.xlu0 %v2701, 1
        %v2712 = vpop.permute.xlu0 %2711
        %2713 = vrot.lane.b32.xlu0 %v2702, 1
        %v2714 = vpop.permute.xlu0 %2713
        %v2715 = vsel %vm391, %v2712, %v2714
        %v2716 = vsel %vm391, %v2710, %v2712
        %v2717 = vsel %vm391, %v2708, %v2710
        %v2718 = vsel %vm391, %v2714, %v2708
        %v2719 = vld [vmem:[%s1054] ss:$8 sm:$0xf]
        %v2721 = vperm.slane %v2719, 0
        %v2722 = vperm.slane %v2719, 1
        %v2723 = vperm.slane %v2719, 2
        %v2724 = vperm.slane %v2719, 3
        %v2729 = vmul.f32 %v2718, %v2721
        %v2730 = vmul.f32 %v2717, %v2722
        %v2731 = vmul.f32 %v2716, %v2723
        %v2732 = vmul.f32 %v2715, %v2724
        %v2733 = vpack.c.bf16 %v2730, %v2729
        %v2734 = vpack.c.bf16 %v2732, %v2731
        %2735 = vst [vmem:[#allocation3 + $0xf0] sm:$0xff] %v2733
        %2736 = vst [vmem:[#allocation3 + $0xf8] sm:$0xff] %v2734
        %v2737 = vld [vmem:[%s1073] ss:$8 sm:$0xf]
        %v2739 = vperm.slane %v2737, 0
        %v2740 = vperm.slane %v2737, 1
        %v2741 = vperm.slane %v2737, 2
        %v2742 = vperm.slane %v2737, 3
        %2743 = vrot.lane.b32.xlu0 %v2739, 8
        %v2744 = vpop.permute.xlu0 %2743
        %2745 = vrot.lane.b32.xlu0 %v2740, 8
        %v2746 = vpop.permute.xlu0 %2745
        %2747 = vrot.lane.b32.xlu0 %v2741, 8
        %v2748 = vpop.permute.xlu0 %2747
        %2749 = vrot.lane.b32.xlu0 %v2742, 8
        %v2750 = vpop.permute.xlu0 %2749
        %v2751 = vsel %vm805, %v2744, %v2746
        %v2752 = vsel %vm805, %v2746, %v2748
        %v2753 = vsel %vm805, %v2748, %v2750
        %v2759 = vmul.f32 %v2679, %v2744
        %v2760 = vmul.f32 %v2680, %v2751
        %v2761 = vmul.f32 %v2681, %v2752
        %v2762 = vmul.f32 %v2682, %v2753
        %v2763 = vmul.f32 %v2683, %v2750
        %v2764 = vpack.c.bf16 %v2760, %v2759
        %v2765 = vpack.c.bf16 %v2762, %v2761
        %v2766 = vpack.c.bf16 %v2763, %v2763
        %2770 = vrot.lane.b32.xlu0 %v2764, 120
        %v2771 = vpop.permute.xlu0 %2770
        %2772 = vrot.lane.b32.xlu0 %v2765, 120
        %v2773 = vpop.permute.xlu0 %2772
        %2774 = vrot.lane.b32.xlu0 %v2766, 120
        %v2775 = vpop.permute.xlu0 %2774
        %v2776 = vrot.slane %v2771, 4
        %v2777 = vrot.slane %v2773, 4
        %v2778 = vrot.slane %v2775, 4
        %v2779 = vsel %vm458, %v2776, %v2777
        %v2780 = vsel %vm1117, %v2771, %v2779
        %v2781 = vsel %vm458, %v2777, %v2778
        %v2782 = vsel %vm1117, %v2773, %v2781
        %2785 = vst [vmem:[#allocation3 + $0x100] sm:$0xff] %v2780
        %2786 = vst [vmem:[#allocation3 + $0x108] sm:$0xff] %v2782
        %2787 = vrot.lane.b32.xlu0 %v2699, 127
        %v2788 = vpop.permute.xlu0 %2787
        %2789 = vrot.lane.b32.xlu0 %v2700, 127
        %v2790 = vpop.permute.xlu0 %2789
        %2791 = vrot.lane.b32.xlu0 %v2701, 127
        %v2792 = vpop.permute.xlu0 %2791
        %2793 = vrot.lane.b32.xlu0 %v2702, 127
        %v2794 = vpop.permute.xlu0 %2793
        %v2795 = vsel %vm476, %v2792, %v2794
        %v2796 = vsel %vm476, %v2790, %v2792
        %v2797 = vsel %vm476, %v2788, %v2790
        %v2798 = vsel %vm476, %v2794, %v2788
        %v2799 = vld [vmem:[%s1137] ss:$8 sm:$0xf]
        %v2801 = vperm.slane %v2799, 0
        %v2802 = vperm.slane %v2799, 1
        %v2803 = vperm.slane %v2799, 2
        %v2804 = vperm.slane %v2799, 3
        %v2809 = vmul.f32 %v2797, %v2801
        %v2810 = vmul.f32 %v2796, %v2802
        %v2811 = vmul.f32 %v2795, %v2803
        %v2812 = vmul.f32 %v2798, %v2804
        %v2813 = vpack.c.bf16 %v2810, %v2809
        %v2814 = vpack.c.bf16 %v2812, %v2811
        %2815 = vst [vmem:[#allocation3 + $0x110] sm:$0xff] %v2813
        %2816 = vst [vmem:[#allocation3 + $0x118] sm:$0xff] %v2814
        %v2817 = vld [vmem:[#allocation2 + $0x8] sm:$0xff]
        %v2818 = vld [vmem:[#allocation2 + $0x10] sm:$0xff]
        %v2819 = vld [vmem:[#allocation2 + $0x18] sm:$0xff]
        %v2820 = vld [vmem:[#allocation2 + $0x20] sm:$0xff]
        %v2821 = vld [vmem:[#allocation2 + $0x28] sm:$0xff]
        %2827 = vrot.lane.b32.xlu0 %v2817, 72
        %v2828 = vpop.permute.xlu0 %2827
        %2829 = vrot.lane.b32.xlu0 %v2818, 72
        %v2830 = vpop.permute.xlu0 %2829
        %2831 = vrot.lane.b32.xlu0 %v2819, 72
        %v2832 = vpop.permute.xlu0 %2831
        %2833 = vrot.lane.b32.xlu0 %v2820, 72
        %v2834 = vpop.permute.xlu0 %2833
        %2835 = vrot.lane.b32.xlu0 %v2821, 72
        %v2836 = vpop.permute.xlu0 %2835
        %v2837 = vsel %vm372, %v2828, %v2830
        %v2838 = vsel %vm372, %v2830, %v2832
        %v2839 = vsel %vm372, %v2832, %v2834
        %v2840 = vsel %vm372, %v2834, %v2836
        %2845 = vrot.lane.b32.xlu0 %v2837, 1
        %v2846 = vpop.permute.xlu0 %2845
        %2847 = vrot.lane.b32.xlu0 %v2838, 1
        %v2848 = vpop.permute.xlu0 %2847
        %2849 = vrot.lane.b32.xlu0 %v2839, 1
        %v2850 = vpop.permute.xlu0 %2849
        %2851 = vrot.lane.b32.xlu0 %v2840, 1
        %v2852 = vpop.permute.xlu0 %2851
        %v2853 = vsel %vm391, %v2850, %v2852
        %v2854 = vsel %vm391, %v2848, %v2850
        %v2855 = vsel %vm391, %v2846, %v2848
        %v2856 = vsel %vm391, %v2852, %v2846
        %v2857 = vld [vmem:[%s1196] ss:$8 sm:$0xf]
        %v2859 = vperm.slane %v2857, 0
        %v2860 = vperm.slane %v2857, 1
        %v2861 = vperm.slane %v2857, 2
        %v2862 = vperm.slane %v2857, 3
        %v2867 = vmul.f32 %v2856, %v2859
        %v2868 = vmul.f32 %v2855, %v2860
        %v2869 = vmul.f32 %v2854, %v2861
        %v2870 = vmul.f32 %v2853, %v2862
        %v2871 = vpack.c.bf16 %v2868, %v2867
        %v2872 = vpack.c.bf16 %v2870, %v2869
        %2873 = vst [vmem:[#allocation3 + $0x120] sm:$0xff] %v2871
        %2874 = vst [vmem:[#allocation3 + $0x128] sm:$0xff] %v2872
        %v2875 = vld [vmem:[%s1215] ss:$8 sm:$0xf]
        %v2877 = vperm.slane %v2875, 0
        %v2878 = vperm.slane %v2875, 1
        %v2879 = vperm.slane %v2875, 2
        %v2880 = vperm.slane %v2875, 3
        %2881 = vrot.lane.b32.xlu0 %v2877, 56
        %v2882 = vpop.permute.xlu0 %2881
        %2883 = vrot.lane.b32.xlu0 %v2878, 56
        %v2884 = vpop.permute.xlu0 %2883
        %2885 = vrot.lane.b32.xlu0 %v2879, 56
        %v2886 = vpop.permute.xlu0 %2885
        %2887 = vrot.lane.b32.xlu0 %v2880, 56
        %v2888 = vpop.permute.xlu0 %2887
        %v2889 = vsel %vm429, %v2882, %v2884
        %v2890 = vsel %vm429, %v2884, %v2886
        %v2891 = vsel %vm429, %v2886, %v2888
        %v2897 = vmul.f32 %v2817, %v2882
        %v2898 = vmul.f32 %v2818, %v2889
        %v2899 = vmul.f32 %v2819, %v2890
        %v2900 = vmul.f32 %v2820, %v2891
        %v2901 = vmul.f32 %v2821, %v2888
        %v2902 = vpack.c.bf16 %v2898, %v2897
        %v2903 = vpack.c.bf16 %v2900, %v2899
        %v2904 = vpack.c.bf16 %v2901, %v2901
        %2908 = vrot.lane.b32.xlu0 %v2902, 72
        %v2909 = vpop.permute.xlu0 %2908
        %2910 = vrot.lane.b32.xlu0 %v2903, 72
        %v2911 = vpop.permute.xlu0 %2910
        %2912 = vrot.lane.b32.xlu0 %v2904, 72
        %v2913 = vpop.permute.xlu0 %2912
        %v2914 = vrot.slane %v2909, 4
        %v2915 = vrot.slane %v2911, 4
        %v2916 = vrot.slane %v2913, 4
        %v2917 = vsel %vm458, %v2914, %v2915
        %v2918 = vsel %vm460, %v2909, %v2917
        %v2919 = vsel %vm458, %v2915, %v2916
        %v2920 = vsel %vm460, %v2911, %v2919
        %2923 = vst [vmem:[#allocation3 + $0x130] sm:$0xff] %v2918
        %2924 = vst [vmem:[#allocation3 + $0x138] sm:$0xff] %v2920
        %2925 = vrot.lane.b32.xlu0 %v2837, 127
        %v2926 = vpop.permute.xlu0 %2925
        %2927 = vrot.lane.b32.xlu0 %v2838, 127
        %v2928 = vpop.permute.xlu0 %2927
        %2929 = vrot.lane.b32.xlu0 %v2839, 127
        %v2930 = vpop.permute.xlu0 %2929
        %2931 = vrot.lane.b32.xlu0 %v2840, 127
        %v2932 = vpop.permute.xlu0 %2931
        %v2933 = vsel %vm476, %v2930, %v2932
        %v2934 = vsel %vm476, %v2928, %v2930
        %v2935 = vsel %vm476, %v2926, %v2928
        %v2936 = vsel %vm476, %v2932, %v2926
        %v2937 = vld [vmem:[%s1278] ss:$8 sm:$0xf]
        %v2939 = vperm.slane %v2937, 0
        %v2940 = vperm.slane %v2937, 1
        %v2941 = vperm.slane %v2937, 2
        %v2942 = vperm.slane %v2937, 3
        %v2947 = vmul.f32 %v2935, %v2939
        %v2948 = vmul.f32 %v2934, %v2940
        %v2949 = vmul.f32 %v2933, %v2941
        %v2950 = vmul.f32 %v2936, %v2942
        %v2951 = vpack.c.bf16 %v2948, %v2947
        %v2952 = vpack.c.bf16 %v2950, %v2949
        %2953 = vst [vmem:[#allocation3 + $0x140] sm:$0xff] %v2951
        %2954 = vst [vmem:[#allocation3 + $0x148] sm:$0xff] %v2952
        %v2955 = vld [vmem:[#allocation2 + $0x8] sm:$0xff]
        %v2956 = vld [vmem:[#allocation2 + $0x10] sm:$0xff]
        %v2957 = vld [vmem:[#allocation2 + $0x18] sm:$0xff]
        %v2958 = vld [vmem:[#allocation2 + $0x20] sm:$0xff]
        %v2959 = vld [vmem:[#allocation2 + $0x28] sm:$0xff]
        %2965 = vrot.lane.b32.xlu0 %v2955, 64
        %v2966 = vpop.permute.xlu0 %2965
        %2967 = vrot.lane.b32.xlu0 %v2956, 64
        %v2968 = vpop.permute.xlu0 %2967
        %2969 = vrot.lane.b32.xlu0 %v2957, 64
        %v2970 = vpop.permute.xlu0 %2969
        %2971 = vrot.lane.b32.xlu0 %v2958, 64
        %v2972 = vpop.permute.xlu0 %2971
        %2973 = vrot.lane.b32.xlu0 %v2959, 64
        %v2974 = vpop.permute.xlu0 %2973
        %v2975 = vsel %vm520, %v2966, %v2968
        %v2976 = vsel %vm520, %v2968, %v2970
        %v2977 = vsel %vm520, %v2970, %v2972
        %v2978 = vsel %vm520, %v2972, %v2974
        %2983 = vrot.lane.b32.xlu0 %v2975, 1
        %v2984 = vpop.permute.xlu0 %2983
        %2985 = vrot.lane.b32.xlu0 %v2976, 1
        %v2986 = vpop.permute.xlu0 %2985
        %2987 = vrot.lane.b32.xlu0 %v2977, 1
        %v2988 = vpop.permute.xlu0 %2987
        %2989 = vrot.lane.b32.xlu0 %v2978, 1
        %v2990 = vpop.permute.xlu0 %2989
        %v2991 = vsel %vm391, %v2988, %v2990
        %v2992 = vsel %vm391, %v2986, %v2988
        %v2993 = vsel %vm391, %v2984, %v2986
        %v2994 = vsel %vm391, %v2990, %v2984
        %v2995 = vld [vmem:[%s1337] ss:$8 sm:$0xf]
        %v2997 = vperm.slane %v2995, 0
        %v2998 = vperm.slane %v2995, 1
        %v2999 = vperm.slane %v2995, 2
        %v3000 = vperm.slane %v2995, 3
        %v3005 = vmul.f32 %v2994, %v2997
        %v3006 = vmul.f32 %v2993, %v2998
        %v3007 = vmul.f32 %v2992, %v2999
        %v3008 = vmul.f32 %v2991, %v3000
        %v3009 = vpack.c.bf16 %v3006, %v3005
        %v3010 = vpack.c.bf16 %v3008, %v3007
        %3011 = vst [vmem:[#allocation3 + $0x150] sm:$0xff] %v3009
        %3012 = vst [vmem:[#allocation3 + $0x158] sm:$0xff] %v3010
        %v3013 = vld [vmem:[%s1356] ss:$8 sm:$0xf]
        %v3015 = vperm.slane %v3013, 0
        %v3016 = vperm.slane %v3013, 1
        %v3017 = vperm.slane %v3013, 2
        %v3018 = vperm.slane %v3013, 3
        %3019 = vrot.lane.b32.xlu0 %v3015, 64
        %v3020 = vpop.permute.xlu0 %3019
        %3021 = vrot.lane.b32.xlu0 %v3016, 64
        %v3022 = vpop.permute.xlu0 %3021
        %3023 = vrot.lane.b32.xlu0 %v3017, 64
        %v3024 = vpop.permute.xlu0 %3023
        %3025 = vrot.lane.b32.xlu0 %v3018, 64
        %v3026 = vpop.permute.xlu0 %3025
        %v3027 = vsel %vm520, %v3020, %v3022
        %v3028 = vsel %vm520, %v3022, %v3024
        %v3029 = vsel %vm520, %v3024, %v3026
        %v3035 = vmul.f32 %v2955, %v3020
        %v3036 = vmul.f32 %v2956, %v3027
        %v3037 = vmul.f32 %v2957, %v3028
        %v3038 = vmul.f32 %v2958, %v3029
        %v3039 = vmul.f32 %v2959, %v3026
        %v3040 = vpack.c.bf16 %v3036, %v3035
        %v3041 = vpack.c.bf16 %v3038, %v3037
        %v3042 = vpack.c.bf16 %v3039, %v3039
        %3046 = vrot.lane.b32.xlu0 %v3040, 64
        %v3047 = vpop.permute.xlu0 %3046
        %3048 = vrot.lane.b32.xlu0 %v3041, 64
        %v3049 = vpop.permute.xlu0 %3048
        %3050 = vrot.lane.b32.xlu0 %v3042, 64
        %v3051 = vpop.permute.xlu0 %3050
        %v3052 = vrot.slane %v3047, 4
        %v3053 = vrot.slane %v3049, 4
        %v3054 = vrot.slane %v3051, 4
        %v3055 = vsel %vm458, %v3052, %v3053
        %v3056 = vsel %vm604, %v3047, %v3055
        %v3057 = vsel %vm458, %v3053, %v3054
        %v3058 = vsel %vm604, %v3049, %v3057
        %3061 = vst [vmem:[#allocation3 + $0x160] sm:$0xff] %v3056
        %3062 = vst [vmem:[#allocation3 + $0x168] sm:$0xff] %v3058
        %3063 = vrot.lane.b32.xlu0 %v2975, 127
        %v3064 = vpop.permute.xlu0 %3063
        %3065 = vrot.lane.b32.xlu0 %v2976, 127
        %v3066 = vpop.permute.xlu0 %3065
        %3067 = vrot.lane.b32.xlu0 %v2977, 127
        %v3068 = vpop.permute.xlu0 %3067
        %3069 = vrot.lane.b32.xlu0 %v2978, 127
        %v3070 = vpop.permute.xlu0 %3069
        %v3071 = vsel %vm476, %v3068, %v3070
        %v3072 = vsel %vm476, %v3066, %v3068
        %v3073 = vsel %vm476, %v3064, %v3066
        %v3074 = vsel %vm476, %v3070, %v3064
        %v3075 = vld [vmem:[%s1419] ss:$8 sm:$0xf]
        %v3077 = vperm.slane %v3075, 0
        %v3078 = vperm.slane %v3075, 1
        %v3079 = vperm.slane %v3075, 2
        %v3080 = vperm.slane %v3075, 3
        %v3085 = vmul.f32 %v3073, %v3077
        %v3086 = vmul.f32 %v3072, %v3078
        %v3087 = vmul.f32 %v3071, %v3079
        %v3088 = vmul.f32 %v3074, %v3080
        %v3089 = vpack.c.bf16 %v3086, %v3085
        %v3090 = vpack.c.bf16 %v3088, %v3087
        %3091 = vst [vmem:[#allocation3 + $0x170] sm:$0xff] %v3089
        %3092 = vst [vmem:[#allocation3 + $0x178] sm:$0xff] %v3090
        %v3093 = vld [vmem:[#allocation2 + $0x8] sm:$0xff]
        %v3094 = vld [vmem:[#allocation2 + $0x10] sm:$0xff]
        %v3095 = vld [vmem:[#allocation2 + $0x18] sm:$0xff]
        %v3096 = vld [vmem:[#allocation2 + $0x20] sm:$0xff]
        %v3097 = vld [vmem:[#allocation2 + $0x28] sm:$0xff]
        %3103 = vrot.lane.b32.xlu0 %v3093, 56
        %v3104 = vpop.permute.xlu0 %3103
        %3105 = vrot.lane.b32.xlu0 %v3094, 56
        %v3106 = vpop.permute.xlu0 %3105
        %3107 = vrot.lane.b32.xlu0 %v3095, 56
        %v3108 = vpop.permute.xlu0 %3107
        %3109 = vrot.lane.b32.xlu0 %v3096, 56
        %v3110 = vpop.permute.xlu0 %3109
        %3111 = vrot.lane.b32.xlu0 %v3097, 56
        %v3112 = vpop.permute.xlu0 %3111
        %v3113 = vsel %vm429, %v3104, %v3106
        %v3114 = vsel %vm429, %v3106, %v3108
        %v3115 = vsel %vm429, %v3108, %v3110
        %v3116 = vsel %vm429, %v3110, %v3112
        %3121 = vrot.lane.b32.xlu0 %v3113, 1
        %v3122 = vpop.permute.xlu0 %3121
        %3123 = vrot.lane.b32.xlu0 %v3114, 1
        %v3124 = vpop.permute.xlu0 %3123
        %3125 = vrot.lane.b32.xlu0 %v3115, 1
        %v3126 = vpop.permute.xlu0 %3125
        %3127 = vrot.lane.b32.xlu0 %v3116, 1
        %v3128 = vpop.permute.xlu0 %3127
        %v3129 = vsel %vm391, %v3126, %v3128
        %v3130 = vsel %vm391, %v3124, %v3126
        %v3131 = vsel %vm391, %v3122, %v3124
        %v3132 = vsel %vm391, %v3128, %v3122
        %v3133 = vld [vmem:[%s1478] ss:$8 sm:$0xf]
        %v3135 = vperm.slane %v3133, 0
        %v3136 = vperm.slane %v3133, 1
        %v3137 = vperm.slane %v3133, 2
        %v3138 = vperm.slane %v3133, 3
        %v3143 = vmul.f32 %v3132, %v3135
        %v3144 = vmul.f32 %v3131, %v3136
        %v3145 = vmul.f32 %v3130, %v3137
        %v3146 = vmul.f32 %v3129, %v3138
        %v3147 = vpack.c.bf16 %v3144, %v3143
        %v3148 = vpack.c.bf16 %v3146, %v3145
        %3149 = vst [vmem:[#allocation3 + $0x180] sm:$0xff] %v3147
        %3150 = vst [vmem:[#allocation3 + $0x188] sm:$0xff] %v3148
        %v3151 = vld [vmem:[%s1497] ss:$8 sm:$0xf]
        %v3153 = vperm.slane %v3151, 0
        %v3154 = vperm.slane %v3151, 1
        %v3155 = vperm.slane %v3151, 2
        %v3156 = vperm.slane %v3151, 3
        %3157 = vrot.lane.b32.xlu0 %v3153, 72
        %v3158 = vpop.permute.xlu0 %3157
        %3159 = vrot.lane.b32.xlu0 %v3154, 72
        %v3160 = vpop.permute.xlu0 %3159
        %3161 = vrot.lane.b32.xlu0 %v3155, 72
        %v3162 = vpop.permute.xlu0 %3161
        %3163 = vrot.lane.b32.xlu0 %v3156, 72
        %v3164 = vpop.permute.xlu0 %3163
        %v3165 = vsel %vm372, %v3158, %v3160
        %v3166 = vsel %vm372, %v3160, %v3162
        %v3167 = vsel %vm372, %v3162, %v3164
        %v3173 = vmul.f32 %v3093, %v3158
        %v3174 = vmul.f32 %v3094, %v3165
        %v3175 = vmul.f32 %v3095, %v3166
        %v3176 = vmul.f32 %v3096, %v3167
        %v3177 = vmul.f32 %v3097, %v3164
        %v3178 = vpack.c.bf16 %v3174, %v3173
        %v3179 = vpack.c.bf16 %v3176, %v3175
        %v3180 = vpack.c.bf16 %v3177, %v3177
        %3184 = vrot.lane.b32.xlu0 %v3178, 56
        %v3185 = vpop.permute.xlu0 %3184
        %3186 = vrot.lane.b32.xlu0 %v3179, 56
        %v3187 = vpop.permute.xlu0 %3186
        %3188 = vrot.lane.b32.xlu0 %v3180, 56
        %v3189 = vpop.permute.xlu0 %3188
        %v3190 = vrot.slane %v3185, 4
        %v3191 = vrot.slane %v3187, 4
        %v3192 = vrot.slane %v3189, 4
        %v3193 = vsel %vm458, %v3190, %v3191
        %v3194 = vsel %vm746, %v3185, %v3193
        %v3195 = vsel %vm458, %v3191, %v3192
        %v3196 = vsel %vm746, %v3187, %v3195
        %3199 = vst [vmem:[#allocation3 + $0x190] sm:$0xff] %v3194
        %3200 = vst [vmem:[#allocation3 + $0x198] sm:$0xff] %v3196
        %3201 = vrot.lane.b32.xlu0 %v3113, 127
        %v3202 = vpop.permute.xlu0 %3201
        %3203 = vrot.lane.b32.xlu0 %v3114, 127
        %v3204 = vpop.permute.xlu0 %3203
        %3205 = vrot.lane.b32.xlu0 %v3115, 127
        %v3206 = vpop.permute.xlu0 %3205
        %3207 = vrot.lane.b32.xlu0 %v3116, 127
        %v3208 = vpop.permute.xlu0 %3207
        %v3209 = vsel %vm476, %v3206, %v3208
        %v3210 = vsel %vm476, %v3204, %v3206
        %v3211 = vsel %vm476, %v3202, %v3204
        %v3212 = vsel %vm476, %v3208, %v3202
        %v3213 = vld [vmem:[%s1560] ss:$8 sm:$0xf]
        %v3215 = vperm.slane %v3213, 0
        %v3216 = vperm.slane %v3213, 1
        %v3217 = vperm.slane %v3213, 2
        %v3218 = vperm.slane %v3213, 3
        %v3223 = vmul.f32 %v3211, %v3215
        %v3224 = vmul.f32 %v3210, %v3216
        %v3225 = vmul.f32 %v3209, %v3217
        %v3226 = vmul.f32 %v3212, %v3218
        %v3227 = vpack.c.bf16 %v3224, %v3223
        %v3228 = vpack.c.bf16 %v3226, %v3225
        %3229 = vst [vmem:[#allocation3 + $0x1a0] sm:$0xff] %v3227
        %3230 = vst [vmem:[#allocation3 + $0x1a8] sm:$0xff] %v3228
        %v3231 = vld [vmem:[%s4] sm:$0xff]
        %v3232 = vld [vmem:[#allocation3] sm:$0xff]
        %v3233 = vld [vmem:[#allocation3 + $0x8] sm:$0xff]
        %v3234 = vld [vmem:[#allocation3 + $0x10] sm:$0xff]
        %v3235 = vld [vmem:[#allocation3 + $0x18] sm:$0xff]
        %v3236 = vld [vmem:[#allocation3 + $0x20] sm:$0xff]
        %v3237 = vld [vmem:[#allocation3 + $0x28] sm:$0xff]
        %v3238 = vld [vmem:[#allocation3 + $0x30] sm:$0xff]
        %v3239 = vld [vmem:[#allocation3 + $0x38] sm:$0xff]
        %v3240 = vld [vmem:[#allocation3 + $0x40] sm:$0xff]
        %v3241 = vld [vmem:[#allocation3 + $0x48] sm:$0xff]
        %v3242 = vld [vmem:[#allocation3 + $0x50] sm:$0xff]
        %v3243 = vld [vmem:[#allocation3 + $0x58] sm:$0xff]
        %v3244 = vld [vmem:[#allocation3 + $0x60] sm:$0xff]
        %v3245 = vld [vmem:[#allocation3 + $0x68] sm:$0xff]
        %v3246 = vld [vmem:[#allocation3 + $0x70] sm:$0xff]
        %v3247 = vld [vmem:[#allocation3 + $0x78] sm:$0xff]
        %v3248 = vld [vmem:[#allocation3 + $0x80] sm:$0xff]
        %v3249 = vld [vmem:[#allocation3 + $0x88] sm:$0xff]
        %v3250 = vld [vmem:[#allocation3 + $0x90] sm:$0xff]
        %v3251 = vld [vmem:[#allocation3 + $0x98] sm:$0xff]
        %v3252 = vld [vmem:[#allocation3 + $0xa0] sm:$0xff]
        %v3253 = vld [vmem:[#allocation3 + $0xa8] sm:$0xff]
        %v3254 = vld [vmem:[#allocation3 + $0xb0] sm:$0xff]
        %v3255 = vld [vmem:[#allocation3 + $0xb8] sm:$0xff]
        %v3256 = vld [vmem:[#allocation3 + $0xc0] sm:$0xff]
        %v3257 = vld [vmem:[#allocation3 + $0xc8] sm:$0xff]
        %v3258 = vld [vmem:[#allocation3 + $0xd0] sm:$0xff]
        %v3259 = vld [vmem:[#allocation3 + $0xd8] sm:$0xff]
        %v3260 = vld [vmem:[#allocation3 + $0xe0] sm:$0xff]
        %v3261 = vld [vmem:[#allocation3 + $0xe8] sm:$0xff]
        %v3262 = vld [vmem:[#allocation3 + $0xf0] sm:$0xff]
        %v3263 = vld [vmem:[#allocation3 + $0xf8] sm:$0xff]
        %v3264 = vld [vmem:[#allocation3 + $0x100] sm:$0xff]
        %v3265 = vld [vmem:[#allocation3 + $0x108] sm:$0xff]
        %v3266 = vld [vmem:[#allocation3 + $0x110] sm:$0xff]
        %v3267 = vld [vmem:[#allocation3 + $0x118] sm:$0xff]
        %v3268 = vld [vmem:[#allocation3 + $0x120] sm:$0xff]
        %v3269 = vld [vmem:[#allocation3 + $0x128] sm:$0xff]
        %v3270 = vld [vmem:[#allocation3 + $0x130] sm:$0xff]
        %v3271 = vld [vmem:[#allocation3 + $0x138] sm:$0xff]
        %v3272 = vld [vmem:[#allocation3 + $0x140] sm:$0xff]
        %v3273 = vld [vmem:[#allocation3 + $0x148] sm:$0xff]
        %v3274 = vld [vmem:[#allocation3 + $0x150] sm:$0xff]
        %v3275 = vld [vmem:[#allocation3 + $0x158] sm:$0xff]
        %v3276 = vld [vmem:[#allocation3 + $0x160] sm:$0xff]
        %v3277 = vld [vmem:[#allocation3 + $0x168] sm:$0xff]
        %v3278 = vld [vmem:[#allocation3 + $0x170] sm:$0xff]
        %v3279 = vld [vmem:[#allocation3 + $0x178] sm:$0xff]
        %v3280 = vld [vmem:[#allocation3 + $0x180] sm:$0xff]
        %v3281 = vld [vmem:[#allocation3 + $0x188] sm:$0xff]
        %v3282 = vld [vmem:[#allocation3 + $0x190] sm:$0xff]
        %v3283 = vld [vmem:[#allocation3 + $0x198] sm:$0xff]
        %v3284 = vld [vmem:[#allocation3 + $0x1a0] sm:$0xff]
        %v3285 = vld [vmem:[#allocation3 + $0x1a8] sm:$0xff]
        %v3286 = vld [vmem:[%s5] sm:$0xff]
        %3288 = vset.pattern.permute.xlu0 0
        %3289 = vperm.xlu0 %3288, %v3286
        %v3290 = vpop.permute.xlu0 %3289
        %v3293 = vunpack.c.l.b16 %v3231
        %v3294 = vunpack.c.h.b16 %v3231
        %v3295 = vpack.c.b16 %v3293, %v3293
        %v3296 = vpack.c.b16 %v3294, %v3294
        %v3352 = vunpack.c.l.b16 %v3232
        %v3353 = vunpack.c.h.b16 %v3232
        %v3354 = vunpack.c.l.b16 %v3233
        %v3355 = vunpack.c.h.b16 %v3233
        %v3356 = vunpack.c.l.b16 %v3234
        %v3357 = vunpack.c.h.b16 %v3234
        %v3358 = vunpack.c.l.b16 %v3235
        %v3359 = vunpack.c.h.b16 %v3235
        %v3360 = vunpack.c.l.b16 %v3236
        %v3361 = vunpack.c.h.b16 %v3236
        %v3362 = vunpack.c.l.b16 %v3237
        %v3363 = vunpack.c.h.b16 %v3237
        %v3364 = vunpack.c.l.b16 %v3238
        %v3365 = vunpack.c.h.b16 %v3238
        %v3366 = vunpack.c.l.b16 %v3239
        %v3367 = vunpack.c.h.b16 %v3239
        %v3368 = vunpack.c.l.b16 %v3240
        %v3369 = vunpack.c.h.b16 %v3240
        %v3370 = vunpack.c.l.b16 %v3241
        %v3371 = vunpack.c.h.b16 %v3241
        %v3372 = vunpack.c.l.b16 %v3242
        %v3373 = vunpack.c.h.b16 %v3242
        %v3374 = vunpack.c.l.b16 %v3243
        %v3375 = vunpack.c.h.b16 %v3243
        %v3376 = vunpack.c.l.b16 %v3244
        %v3377 = vunpack.c.h.b16 %v3244
        %v3378 = vunpack.c.l.b16 %v3245
        %v3379 = vunpack.c.h.b16 %v3245
        %v3380 = vunpack.c.l.b16 %v3246
        %v3381 = vunpack.c.h.b16 %v3246
        %v3382 = vunpack.c.l.b16 %v3247
        %v3383 = vunpack.c.h.b16 %v3247
        %v3384 = vunpack.c.l.b16 %v3248
        %v3385 = vunpack.c.h.b16 %v3248
        %v3386 = vunpack.c.l.b16 %v3249
        %v3387 = vunpack.c.h.b16 %v3249
        %v3388 = vunpack.c.l.b16 %v3250
        %v3389 = vunpack.c.h.b16 %v3250
        %v3390 = vunpack.c.l.b16 %v3251
        %v3391 = vunpack.c.h.b16 %v3251
        %v3392 = vunpack.c.l.b16 %v3252
        %v3393 = vunpack.c.h.b16 %v3252
        %v3394 = vunpack.c.l.b16 %v3253
        %v3395 = vunpack.c.h.b16 %v3253
        %v3396 = vunpack.c.l.b16 %v3254
        %v3397 = vunpack.c.h.b16 %v3254
        %v3398 = vunpack.c.l.b16 %v3255
        %v3399 = vunpack.c.h.b16 %v3255
        %v3400 = vunpack.c.l.b16 %v3256
        %v3401 = vunpack.c.h.b16 %v3256
        %v3402 = vunpack.c.l.b16 %v3257
        %v3403 = vunpack.c.h.b16 %v3257
        %v3404 = vunpack.c.l.b16 %v3258
        %v3405 = vunpack.c.h.b16 %v3258
        %v3406 = vunpack.c.l.b16 %v3259
        %v3407 = vunpack.c.h.b16 %v3259
        %v3408 = vunpack.c.l.b16 %v3260
        %v3409 = vunpack.c.h.b16 %v3260
        %v3410 = vunpack.c.l.b16 %v3261
        %v3411 = vunpack.c.h.b16 %v3261
        %v3412 = vunpack.c.l.b16 %v3262
        %v3413 = vunpack.c.h.b16 %v3262
        %v3414 = vunpack.c.l.b16 %v3263
        %v3415 = vunpack.c.h.b16 %v3263
        %v3416 = vunpack.c.l.b16 %v3264
        %v3417 = vunpack.c.h.b16 %v3264
        %v3418 = vunpack.c.l.b16 %v3265
        %v3419 = vunpack.c.h.b16 %v3265
        %v3420 = vunpack.c.l.b16 %v3266
        %v3421 = vunpack.c.h.b16 %v3266
        %v3422 = vunpack.c.l.b16 %v3267
        %v3423 = vunpack.c.h.b16 %v3267
        %v3424 = vunpack.c.l.b16 %v3268
        %v3425 = vunpack.c.h.b16 %v3268
        %v3426 = vunpack.c.l.b16 %v3269
        %v3427 = vunpack.c.h.b16 %v3269
        %v3428 = vunpack.c.l.b16 %v3270
        %v3429 = vunpack.c.h.b16 %v3270
        %v3430 = vunpack.c.l.b16 %v3271
        %v3431 = vunpack.c.h.b16 %v3271
        %v3432 = vunpack.c.l.b16 %v3272
        %v3433 = vunpack.c.h.b16 %v3272
        %v3434 = vunpack.c.l.b16 %v3273
        %v3435 = vunpack.c.h.b16 %v3273
        %v3436 = vunpack.c.l.b16 %v3274
        %v3437 = vunpack.c.h.b16 %v3274
        %v3438 = vunpack.c.l.b16 %v3275
        %v3439 = vunpack.c.h.b16 %v3275
        %v3440 = vunpack.c.l.b16 %v3276
        %v3441 = vunpack.c.h.b16 %v3276
        %v3442 = vunpack.c.l.b16 %v3277
        %v3443 = vunpack.c.h.b16 %v3277
        %v3444 = vunpack.c.l.b16 %v3278
        %v3445 = vunpack.c.h.b16 %v3278
        %v3446 = vunpack.c.l.b16 %v3279
        %v3447 = vunpack.c.h.b16 %v3279
        %v3448 = vunpack.c.l.b16 %v3280
        %v3449 = vunpack.c.h.b16 %v3280
        %v3450 = vunpack.c.l.b16 %v3281
        %v3451 = vunpack.c.h.b16 %v3281
        %v3452 = vunpack.c.l.b16 %v3282
        %v3453 = vunpack.c.h.b16 %v3282
        %v3454 = vunpack.c.l.b16 %v3283
        %v3455 = vunpack.c.h.b16 %v3283
        %v3456 = vunpack.c.l.b16 %v3284
        %v3457 = vunpack.c.h.b16 %v3284
        %v3458 = vunpack.c.l.b16 %v3285
        %v3459 = vunpack.c.h.b16 %v3285
        %v3460 = vpack.c.b16 %v3356, %v3352
        %v3461 = vpack.c.b16 %v3357, %v3353
        %v3462 = vpack.c.b16 %v3358, %v3354
        %v3463 = vpack.c.b16 %v3359, %v3355
        %v3464 = vpack.c.b16 %v3364, %v3360
        %v3465 = vpack.c.b16 %v3365, %v3361
        %v3466 = vpack.c.b16 %v3366, %v3362
        %v3467 = vpack.c.b16 %v3367, %v3363
        %v3468 = vpack.c.b16 %v3372, %v3368
        %v3469 = vpack.c.b16 %v3373, %v3369
        %v3470 = vpack.c.b16 %v3374, %v3370
        %v3471 = vpack.c.b16 %v3375, %v3371
        %v3472 = vpack.c.b16 %v3380, %v3376
        %v3473 = vpack.c.b16 %v3381, %v3377
        %v3474 = vpack.c.b16 %v3382, %v3378
        %v3475 = vpack.c.b16 %v3383, %v3379
        %v3476 = vpack.c.b16 %v3388, %v3384
        %v3477 = vpack.c.b16 %v3389, %v3385
        %v3478 = vpack.c.b16 %v3390, %v3386
        %v3479 = vpack.c.b16 %v3391, %v3387
        %v3480 = vpack.c.b16 %v3396, %v3392
        %v3481 = vpack.c.b16 %v3397, %v3393
        %v3482 = vpack.c.b16 %v3398, %v3394
        %v3483 = vpack.c.b16 %v3399, %v3395
        %v3484 = vpack.c.b16 %v3404, %v3400
        %v3485 = vpack.c.b16 %v3405, %v3401
        %v3486 = vpack.c.b16 %v3406, %v3402
        %v3487 = vpack.c.b16 %v3407, %v3403
        %v3488 = vpack.c.b16 %v3412, %v3408
        %v3489 = vpack.c.b16 %v3413, %v3409
        %v3490 = vpack.c.b16 %v3414, %v3410
        %v3491 = vpack.c.b16 %v3415, %v3411
        %v3492 = vpack.c.b16 %v3420, %v3416
        %v3493 = vpack.c.b16 %v3421, %v3417
        %v3494 = vpack.c.b16 %v3422, %v3418
        %v3495 = vpack.c.b16 %v3423, %v3419
        %v3496 = vpack.c.b16 %v3428, %v3424
        %v3497 = vpack.c.b16 %v3429, %v3425
        %v3498 = vpack.c.b16 %v3430, %v3426
        %v3499 = vpack.c.b16 %v3431, %v3427
        %v3500 = vpack.c.b16 %v3436, %v3432
        %v3501 = vpack.c.b16 %v3437, %v3433
        %v3502 = vpack.c.b16 %v3438, %v3434
        %v3503 = vpack.c.b16 %v3439, %v3435
        %v3504 = vpack.c.b16 %v3444, %v3440
        %v3505 = vpack.c.b16 %v3445, %v3441
        %v3506 = vpack.c.b16 %v3446, %v3442
        %v3507 = vpack.c.b16 %v3447, %v3443
        %v3508 = vpack.c.b16 %v3452, %v3448
        %v3509 = vpack.c.b16 %v3453, %v3449
        %v3510 = vpack.c.b16 %v3454, %v3450
        %v3511 = vpack.c.b16 %v3455, %v3451
        %v3512 = vpack.c.b16 %v3456, %v3456
        %v3513 = vpack.c.b16 %v3457, %v3457
        %v3514 = vpack.c.b16 %v3458, %v3458
        %v3515 = vpack.c.b16 %v3459, %v3459
        %v3569 = vsel %vm1916, %v3296, 0
        %v3572 = vsel %vm1920, %v3512, 0
        %v3575 = vsel %vm1920, %v3513, 0
        %v3578 = vsel %vm1920, %v3514, 0
        %v3581 = vsel %vm1920, %v3515, 0
        %3583 = vmatpush.bf16.msra.mxu0 %v3488
        %3584 = vmatpush.bf16.msra.mxu0 %v3484
        %3585 = vmatpush.bf16.msra.mxu0 %v3480
        %3586 = vmatpush.bf16.msra.mxu0 %v3476
        %3587 = vmatpush.bf16.msra.mxu0 %v3472
        %3588 = vmatpush.bf16.msra.mxu0 %v3468
        %3589 = vmatpush.bf16.msra.mxu0 %v3464
        %3590 = vmatpush.bf16.msra.mxu0 %v3460
        %3591 = vmatmul.bf16.gmra.mxu0 %v3295
        %v3592 = vpop.f32.mrf.mxu0
        %v3593 = vadd.f32 %v3290, %v3592
        %v3594 = vpop.f32.mrf.mxu0
        %3595 = vdwg.mxu0
        %3596 = vmatpush.bf16.msra.mxu0 0
        %3597 = vmatpush.bf16.msra.mxu0 0
        %3598 = vmatpush.bf16.msra.mxu0 %v3572
        %3599 = vmatpush.bf16.msra.mxu0 %v3508
        %3600 = vmatpush.bf16.msra.mxu0 %v3504
        %3601 = vmatpush.bf16.msra.mxu0 %v3500
        %3602 = vmatpush.bf16.msra.mxu0 %v3496
        %3603 = vmatpush.bf16.msra.mxu0 %v3492
        %3604 = vmatmul.bf16.gmra.mxu0 %v3569
        %v3605 = vpop.f32.mrf.mxu0
        %v3606 = vadd.f32 %v3593, %v3605
        %v3607 = vpop.f32.mrf.mxu0
        %3608 = vdwg.mxu0
        %3609 = vmatpush.bf16.msra.mxu0 %v3489
        %3610 = vmatpush.bf16.msra.mxu0 %v3485
        %3611 = vmatpush.bf16.msra.mxu0 %v3481
        %3612 = vmatpush.bf16.msra.mxu0 %v3477
        %3613 = vmatpush.bf16.msra.mxu0 %v3473
        %3614 = vmatpush.bf16.msra.mxu0 %v3469
        %3615 = vmatpush.bf16.msra.mxu0 %v3465
        %3616 = vmatpush.bf16.msra.mxu0 %v3461
        %3617 = vmatmul.bf16.gmra.mxu0 %v3295
        %v3618 = vpop.f32.mrf.mxu0
        %v3619 = vadd.f32 %v3290, %v3618
        %v3620 = vpop.f32.mrf.mxu0
        %3621 = vdwg.mxu0
        %3622 = vmatpush.bf16.msra.mxu0 0
        %3623 = vmatpush.bf16.msra.mxu0 0
        %3624 = vmatpush.bf16.msra.mxu0 %v3575
        %3625 = vmatpush.bf16.msra.mxu0 %v3509
        %3626 = vmatpush.bf16.msra.mxu0 %v3505
        %3627 = vmatpush.bf16.msra.mxu0 %v3501
        %3628 = vmatpush.bf16.msra.mxu0 %v3497
        %3629 = vmatpush.bf16.msra.mxu0 %v3493
        %3630 = vmatmul.bf16.gmra.mxu0 %v3569
        %v3631 = vpop.f32.mrf.mxu0
        %v3632 = vadd.f32 %v3619, %v3631
        %v3633 = vpop.f32.mrf.mxu0
        %3634 = vdwg.mxu0
        %3635 = vmatpush.bf16.msra.mxu0 %v3490
        %3636 = vmatpush.bf16.msra.mxu0 %v3486
        %3637 = vmatpush.bf16.msra.mxu0 %v3482
        %3638 = vmatpush.bf16.msra.mxu0 %v3478
        %3639 = vmatpush.bf16.msra.mxu0 %v3474
        %3640 = vmatpush.bf16.msra.mxu0 %v3470
        %3641 = vmatpush.bf16.msra.mxu0 %v3466
        %3642 = vmatpush.bf16.msra.mxu0 %v3462
        %3643 = vmatmul.bf16.gmra.mxu0 %v3295
        %v3644 = vpop.f32.mrf.mxu0
        %v3645 = vadd.f32 %v3290, %v3644
        %v3646 = vpop.f32.mrf.mxu0
        %3647 = vdwg.mxu0
        %3648 = vmatpush.bf16.msra.mxu0 0
        %3649 = vmatpush.bf16.msra.mxu0 0
        %3650 = vmatpush.bf16.msra.mxu0 %v3578
        %3651 = vmatpush.bf16.msra.mxu0 %v3510
        %3652 = vmatpush.bf16.msra.mxu0 %v3506
        %3653 = vmatpush.bf16.msra.mxu0 %v3502
        %3654 = vmatpush.bf16.msra.mxu0 %v3498
        %3655 = vmatpush.bf16.msra.mxu0 %v3494
        %3656 = vmatmul.bf16.gmra.mxu0 %v3569
        %v3657 = vpop.f32.mrf.mxu0
        %v3658 = vadd.f32 %v3645, %v3657
        %v3659 = vpop.f32.mrf.mxu0
        %3660 = vdwg.mxu0
        %3661 = vmatpush.bf16.msra.mxu0 %v3491
        %3662 = vmatpush.bf16.msra.mxu0 %v3487
        %3663 = vmatpush.bf16.msra.mxu0 %v3483
        %3664 = vmatpush.bf16.msra.mxu0 %v3479
        %3665 = vmatpush.bf16.msra.mxu0 %v3475
        %3666 = vmatpush.bf16.msra.mxu0 %v3471
        %3667 = vmatpush.bf16.msra.mxu0 %v3467
        %3668 = vmatpush.bf16.msra.mxu0 %v3463
        %3669 = vmatmul.bf16.gmra.mxu0 %v3295
        %v3670 = vpop.f32.mrf.mxu0
        %v3671 = vadd.f32 %v3290, %v3670
        %v3672 = vpop.f32.mrf.mxu0
        %3673 = vdwg.mxu0
        %3674 = vmatpush.bf16.msra.mxu0 0
        %3675 = vmatpush.bf16.msra.mxu0 0
        %3676 = vmatpush.bf16.msra.mxu0 %v3581
        %3677 = vmatpush.bf16.msra.mxu0 %v3511
        %3678 = vmatpush.bf16.msra.mxu0 %v3507
        %3679 = vmatpush.bf16.msra.mxu0 %v3503
        %3680 = vmatpush.bf16.msra.mxu0 %v3499
        %3681 = vmatpush.bf16.msra.mxu0 %v3495
        %3682 = vmatmul.bf16.gmra.mxu0 %v3569
        %v3683 = vpop.f32.mrf.mxu0
        %v3684 = vadd.f32 %v3671, %v3683
        %v3685 = vpop.f32.mrf.mxu0
        %3686 = vdwg.mxu0
        %v3687 = vmax.f32 %v3606, 0.0
        %v3688 = vmax.f32 %v3632, 0.0
        %v3689 = vmax.f32 %v3658, 0.0
        %v3690 = vmax.f32 %v3684, 0.0
        %3691 = vst [vmem:[#allocation2 + $0x8] sm:$0xff] %v3687
        %3692 = vst [vmem:[#allocation2 + $0x10] sm:$0xff] %v3688
        %3693 = vst [vmem:[#allocation2 + $0x18] sm:$0xff] %v3689
        %3694 = vst [vmem:[#allocation2 + $0x20] sm:$0xff] %v3690
        %v3695 = vld [vmem:[#allocation2] sm:$0xff]
        %v3696 = vld [vmem:[#allocation2 + $0x8] sm:$0xff]
        %v3697 = vld [vmem:[#allocation2 + $0x10] sm:$0xff]
        %v3698 = vld [vmem:[#allocation2 + $0x18] sm:$0xff]
        %v3699 = vld [vmem:[#allocation2 + $0x20] sm:$0xff]
        %3705 = vrot.lane.b32.xlu0 %v3695, 72
        %v3706 = vpop.permute.xlu0 %3705
        %3707 = vrot.lane.b32.xlu0 %v3696, 72
        %v3708 = vpop.permute.xlu0 %3707
        %3709 = vrot.lane.b32.xlu0 %v3697, 72
        %v3710 = vpop.permute.xlu0 %3709
        %3711 = vrot.lane.b32.xlu0 %v3698, 72
        %v3712 = vpop.permute.xlu0 %3711
        %3713 = vrot.lane.b32.xlu0 %v3699, 72
        %v3714 = vpop.permute.xlu0 %3713
        %v3715 = vsel %vm372, %v3706, %v3708
        %v3716 = vsel %vm372, %v3708, %v3710
        %v3717 = vsel %vm372, %v3710, %v3712
        %v3718 = vsel %vm372, %v3712, %v3714
        %3723 = vrot.lane.b32.xlu0 %v3715, 1
        %v3724 = vpop.permute.xlu0 %3723
        %3725 = vrot.lane.b32.xlu0 %v3716, 1
        %v3726 = vpop.permute.xlu0 %3725
        %3727 = vrot.lane.b32.xlu0 %v3717, 1
        %v3728 = vpop.permute.xlu0 %3727
        %3729 = vrot.lane.b32.xlu0 %v3718, 1
        %v3730 = vpop.permute.xlu0 %3729
        %v3731 = vsel %vm391, %v3728, %v3730
        %v3732 = vsel %vm391, %v3726, %v3728
        %v3733 = vsel %vm391, %v3724, %v3726
        %v3734 = vsel %vm391, %v3730, %v3724
        %v3735 = vld [vmem:[#allocation7] ss:$8 sm:$0xf]
        %v3737 = vperm.slane %v3735, 0
        %v3738 = vperm.slane %v3735, 1
        %v3739 = vperm.slane %v3735, 2
        %v3740 = vperm.slane %v3735, 3
        %v3745 = vmul.f32 %v3734, %v3737
        %v3746 = vmul.f32 %v3733, %v3738
        %v3747 = vmul.f32 %v3732, %v3739
        %v3748 = vmul.f32 %v3731, %v3740
        %v3749 = vpack.c.bf16 %v3746, %v3745
        %v3750 = vpack.c.bf16 %v3748, %v3747
        %3751 = vst [vmem:[#allocation3] sm:$0xff] %v3749
        %3752 = vst [vmem:[#allocation3 + $0x8] sm:$0xff] %v3750
        %v3753 = vld [vmem:[%s414] ss:$8 sm:$0xf]
        %v3755 = vperm.slane %v3753, 0
        %v3756 = vperm.slane %v3753, 1
        %v3757 = vperm.slane %v3753, 2
        %v3758 = vperm.slane %v3753, 3
        %3759 = vrot.lane.b32.xlu0 %v3755, 56
        %v3760 = vpop.permute.xlu0 %3759
        %3761 = vrot.lane.b32.xlu0 %v3756, 56
        %v3762 = vpop.permute.xlu0 %3761
        %3763 = vrot.lane.b32.xlu0 %v3757, 56
        %v3764 = vpop.permute.xlu0 %3763
        %3765 = vrot.lane.b32.xlu0 %v3758, 56
        %v3766 = vpop.permute.xlu0 %3765
        %v3767 = vsel %vm429, %v3760, %v3762
        %v3768 = vsel %vm429, %v3762, %v3764
        %v3769 = vsel %vm429, %v3764, %v3766
        %v3775 = vmul.f32 %v3695, %v3760
        %v3776 = vmul.f32 %v3696, %v3767
        %v3777 = vmul.f32 %v3697, %v3768
        %v3778 = vmul.f32 %v3698, %v3769
        %v3779 = vmul.f32 %v3699, %v3766
        %v3780 = vpack.c.bf16 %v3776, %v3775
        %v3781 = vpack.c.bf16 %v3778, %v3777
        %v3782 = vpack.c.bf16 %v3779, %v3779
        %3786 = vrot.lane.b32.xlu0 %v3780, 72
        %v3787 = vpop.permute.xlu0 %3786
        %3788 = vrot.lane.b32.xlu0 %v3781, 72
        %v3789 = vpop.permute.xlu0 %3788
        %3790 = vrot.lane.b32.xlu0 %v3782, 72
        %v3791 = vpop.permute.xlu0 %3790
        %v3792 = vrot.slane %v3787, 4
        %v3793 = vrot.slane %v3789, 4
        %v3794 = vrot.slane %v3791, 4
        %v3795 = vsel %vm458, %v3792, %v3793
        %v3796 = vsel %vm460, %v3787, %v3795
        %v3797 = vsel %vm458, %v3793, %v3794
        %v3798 = vsel %vm460, %v3789, %v3797
        %3801 = vst [vmem:[#allocation3 + $0x10] sm:$0xff] %v3796
        %3802 = vst [vmem:[#allocation3 + $0x18] sm:$0xff] %v3798
        %3803 = vrot.lane.b32.xlu0 %v3715, 127
        %v3804 = vpop.permute.xlu0 %3803
        %3805 = vrot.lane.b32.xlu0 %v3716, 127
        %v3806 = vpop.permute.xlu0 %3805
        %3807 = vrot.lane.b32.xlu0 %v3717, 127
        %v3808 = vpop.permute.xlu0 %3807
        %3809 = vrot.lane.b32.xlu0 %v3718, 127
        %v3810 = vpop.permute.xlu0 %3809
        %v3811 = vsel %vm476, %v3808, %v3810
        %v3812 = vsel %vm476, %v3806, %v3808
        %v3813 = vsel %vm476, %v3804, %v3806
        %v3814 = vsel %vm476, %v3810, %v3804
        %v3815 = vld [vmem:[%s481] ss:$8 sm:$0xf]
        %v3817 = vperm.slane %v3815, 0
        %v3818 = vperm.slane %v3815, 1
        %v3819 = vperm.slane %v3815, 2
        %v3820 = vperm.slane %v3815, 3
        %v3825 = vmul.f32 %v3813, %v3817
        %v3826 = vmul.f32 %v3812, %v3818
        %v3827 = vmul.f32 %v3811, %v3819
        %v3828 = vmul.f32 %v3814, %v3820
        %v3829 = vpack.c.bf16 %v3826, %v3825
        %v3830 = vpack.c.bf16 %v3828, %v3827
        %3831 = vst [vmem:[#allocation3 + $0x20] sm:$0xff] %v3829
        %3832 = vst [vmem:[#allocation3 + $0x28] sm:$0xff] %v3830
        %v3833 = vld [vmem:[#allocation2] sm:$0xff]
        %v3834 = vld [vmem:[#allocation2 + $0x8] sm:$0xff]
        %v3835 = vld [vmem:[#allocation2 + $0x10] sm:$0xff]
        %v3836 = vld [vmem:[#allocation2 + $0x18] sm:$0xff]
        %v3837 = vld [vmem:[#allocation2 + $0x20] sm:$0xff]
        %3843 = vrot.lane.b32.xlu0 %v3833, 64
        %v3844 = vpop.permute.xlu0 %3843
        %3845 = vrot.lane.b32.xlu0 %v3834, 64
        %v3846 = vpop.permute.xlu0 %3845
        %3847 = vrot.lane.b32.xlu0 %v3835, 64
        %v3848 = vpop.permute.xlu0 %3847
        %3849 = vrot.lane.b32.xlu0 %v3836, 64
        %v3850 = vpop.permute.xlu0 %3849
        %3851 = vrot.lane.b32.xlu0 %v3837, 64
        %v3852 = vpop.permute.xlu0 %3851
        %v3853 = vsel %vm520, %v3844, %v3846
        %v3854 = vsel %vm520, %v3846, %v3848
        %v3855 = vsel %vm520, %v3848, %v3850
        %v3856 = vsel %vm520, %v3850, %v3852
        %3861 = vrot.lane.b32.xlu0 %v3853, 1
        %v3862 = vpop.permute.xlu0 %3861
        %3863 = vrot.lane.b32.xlu0 %v3854, 1
        %v3864 = vpop.permute.xlu0 %3863
        %3865 = vrot.lane.b32.xlu0 %v3855, 1
        %v3866 = vpop.permute.xlu0 %3865
        %3867 = vrot.lane.b32.xlu0 %v3856, 1
        %v3868 = vpop.permute.xlu0 %3867
        %v3869 = vsel %vm391, %v3866, %v3868
        %v3870 = vsel %vm391, %v3864, %v3866
        %v3871 = vsel %vm391, %v3862, %v3864
        %v3872 = vsel %vm391, %v3868, %v3862
        %v3873 = vld [vmem:[%s541] ss:$8 sm:$0xf]
        %v3875 = vperm.slane %v3873, 0
        %v3876 = vperm.slane %v3873, 1
        %v3877 = vperm.slane %v3873, 2
        %v3878 = vperm.slane %v3873, 3
        %v3883 = vmul.f32 %v3872, %v3875
        %v3884 = vmul.f32 %v3871, %v3876
        %v3885 = vmul.f32 %v3870, %v3877
        %v3886 = vmul.f32 %v3869, %v3878
        %v3887 = vpack.c.bf16 %v3884, %v3883
        %v3888 = vpack.c.bf16 %v3886, %v3885
        %3889 = vst [vmem:[#allocation3 + $0x30] sm:$0xff] %v3887
        %3890 = vst [vmem:[#allocation3 + $0x38] sm:$0xff] %v3888
        %v3891 = vld [vmem:[%s560] ss:$8 sm:$0xf]
        %v3893 = vperm.slane %v3891, 0
        %v3894 = vperm.slane %v3891, 1
        %v3895 = vperm.slane %v3891, 2
        %v3896 = vperm.slane %v3891, 3
        %3897 = vrot.lane.b32.xlu0 %v3893, 64
        %v3898 = vpop.permute.xlu0 %3897
        %3899 = vrot.lane.b32.xlu0 %v3894, 64
        %v3900 = vpop.permute.xlu0 %3899
        %3901 = vrot.lane.b32.xlu0 %v3895, 64
        %v3902 = vpop.permute.xlu0 %3901
        %3903 = vrot.lane.b32.xlu0 %v3896, 64
        %v3904 = vpop.permute.xlu0 %3903
        %v3905 = vsel %vm520, %v3898, %v3900
        %v3906 = vsel %vm520, %v3900, %v3902
        %v3907 = vsel %vm520, %v3902, %v3904
        %v3913 = vmul.f32 %v3833, %v3898
        %v3914 = vmul.f32 %v3834, %v3905
        %v3915 = vmul.f32 %v3835, %v3906
        %v3916 = vmul.f32 %v3836, %v3907
        %v3917 = vmul.f32 %v3837, %v3904
        %v3918 = vpack.c.bf16 %v3914, %v3913
        %v3919 = vpack.c.bf16 %v3916, %v3915
        %v3920 = vpack.c.bf16 %v3917, %v3917
        %3924 = vrot.lane.b32.xlu0 %v3918, 64
        %v3925 = vpop.permute.xlu0 %3924
        %3926 = vrot.lane.b32.xlu0 %v3919, 64
        %v3927 = vpop.permute.xlu0 %3926
        %3928 = vrot.lane.b32.xlu0 %v3920, 64
        %v3929 = vpop.permute.xlu0 %3928
        %v3930 = vrot.slane %v3925, 4
        %v3931 = vrot.slane %v3927, 4
        %v3932 = vrot.slane %v3929, 4
        %v3933 = vsel %vm458, %v3930, %v3931
        %v3934 = vsel %vm604, %v3925, %v3933
        %v3935 = vsel %vm458, %v3931, %v3932
        %v3936 = vsel %vm604, %v3927, %v3935
        %3939 = vst [vmem:[#allocation3 + $0x40] sm:$0xff] %v3934
        %3940 = vst [vmem:[#allocation3 + $0x48] sm:$0xff] %v3936
        %3941 = vrot.lane.b32.xlu0 %v3853, 127
        %v3942 = vpop.permute.xlu0 %3941
        %3943 = vrot.lane.b32.xlu0 %v3854, 127
        %v3944 = vpop.permute.xlu0 %3943
        %3945 = vrot.lane.b32.xlu0 %v3855, 127
        %v3946 = vpop.permute.xlu0 %3945
        %3947 = vrot.lane.b32.xlu0 %v3856, 127
        %v3948 = vpop.permute.xlu0 %3947
        %v3949 = vsel %vm476, %v3946, %v3948
        %v3950 = vsel %vm476, %v3944, %v3946
        %v3951 = vsel %vm476, %v3942, %v3944
        %v3952 = vsel %vm476, %v3948, %v3942
        %v3953 = vld [vmem:[%s624] ss:$8 sm:$0xf]
        %v3955 = vperm.slane %v3953, 0
        %v3956 = vperm.slane %v3953, 1
        %v3957 = vperm.slane %v3953, 2
        %v3958 = vperm.slane %v3953, 3
        %v3963 = vmul.f32 %v3951, %v3955
        %v3964 = vmul.f32 %v3950, %v3956
        %v3965 = vmul.f32 %v3949, %v3957
        %v3966 = vmul.f32 %v3952, %v3958
        %v3967 = vpack.c.bf16 %v3964, %v3963
        %v3968 = vpack.c.bf16 %v3966, %v3965
        %3969 = vst [vmem:[#allocation3 + $0x50] sm:$0xff] %v3967
        %3970 = vst [vmem:[#allocation3 + $0x58] sm:$0xff] %v3968
        %v3971 = vld [vmem:[#allocation2] sm:$0xff]
        %v3972 = vld [vmem:[#allocation2 + $0x8] sm:$0xff]
        %v3973 = vld [vmem:[#allocation2 + $0x10] sm:$0xff]
        %v3974 = vld [vmem:[#allocation2 + $0x18] sm:$0xff]
        %v3975 = vld [vmem:[#allocation2 + $0x20] sm:$0xff]
        %3981 = vrot.lane.b32.xlu0 %v3971, 56
        %v3982 = vpop.permute.xlu0 %3981
        %3983 = vrot.lane.b32.xlu0 %v3972, 56
        %v3984 = vpop.permute.xlu0 %3983
        %3985 = vrot.lane.b32.xlu0 %v3973, 56
        %v3986 = vpop.permute.xlu0 %3985
        %3987 = vrot.lane.b32.xlu0 %v3974, 56
        %v3988 = vpop.permute.xlu0 %3987
        %3989 = vrot.lane.b32.xlu0 %v3975, 56
        %v3990 = vpop.permute.xlu0 %3989
        %v3991 = vsel %vm429, %v3982, %v3984
        %v3992 = vsel %vm429, %v3984, %v3986
        %v3993 = vsel %vm429, %v3986, %v3988
        %v3994 = vsel %vm429, %v3988, %v3990
        %3999 = vrot.lane.b32.xlu0 %v3991, 1
        %v4000 = vpop.permute.xlu0 %3999
        %4001 = vrot.lane.b32.xlu0 %v3992, 1
        %v4002 = vpop.permute.xlu0 %4001
        %4003 = vrot.lane.b32.xlu0 %v3993, 1
        %v4004 = vpop.permute.xlu0 %4003
        %4005 = vrot.lane.b32.xlu0 %v3994, 1
        %v4006 = vpop.permute.xlu0 %4005
        %v4007 = vsel %vm391, %v4004, %v4006
        %v4008 = vsel %vm391, %v4002, %v4004
        %v4009 = vsel %vm391, %v4000, %v4002
        %v4010 = vsel %vm391, %v4006, %v4000
        %v4011 = vld [vmem:[%s683] ss:$8 sm:$0xf]
        %v4013 = vperm.slane %v4011, 0
        %v4014 = vperm.slane %v4011, 1
        %v4015 = vperm.slane %v4011, 2
        %v4016 = vperm.slane %v4011, 3
        %v4021 = vmul.f32 %v4010, %v4013
        %v4022 = vmul.f32 %v4009, %v4014
        %v4023 = vmul.f32 %v4008, %v4015
        %v4024 = vmul.f32 %v4007, %v4016
        %v4025 = vpack.c.bf16 %v4022, %v4021
        %v4026 = vpack.c.bf16 %v4024, %v4023
        %4027 = vst [vmem:[#allocation3 + $0x60] sm:$0xff] %v4025
        %4028 = vst [vmem:[#allocation3 + $0x68] sm:$0xff] %v4026
        %v4029 = vld [vmem:[%s702] ss:$8 sm:$0xf]
        %v4031 = vperm.slane %v4029, 0
        %v4032 = vperm.slane %v4029, 1
        %v4033 = vperm.slane %v4029, 2
        %v4034 = vperm.slane %v4029, 3
        %4035 = vrot.lane.b32.xlu0 %v4031, 72
        %v4036 = vpop.permute.xlu0 %4035
        %4037 = vrot.lane.b32.xlu0 %v4032, 72
        %v4038 = vpop.permute.xlu0 %4037
        %4039 = vrot.lane.b32.xlu0 %v4033, 72
        %v4040 = vpop.permute.xlu0 %4039
        %4041 = vrot.lane.b32.xlu0 %v4034, 72
        %v4042 = vpop.permute.xlu0 %4041
        %v4043 = vsel %vm372, %v4036, %v4038
        %v4044 = vsel %vm372, %v4038, %v4040
        %v4045 = vsel %vm372, %v4040, %v4042
        %v4051 = vmul.f32 %v3971, %v4036
        %v4052 = vmul.f32 %v3972, %v4043
        %v4053 = vmul.f32 %v3973, %v4044
        %v4054 = vmul.f32 %v3974, %v4045
        %v4055 = vmul.f32 %v3975, %v4042
        %v4056 = vpack.c.bf16 %v4052, %v4051
        %v4057 = vpack.c.bf16 %v4054, %v4053
        %v4058 = vpack.c.bf16 %v4055, %v4055
        %4062 = vrot.lane.b32.xlu0 %v4056, 56
        %v4063 = vpop.permute.xlu0 %4062
        %4064 = vrot.lane.b32.xlu0 %v4057, 56
        %v4065 = vpop.permute.xlu0 %4064
        %4066 = vrot.lane.b32.xlu0 %v4058, 56
        %v4067 = vpop.permute.xlu0 %4066
        %v4068 = vrot.slane %v4063, 4
        %v4069 = vrot.slane %v4065, 4
        %v4070 = vrot.slane %v4067, 4
        %v4071 = vsel %vm458, %v4068, %v4069
        %v4072 = vsel %vm746, %v4063, %v4071
        %v4073 = vsel %vm458, %v4069, %v4070
        %v4074 = vsel %vm746, %v4065, %v4073
        %4077 = vst [vmem:[#allocation3 + $0x70] sm:$0xff] %v4072
        %4078 = vst [vmem:[#allocation3 + $0x78] sm:$0xff] %v4074
        %4079 = vrot.lane.b32.xlu0 %v3991, 127
        %v4080 = vpop.permute.xlu0 %4079
        %4081 = vrot.lane.b32.xlu0 %v3992, 127
        %v4082 = vpop.permute.xlu0 %4081
        %4083 = vrot.lane.b32.xlu0 %v3993, 127
        %v4084 = vpop.permute.xlu0 %4083
        %4085 = vrot.lane.b32.xlu0 %v3994, 127
        %v4086 = vpop.permute.xlu0 %4085
        %v4087 = vsel %vm476, %v4084, %v4086
        %v4088 = vsel %vm476, %v4082, %v4084
        %v4089 = vsel %vm476, %v4080, %v4082
        %v4090 = vsel %vm476, %v4086, %v4080
        %v4091 = vld [vmem:[%s766] ss:$8 sm:$0xf]
        %v4093 = vperm.slane %v4091, 0
        %v4094 = vperm.slane %v4091, 1
        %v4095 = vperm.slane %v4091, 2
        %v4096 = vperm.slane %v4091, 3
        %v4101 = vmul.f32 %v4089, %v4093
        %v4102 = vmul.f32 %v4088, %v4094
        %v4103 = vmul.f32 %v4087, %v4095
        %v4104 = vmul.f32 %v4090, %v4096
        %v4105 = vpack.c.bf16 %v4102, %v4101
        %v4106 = vpack.c.bf16 %v4104, %v4103
        %4107 = vst [vmem:[#allocation3 + $0x80] sm:$0xff] %v4105
        %4108 = vst [vmem:[#allocation3 + $0x88] sm:$0xff] %v4106
        %v4109 = vld [vmem:[#allocation2] sm:$0xff]
        %v4110 = vld [vmem:[#allocation2 + $0x8] sm:$0xff]
        %v4111 = vld [vmem:[#allocation2 + $0x10] sm:$0xff]
        %v4112 = vld [vmem:[#allocation2 + $0x18] sm:$0xff]
        %v4113 = vld [vmem:[#allocation2 + $0x20] sm:$0xff]
        %4119 = vrot.lane.b32.xlu0 %v4109, 8
        %v4120 = vpop.permute.xlu0 %4119
        %4121 = vrot.lane.b32.xlu0 %v4110, 8
        %v4122 = vpop.permute.xlu0 %4121
        %4123 = vrot.lane.b32.xlu0 %v4111, 8
        %v4124 = vpop.permute.xlu0 %4123
        %4125 = vrot.lane.b32.xlu0 %v4112, 8
        %v4126 = vpop.permute.xlu0 %4125
        %4127 = vrot.lane.b32.xlu0 %v4113, 8
        %v4128 = vpop.permute.xlu0 %4127
        %v4129 = vsel %vm805, %v4120, %v4122
        %v4130 = vsel %vm805, %v4122, %v4124
        %v4131 = vsel %vm805, %v4124, %v4126
        %v4132 = vsel %vm805, %v4126, %v4128
        %4137 = vrot.lane.b32.xlu0 %v4129, 1
        %v4138 = vpop.permute.xlu0 %4137
        %4139 = vrot.lane.b32.xlu0 %v4130, 1
        %v4140 = vpop.permute.xlu0 %4139
        %4141 = vrot.lane.b32.xlu0 %v4131, 1
        %v4142 = vpop.permute.xlu0 %4141
        %4143 = vrot.lane.b32.xlu0 %v4132, 1
        %v4144 = vpop.permute.xlu0 %4143
        %v4145 = vsel %vm391, %v4142, %v4144
        %v4146 = vsel %vm391, %v4140, %v4142
        %v4147 = vsel %vm391, %v4138, %v4140
        %v4148 = vsel %vm391, %v4144, %v4138
        %v4149 = vld [vmem:[%s826] ss:$8 sm:$0xf]
        %v4151 = vperm.slane %v4149, 0
        %v4152 = vperm.slane %v4149, 1
        %v4153 = vperm.slane %v4149, 2
        %v4154 = vperm.slane %v4149, 3
        %v4159 = vmul.f32 %v4148, %v4151
        %v4160 = vmul.f32 %v4147, %v4152
        %v4161 = vmul.f32 %v4146, %v4153
        %v4162 = vmul.f32 %v4145, %v4154
        %v4163 = vpack.c.bf16 %v4160, %v4159
        %v4164 = vpack.c.bf16 %v4162, %v4161
        %4165 = vst [vmem:[#allocation3 + $0x90] sm:$0xff] %v4163
        %4166 = vst [vmem:[#allocation3 + $0x98] sm:$0xff] %v4164
        %v4167 = vld [vmem:[%s845] ss:$8 sm:$0xf]
        %v4169 = vperm.slane %v4167, 0
        %v4170 = vperm.slane %v4167, 1
        %v4171 = vperm.slane %v4167, 2
        %v4172 = vperm.slane %v4167, 3
        %4173 = vrot.lane.b32.xlu0 %v4169, 120
        %v4174 = vpop.permute.xlu0 %4173
        %4175 = vrot.lane.b32.xlu0 %v4170, 120
        %v4176 = vpop.permute.xlu0 %4175
        %4177 = vrot.lane.b32.xlu0 %v4171, 120
        %v4178 = vpop.permute.xlu0 %4177
        %4179 = vrot.lane.b32.xlu0 %v4172, 120
        %v4180 = vpop.permute.xlu0 %4179
        %v4181 = vsel %vm860, %v4174, %v4176
        %v4182 = vsel %vm860, %v4176, %v4178
        %v4183 = vsel %vm860, %v4178, %v4180
        %v4189 = vmul.f32 %v4109, %v4174
        %v4190 = vmul.f32 %v4110, %v4181
        %v4191 = vmul.f32 %v4111, %v4182
        %v4192 = vmul.f32 %v4112, %v4183
        %v4193 = vmul.f32 %v4113, %v4180
        %v4194 = vpack.c.bf16 %v4190, %v4189
        %v4195 = vpack.c.bf16 %v4192, %v4191
        %v4196 = vpack.c.bf16 %v4193, %v4193
        %4200 = vrot.lane.b32.xlu0 %v4194, 8
        %v4201 = vpop.permute.xlu0 %4200
        %4202 = vrot.lane.b32.xlu0 %v4195, 8
        %v4203 = vpop.permute.xlu0 %4202
        %4204 = vrot.lane.b32.xlu0 %v4196, 8
        %v4205 = vpop.permute.xlu0 %4204
        %v4206 = vrot.slane %v4201, 4
        %v4207 = vrot.slane %v4203, 4
        %v4208 = vrot.slane %v4205, 4
        %v4209 = vsel %vm458, %v4206, %v4207
        %v4210 = vsel %vm890, %v4201, %v4209
        %v4211 = vsel %vm458, %v4207, %v4208
        %v4212 = vsel %vm890, %v4203, %v4211
        %4215 = vst [vmem:[#allocation3 + $0xa0] sm:$0xff] %v4210
        %4216 = vst [vmem:[#allocation3 + $0xa8] sm:$0xff] %v4212
        %4217 = vrot.lane.b32.xlu0 %v4129, 127
        %v4218 = vpop.permute.xlu0 %4217
        %4219 = vrot.lane.b32.xlu0 %v4130, 127
        %v4220 = vpop.permute.xlu0 %4219
        %4221 = vrot.lane.b32.xlu0 %v4131, 127
        %v4222 = vpop.permute.xlu0 %4221
        %4223 = vrot.lane.b32.xlu0 %v4132, 127
        %v4224 = vpop.permute.xlu0 %4223
        %v4225 = vsel %vm476, %v4222, %v4224
        %v4226 = vsel %vm476, %v4220, %v4222
        %v4227 = vsel %vm476, %v4218, %v4220
        %v4228 = vsel %vm476, %v4224, %v4218
        %v4229 = vld [vmem:[%s910] ss:$8 sm:$0xf]
        %v4231 = vperm.slane %v4229, 0
        %v4232 = vperm.slane %v4229, 1
        %v4233 = vperm.slane %v4229, 2
        %v4234 = vperm.slane %v4229, 3
        %v4239 = vmul.f32 %v4227, %v4231
        %v4240 = vmul.f32 %v4226, %v4232
        %v4241 = vmul.f32 %v4225, %v4233
        %v4242 = vmul.f32 %v4228, %v4234
        %v4243 = vpack.c.bf16 %v4240, %v4239
        %v4244 = vpack.c.bf16 %v4242, %v4241
        %4245 = vst [vmem:[#allocation3 + $0xb0] sm:$0xff] %v4243
        %4246 = vst [vmem:[#allocation3 + $0xb8] sm:$0xff] %v4244
        %v4247 = vld [vmem:[#allocation2 + $0x8] sm:$0xff]
        %v4248 = vld [vmem:[#allocation2 + $0x10] sm:$0xff]
        %v4249 = vld [vmem:[#allocation2 + $0x18] sm:$0xff]
        %v4250 = vld [vmem:[#allocation2 + $0x20] sm:$0xff]
        %4251 = vrot.lane.b32.xlu0 %v4247, 1
        %v4252 = vpop.permute.xlu0 %4251
        %4253 = vrot.lane.b32.xlu0 %v4248, 1
        %v4254 = vpop.permute.xlu0 %4253
        %4255 = vrot.lane.b32.xlu0 %v4249, 1
        %v4256 = vpop.permute.xlu0 %4255
        %4257 = vrot.lane.b32.xlu0 %v4250, 1
        %v4258 = vpop.permute.xlu0 %4257
        %v4259 = vsel %vm391, %v4256, %v4258
        %v4260 = vsel %vm391, %v4254, %v4256
        %v4261 = vsel %vm391, %v4252, %v4254
        %v4262 = vsel %vm391, %v4258, %v4252
        %v4263 = vld [vmem:[%s945] ss:$8 sm:$0xf]
        %v4265 = vperm.slane %v4263, 0
        %v4266 = vperm.slane %v4263, 1
        %v4267 = vperm.slane %v4263, 2
        %v4268 = vperm.slane %v4263, 3
        %v4273 = vmul.f32 %v4262, %v4265
        %v4274 = vmul.f32 %v4261, %v4266
        %v4275 = vmul.f32 %v4260, %v4267
        %v4276 = vmul.f32 %v4259, %v4268
        %v4277 = vpack.c.bf16 %v4274, %v4273
        %v4278 = vpack.c.bf16 %v4276, %v4275
        %4279 = vst [vmem:[#allocation3 + $0xc0] sm:$0xff] %v4277
        %4280 = vst [vmem:[#allocation3 + $0xc8] sm:$0xff] %v4278
        %v4281 = vld [vmem:[%s964] ss:$8 sm:$0xf]
        %v4283 = vperm.slane %v4281, 0
        %v4284 = vperm.slane %v4281, 1
        %v4285 = vperm.slane %v4281, 2
        %v4286 = vperm.slane %v4281, 3
        %v4291 = vmul.f32 %v4247, %v4283
        %v4292 = vmul.f32 %v4248, %v4284
        %v4293 = vmul.f32 %v4249, %v4285
        %v4294 = vmul.f32 %v4250, %v4286
        %v4295 = vpack.c.bf16 %v4292, %v4291
        %v4296 = vpack.c.bf16 %v4294, %v4293
        %4297 = vst [vmem:[#allocation3 + $0xd0] sm:$0xff] %v4295
        %4298 = vst [vmem:[#allocation3 + $0xd8] sm:$0xff] %v4296
        %4299 = vrot.lane.b32.xlu0 %v4247, 127
        %v4300 = vpop.permute.xlu0 %4299
        %4301 = vrot.lane.b32.xlu0 %v4248, 127
        %v4302 = vpop.permute.xlu0 %4301
        %4303 = vrot.lane.b32.xlu0 %v4249, 127
        %v4304 = vpop.permute.xlu0 %4303
        %4305 = vrot.lane.b32.xlu0 %v4250, 127
        %v4306 = vpop.permute.xlu0 %4305
        %v4307 = vsel %vm476, %v4304, %v4306
        %v4308 = vsel %vm476, %v4302, %v4304
        %v4309 = vsel %vm476, %v4300, %v4302
        %v4310 = vsel %vm476, %v4306, %v4300
        %v4311 = vld [vmem:[%s995] ss:$8 sm:$0xf]
        %v4313 = vperm.slane %v4311, 0
        %v4314 = vperm.slane %v4311, 1
        %v4315 = vperm.slane %v4311, 2
        %v4316 = vperm.slane %v4311, 3
        %v4321 = vmul.f32 %v4309, %v4313
        %v4322 = vmul.f32 %v4308, %v4314
        %v4323 = vmul.f32 %v4307, %v4315
        %v4324 = vmul.f32 %v4310, %v4316
        %v4325 = vpack.c.bf16 %v4322, %v4321
        %v4326 = vpack.c.bf16 %v4324, %v4323
        %4327 = vst [vmem:[#allocation3 + $0xe0] sm:$0xff] %v4325
        %4328 = vst [vmem:[#allocation3 + $0xe8] sm:$0xff] %v4326
        %v4329 = vld [vmem:[#allocation2 + $0x8] sm:$0xff]
        %v4330 = vld [vmem:[#allocation2 + $0x10] sm:$0xff]
        %v4331 = vld [vmem:[#allocation2 + $0x18] sm:$0xff]
        %v4332 = vld [vmem:[#allocation2 + $0x20] sm:$0xff]
        %v4333 = vld [vmem:[#allocation2 + $0x28] sm:$0xff]
        %4339 = vrot.lane.b32.xlu0 %v4329, 120
        %v4340 = vpop.permute.xlu0 %4339
        %4341 = vrot.lane.b32.xlu0 %v4330, 120
        %v4342 = vpop.permute.xlu0 %4341
        %4343 = vrot.lane.b32.xlu0 %v4331, 120
        %v4344 = vpop.permute.xlu0 %4343
        %4345 = vrot.lane.b32.xlu0 %v4332, 120
        %v4346 = vpop.permute.xlu0 %4345
        %4347 = vrot.lane.b32.xlu0 %v4333, 120
        %v4348 = vpop.permute.xlu0 %4347
        %v4349 = vsel %vm860, %v4340, %v4342
        %v4350 = vsel %vm860, %v4342, %v4344
        %v4351 = vsel %vm860, %v4344, %v4346
        %v4352 = vsel %vm860, %v4346, %v4348
        %4357 = vrot.lane.b32.xlu0 %v4349, 1
        %v4358 = vpop.permute.xlu0 %4357
        %4359 = vrot.lane.b32.xlu0 %v4350, 1
        %v4360 = vpop.permute.xlu0 %4359
        %4361 = vrot.lane.b32.xlu0 %v4351, 1
        %v4362 = vpop.permute.xlu0 %4361
        %4363 = vrot.lane.b32.xlu0 %v4352, 1
        %v4364 = vpop.permute.xlu0 %4363
        %v4365 = vsel %vm391, %v4362, %v4364
        %v4366 = vsel %vm391, %v4360, %v4362
        %v4367 = vsel %vm391, %v4358, %v4360
        %v4368 = vsel %vm391, %v4364, %v4358
        %v4369 = vld [vmem:[%s1054] ss:$8 sm:$0xf]
        %v4371 = vperm.slane %v4369, 0
        %v4372 = vperm.slane %v4369, 1
        %v4373 = vperm.slane %v4369, 2
        %v4374 = vperm.slane %v4369, 3
        %v4379 = vmul.f32 %v4368, %v4371
        %v4380 = vmul.f32 %v4367, %v4372
        %v4381 = vmul.f32 %v4366, %v4373
        %v4382 = vmul.f32 %v4365, %v4374
        %v4383 = vpack.c.bf16 %v4380, %v4379
        %v4384 = vpack.c.bf16 %v4382, %v4381
        %4385 = vst [vmem:[#allocation3 + $0xf0] sm:$0xff] %v4383
        %4386 = vst [vmem:[#allocation3 + $0xf8] sm:$0xff] %v4384
        %v4387 = vld [vmem:[%s1073] ss:$8 sm:$0xf]
        %v4389 = vperm.slane %v4387, 0
        %v4390 = vperm.slane %v4387, 1
        %v4391 = vperm.slane %v4387, 2
        %v4392 = vperm.slane %v4387, 3
        %4393 = vrot.lane.b32.xlu0 %v4389, 8
        %v4394 = vpop.permute.xlu0 %4393
        %4395 = vrot.lane.b32.xlu0 %v4390, 8
        %v4396 = vpop.permute.xlu0 %4395
        %4397 = vrot.lane.b32.xlu0 %v4391, 8
        %v4398 = vpop.permute.xlu0 %4397
        %4399 = vrot.lane.b32.xlu0 %v4392, 8
        %v4400 = vpop.permute.xlu0 %4399
        %v4401 = vsel %vm805, %v4394, %v4396
        %v4402 = vsel %vm805, %v4396, %v4398
        %v4403 = vsel %vm805, %v4398, %v4400
        %v4409 = vmul.f32 %v4329, %v4394
        %v4410 = vmul.f32 %v4330, %v4401
        %v4411 = vmul.f32 %v4331, %v4402
        %v4412 = vmul.f32 %v4332, %v4403
        %v4413 = vmul.f32 %v4333, %v4400
        %v4414 = vpack.c.bf16 %v4410, %v4409
        %v4415 = vpack.c.bf16 %v4412, %v4411
        %v4416 = vpack.c.bf16 %v4413, %v4413
        %4420 = vrot.lane.b32.xlu0 %v4414, 120
        %v4421 = vpop.permute.xlu0 %4420
        %4422 = vrot.lane.b32.xlu0 %v4415, 120
        %v4423 = vpop.permute.xlu0 %4422
        %4424 = vrot.lane.b32.xlu0 %v4416, 120
        %v4425 = vpop.permute.xlu0 %4424
        %v4426 = vrot.slane %v4421, 4
        %v4427 = vrot.slane %v4423, 4
        %v4428 = vrot.slane %v4425, 4
        %v4429 = vsel %vm458, %v4426, %v4427
        %v4430 = vsel %vm1117, %v4421, %v4429
        %v4431 = vsel %vm458, %v4427, %v4428
        %v4432 = vsel %vm1117, %v4423, %v4431
        %4435 = vst [vmem:[#allocation3 + $0x100] sm:$0xff] %v4430
        %4436 = vst [vmem:[#allocation3 + $0x108] sm:$0xff] %v4432
        %4437 = vrot.lane.b32.xlu0 %v4349, 127
        %v4438 = vpop.permute.xlu0 %4437
        %4439 = vrot.lane.b32.xlu0 %v4350, 127
        %v4440 = vpop.permute.xlu0 %4439
        %4441 = vrot.lane.b32.xlu0 %v4351, 127
        %v4442 = vpop.permute.xlu0 %4441
        %4443 = vrot.lane.b32.xlu0 %v4352, 127
        %v4444 = vpop.permute.xlu0 %4443
        %v4445 = vsel %vm476, %v4442, %v4444
        %v4446 = vsel %vm476, %v4440, %v4442
        %v4447 = vsel %vm476, %v4438, %v4440
        %v4448 = vsel %vm476, %v4444, %v4438
        %v4449 = vld [vmem:[%s1137] ss:$8 sm:$0xf]
        %v4451 = vperm.slane %v4449, 0
        %v4452 = vperm.slane %v4449, 1
        %v4453 = vperm.slane %v4449, 2
        %v4454 = vperm.slane %v4449, 3
        %v4459 = vmul.f32 %v4447, %v4451
        %v4460 = vmul.f32 %v4446, %v4452
        %v4461 = vmul.f32 %v4445, %v4453
        %v4462 = vmul.f32 %v4448, %v4454
        %v4463 = vpack.c.bf16 %v4460, %v4459
        %v4464 = vpack.c.bf16 %v4462, %v4461
        %4465 = vst [vmem:[#allocation3 + $0x110] sm:$0xff] %v4463
        %4466 = vst [vmem:[#allocation3 + $0x118] sm:$0xff] %v4464
        %v4467 = vld [vmem:[#allocation2 + $0x8] sm:$0xff]
        %v4468 = vld [vmem:[#allocation2 + $0x10] sm:$0xff]
        %v4469 = vld [vmem:[#allocation2 + $0x18] sm:$0xff]
        %v4470 = vld [vmem:[#allocation2 + $0x20] sm:$0xff]
        %v4471 = vld [vmem:[#allocation2 + $0x28] sm:$0xff]
        %4477 = vrot.lane.b32.xlu0 %v4467, 72
        %v4478 = vpop.permute.xlu0 %4477
        %4479 = vrot.lane.b32.xlu0 %v4468, 72
        %v4480 = vpop.permute.xlu0 %4479
        %4481 = vrot.lane.b32.xlu0 %v4469, 72
        %v4482 = vpop.permute.xlu0 %4481
        %4483 = vrot.lane.b32.xlu0 %v4470, 72
        %v4484 = vpop.permute.xlu0 %4483
        %4485 = vrot.lane.b32.xlu0 %v4471, 72
        %v4486 = vpop.permute.xlu0 %4485
        %v4487 = vsel %vm372, %v4478, %v4480
        %v4488 = vsel %vm372, %v4480, %v4482
        %v4489 = vsel %vm372, %v4482, %v4484
        %v4490 = vsel %vm372, %v4484, %v4486
        %4495 = vrot.lane.b32.xlu0 %v4487, 1
        %v4496 = vpop.permute.xlu0 %4495
        %4497 = vrot.lane.b32.xlu0 %v4488, 1
        %v4498 = vpop.permute.xlu0 %4497
        %4499 = vrot.lane.b32.xlu0 %v4489, 1
        %v4500 = vpop.permute.xlu0 %4499
        %4501 = vrot.lane.b32.xlu0 %v4490, 1
        %v4502 = vpop.permute.xlu0 %4501
        %v4503 = vsel %vm391, %v4500, %v4502
        %v4504 = vsel %vm391, %v4498, %v4500
        %v4505 = vsel %vm391, %v4496, %v4498
        %v4506 = vsel %vm391, %v4502, %v4496
        %v4507 = vld [vmem:[%s1196] ss:$8 sm:$0xf]
        %v4509 = vperm.slane %v4507, 0
        %v4510 = vperm.slane %v4507, 1
        %v4511 = vperm.slane %v4507, 2
        %v4512 = vperm.slane %v4507, 3
        %v4517 = vmul.f32 %v4506, %v4509
        %v4518 = vmul.f32 %v4505, %v4510
        %v4519 = vmul.f32 %v4504, %v4511
        %v4520 = vmul.f32 %v4503, %v4512
        %v4521 = vpack.c.bf16 %v4518, %v4517
        %v4522 = vpack.c.bf16 %v4520, %v4519
        %4523 = vst [vmem:[#allocation3 + $0x120] sm:$0xff] %v4521
        %4524 = vst [vmem:[#allocation3 + $0x128] sm:$0xff] %v4522
        %v4525 = vld [vmem:[%s1215] ss:$8 sm:$0xf]
        %v4527 = vperm.slane %v4525, 0
        %v4528 = vperm.slane %v4525, 1
        %v4529 = vperm.slane %v4525, 2
        %v4530 = vperm.slane %v4525, 3
        %4531 = vrot.lane.b32.xlu0 %v4527, 56
        %v4532 = vpop.permute.xlu0 %4531
        %4533 = vrot.lane.b32.xlu0 %v4528, 56
        %v4534 = vpop.permute.xlu0 %4533
        %4535 = vrot.lane.b32.xlu0 %v4529, 56
        %v4536 = vpop.permute.xlu0 %4535
        %4537 = vrot.lane.b32.xlu0 %v4530, 56
        %v4538 = vpop.permute.xlu0 %4537
        %v4539 = vsel %vm429, %v4532, %v4534
        %v4540 = vsel %vm429, %v4534, %v4536
        %v4541 = vsel %vm429, %v4536, %v4538
        %v4547 = vmul.f32 %v4467, %v4532
        %v4548 = vmul.f32 %v4468, %v4539
        %v4549 = vmul.f32 %v4469, %v4540
        %v4550 = vmul.f32 %v4470, %v4541
        %v4551 = vmul.f32 %v4471, %v4538
        %v4552 = vpack.c.bf16 %v4548, %v4547
        %v4553 = vpack.c.bf16 %v4550, %v4549
        %v4554 = vpack.c.bf16 %v4551, %v4551
        %4558 = vrot.lane.b32.xlu0 %v4552, 72
        %v4559 = vpop.permute.xlu0 %4558
        %4560 = vrot.lane.b32.xlu0 %v4553, 72
        %v4561 = vpop.permute.xlu0 %4560
        %4562 = vrot.lane.b32.xlu0 %v4554, 72
        %v4563 = vpop.permute.xlu0 %4562
        %v4564 = vrot.slane %v4559, 4
        %v4565 = vrot.slane %v4561, 4
        %v4566 = vrot.slane %v4563, 4
        %v4567 = vsel %vm458, %v4564, %v4565
        %v4568 = vsel %vm460, %v4559, %v4567
        %v4569 = vsel %vm458, %v4565, %v4566
        %v4570 = vsel %vm460, %v4561, %v4569
        %4573 = vst [vmem:[#allocation3 + $0x130] sm:$0xff] %v4568
        %4574 = vst [vmem:[#allocation3 + $0x138] sm:$0xff] %v4570
        %4575 = vrot.lane.b32.xlu0 %v4487, 127
        %v4576 = vpop.permute.xlu0 %4575
        %4577 = vrot.lane.b32.xlu0 %v4488, 127
        %v4578 = vpop.permute.xlu0 %4577
        %4579 = vrot.lane.b32.xlu0 %v4489, 127
        %v4580 = vpop.permute.xlu0 %4579
        %4581 = vrot.lane.b32.xlu0 %v4490, 127
        %v4582 = vpop.permute.xlu0 %4581
        %v4583 = vsel %vm476, %v4580, %v4582
        %v4584 = vsel %vm476, %v4578, %v4580
        %v4585 = vsel %vm476, %v4576, %v4578
        %v4586 = vsel %vm476, %v4582, %v4576
        %v4587 = vld [vmem:[%s1278] ss:$8 sm:$0xf]
        %v4589 = vperm.slane %v4587, 0
        %v4590 = vperm.slane %v4587, 1
        %v4591 = vperm.slane %v4587, 2
        %v4592 = vperm.slane %v4587, 3
        %v4597 = vmul.f32 %v4585, %v4589
        %v4598 = vmul.f32 %v4584, %v4590
        %v4599 = vmul.f32 %v4583, %v4591
        %v4600 = vmul.f32 %v4586, %v4592
        %v4601 = vpack.c.bf16 %v4598, %v4597
        %v4602 = vpack.c.bf16 %v4600, %v4599
        %4603 = vst [vmem:[#allocation3 + $0x140] sm:$0xff] %v4601
        %4604 = vst [vmem:[#allocation3 + $0x148] sm:$0xff] %v4602
        %v4605 = vld [vmem:[#allocation2 + $0x8] sm:$0xff]
        %v4606 = vld [vmem:[#allocation2 + $0x10] sm:$0xff]
        %v4607 = vld [vmem:[#allocation2 + $0x18] sm:$0xff]
        %v4608 = vld [vmem:[#allocation2 + $0x20] sm:$0xff]
        %v4609 = vld [vmem:[#allocation2 + $0x28] sm:$0xff]
        %4615 = vrot.lane.b32.xlu0 %v4605, 64
        %v4616 = vpop.permute.xlu0 %4615
        %4617 = vrot.lane.b32.xlu0 %v4606, 64
        %v4618 = vpop.permute.xlu0 %4617
        %4619 = vrot.lane.b32.xlu0 %v4607, 64
        %v4620 = vpop.permute.xlu0 %4619
        %4621 = vrot.lane.b32.xlu0 %v4608, 64
        %v4622 = vpop.permute.xlu0 %4621
        %4623 = vrot.lane.b32.xlu0 %v4609, 64
        %v4624 = vpop.permute.xlu0 %4623
        %v4625 = vsel %vm520, %v4616, %v4618
        %v4626 = vsel %vm520, %v4618, %v4620
        %v4627 = vsel %vm520, %v4620, %v4622
        %v4628 = vsel %vm520, %v4622, %v4624
        %4633 = vrot.lane.b32.xlu0 %v4625, 1
        %v4634 = vpop.permute.xlu0 %4633
        %4635 = vrot.lane.b32.xlu0 %v4626, 1
        %v4636 = vpop.permute.xlu0 %4635
        %4637 = vrot.lane.b32.xlu0 %v4627, 1
        %v4638 = vpop.permute.xlu0 %4637
        %4639 = vrot.lane.b32.xlu0 %v4628, 1
        %v4640 = vpop.permute.xlu0 %4639
        %v4641 = vsel %vm391, %v4638, %v4640
        %v4642 = vsel %vm391, %v4636, %v4638
        %v4643 = vsel %vm391, %v4634, %v4636
        %v4644 = vsel %vm391, %v4640, %v4634
        %v4645 = vld [vmem:[%s1337] ss:$8 sm:$0xf]
        %v4647 = vperm.slane %v4645, 0
        %v4648 = vperm.slane %v4645, 1
        %v4649 = vperm.slane %v4645, 2
        %v4650 = vperm.slane %v4645, 3
        %v4655 = vmul.f32 %v4644, %v4647
        %v4656 = vmul.f32 %v4643, %v4648
        %v4657 = vmul.f32 %v4642, %v4649
        %v4658 = vmul.f32 %v4641, %v4650
        %v4659 = vpack.c.bf16 %v4656, %v4655
        %v4660 = vpack.c.bf16 %v4658, %v4657
        %4661 = vst [vmem:[#allocation3 + $0x150] sm:$0xff] %v4659
        %4662 = vst [vmem:[#allocation3 + $0x158] sm:$0xff] %v4660
        %v4663 = vld [vmem:[%s1356] ss:$8 sm:$0xf]
        %v4665 = vperm.slane %v4663, 0
        %v4666 = vperm.slane %v4663, 1
        %v4667 = vperm.slane %v4663, 2
        %v4668 = vperm.slane %v4663, 3
        %4669 = vrot.lane.b32.xlu0 %v4665, 64
        %v4670 = vpop.permute.xlu0 %4669
        %4671 = vrot.lane.b32.xlu0 %v4666, 64
        %v4672 = vpop.permute.xlu0 %4671
        %4673 = vrot.lane.b32.xlu0 %v4667, 64
        %v4674 = vpop.permute.xlu0 %4673
        %4675 = vrot.lane.b32.xlu0 %v4668, 64
        %v4676 = vpop.permute.xlu0 %4675
        %v4677 = vsel %vm520, %v4670, %v4672
        %v4678 = vsel %vm520, %v4672, %v4674
        %v4679 = vsel %vm520, %v4674, %v4676
        %v4685 = vmul.f32 %v4605, %v4670
        %v4686 = vmul.f32 %v4606, %v4677
        %v4687 = vmul.f32 %v4607, %v4678
        %v4688 = vmul.f32 %v4608, %v4679
        %v4689 = vmul.f32 %v4609, %v4676
        %v4690 = vpack.c.bf16 %v4686, %v4685
        %v4691 = vpack.c.bf16 %v4688, %v4687
        %v4692 = vpack.c.bf16 %v4689, %v4689
        %4696 = vrot.lane.b32.xlu0 %v4690, 64
        %v4697 = vpop.permute.xlu0 %4696
        %4698 = vrot.lane.b32.xlu0 %v4691, 64
        %v4699 = vpop.permute.xlu0 %4698
        %4700 = vrot.lane.b32.xlu0 %v4692, 64
        %v4701 = vpop.permute.xlu0 %4700
        %v4702 = vrot.slane %v4697, 4
        %v4703 = vrot.slane %v4699, 4
        %v4704 = vrot.slane %v4701, 4
        %v4705 = vsel %vm458, %v4702, %v4703
        %v4706 = vsel %vm604, %v4697, %v4705
        %v4707 = vsel %vm458, %v4703, %v4704
        %v4708 = vsel %vm604, %v4699, %v4707
        %4711 = vst [vmem:[#allocation3 + $0x160] sm:$0xff] %v4706
        %4712 = vst [vmem:[#allocation3 + $0x168] sm:$0xff] %v4708
        %4713 = vrot.lane.b32.xlu0 %v4625, 127
        %v4714 = vpop.permute.xlu0 %4713
        %4715 = vrot.lane.b32.xlu0 %v4626, 127
        %v4716 = vpop.permute.xlu0 %4715
        %4717 = vrot.lane.b32.xlu0 %v4627, 127
        %v4718 = vpop.permute.xlu0 %4717
        %4719 = vrot.lane.b32.xlu0 %v4628, 127
        %v4720 = vpop.permute.xlu0 %4719
        %v4721 = vsel %vm476, %v4718, %v4720
        %v4722 = vsel %vm476, %v4716, %v4718
        %v4723 = vsel %vm476, %v4714, %v4716
        %v4724 = vsel %vm476, %v4720, %v4714
        %v4725 = vld [vmem:[%s1419] ss:$8 sm:$0xf]
        %v4727 = vperm.slane %v4725, 0
        %v4728 = vperm.slane %v4725, 1
        %v4729 = vperm.slane %v4725, 2
        %v4730 = vperm.slane %v4725, 3
        %v4735 = vmul.f32 %v4723, %v4727
        %v4736 = vmul.f32 %v4722, %v4728
        %v4737 = vmul.f32 %v4721, %v4729
        %v4738 = vmul.f32 %v4724, %v4730
        %v4739 = vpack.c.bf16 %v4736, %v4735
        %v4740 = vpack.c.bf16 %v4738, %v4737
        %4741 = vst [vmem:[#allocation3 + $0x170] sm:$0xff] %v4739
        %4742 = vst [vmem:[#allocation3 + $0x178] sm:$0xff] %v4740
        %v4743 = vld [vmem:[#allocation2 + $0x8] sm:$0xff]
        %v4744 = vld [vmem:[#allocation2 + $0x10] sm:$0xff]
        %v4745 = vld [vmem:[#allocation2 + $0x18] sm:$0xff]
        %v4746 = vld [vmem:[#allocation2 + $0x20] sm:$0xff]
        %v4747 = vld [vmem:[#allocation2 + $0x28] sm:$0xff]
        %4753 = vrot.lane.b32.xlu0 %v4743, 56
        %v4754 = vpop.permute.xlu0 %4753
        %4755 = vrot.lane.b32.xlu0 %v4744, 56
        %v4756 = vpop.permute.xlu0 %4755
        %4757 = vrot.lane.b32.xlu0 %v4745, 56
        %v4758 = vpop.permute.xlu0 %4757
        %4759 = vrot.lane.b32.xlu0 %v4746, 56
        %v4760 = vpop.permute.xlu0 %4759
        %4761 = vrot.lane.b32.xlu0 %v4747, 56
        %v4762 = vpop.permute.xlu0 %4761
        %v4763 = vsel %vm429, %v4754, %v4756
        %v4764 = vsel %vm429, %v4756, %v4758
        %v4765 = vsel %vm429, %v4758, %v4760
        %v4766 = vsel %vm429, %v4760, %v4762
        %4771 = vrot.lane.b32.xlu0 %v4763, 1
        %v4772 = vpop.permute.xlu0 %4771
        %4773 = vrot.lane.b32.xlu0 %v4764, 1
        %v4774 = vpop.permute.xlu0 %4773
        %4775 = vrot.lane.b32.xlu0 %v4765, 1
        %v4776 = vpop.permute.xlu0 %4775
        %4777 = vrot.lane.b32.xlu0 %v4766, 1
        %v4778 = vpop.permute.xlu0 %4777
        %v4779 = vsel %vm391, %v4776, %v4778
        %v4780 = vsel %vm391, %v4774, %v4776
        %v4781 = vsel %vm391, %v4772, %v4774
        %v4782 = vsel %vm391, %v4778, %v4772
        %v4783 = vld [vmem:[%s1478] ss:$8 sm:$0xf]
        %v4785 = vperm.slane %v4783, 0
        %v4786 = vperm.slane %v4783, 1
        %v4787 = vperm.slane %v4783, 2
        %v4788 = vperm.slane %v4783, 3
        %v4793 = vmul.f32 %v4782, %v4785
        %v4794 = vmul.f32 %v4781, %v4786
        %v4795 = vmul.f32 %v4780, %v4787
        %v4796 = vmul.f32 %v4779, %v4788
        %v4797 = vpack.c.bf16 %v4794, %v4793
        %v4798 = vpack.c.bf16 %v4796, %v4795
        %4799 = vst [vmem:[#allocation3 + $0x180] sm:$0xff] %v4797
        %4800 = vst [vmem:[#allocation3 + $0x188] sm:$0xff] %v4798
        %v4801 = vld [vmem:[%s1497] ss:$8 sm:$0xf]
        %v4803 = vperm.slane %v4801, 0
        %v4804 = vperm.slane %v4801, 1
        %v4805 = vperm.slane %v4801, 2
        %v4806 = vperm.slane %v4801, 3
        %4807 = vrot.lane.b32.xlu0 %v4803, 72
        %v4808 = vpop.permute.xlu0 %4807
        %4809 = vrot.lane.b32.xlu0 %v4804, 72
        %v4810 = vpop.permute.xlu0 %4809
        %4811 = vrot.lane.b32.xlu0 %v4805, 72
        %v4812 = vpop.permute.xlu0 %4811
        %4813 = vrot.lane.b32.xlu0 %v4806, 72
        %v4814 = vpop.permute.xlu0 %4813
        %v4815 = vsel %vm372, %v4808, %v4810
        %v4816 = vsel %vm372, %v4810, %v4812
        %v4817 = vsel %vm372, %v4812, %v4814
        %v4823 = vmul.f32 %v4743, %v4808
        %v4824 = vmul.f32 %v4744, %v4815
        %v4825 = vmul.f32 %v4745, %v4816
        %v4826 = vmul.f32 %v4746, %v4817
        %v4827 = vmul.f32 %v4747, %v4814
        %v4828 = vpack.c.bf16 %v4824, %v4823
        %v4829 = vpack.c.bf16 %v4826, %v4825
        %v4830 = vpack.c.bf16 %v4827, %v4827
        %4834 = vrot.lane.b32.xlu0 %v4828, 56
        %v4835 = vpop.permute.xlu0 %4834
        %4836 = vrot.lane.b32.xlu0 %v4829, 56
        %v4837 = vpop.permute.xlu0 %4836
        %4838 = vrot.lane.b32.xlu0 %v4830, 56
        %v4839 = vpop.permute.xlu0 %4838
        %v4840 = vrot.slane %v4835, 4
        %v4841 = vrot.slane %v4837, 4
        %v4842 = vrot.slane %v4839, 4
        %v4843 = vsel %vm458, %v4840, %v4841
        %v4844 = vsel %vm746, %v4835, %v4843
        %v4845 = vsel %vm458, %v4841, %v4842
        %v4846 = vsel %vm746, %v4837, %v4845
        %4849 = vst [vmem:[#allocation3 + $0x190] sm:$0xff] %v4844
        %4850 = vst [vmem:[#allocation3 + $0x198] sm:$0xff] %v4846
        %4851 = vrot.lane.b32.xlu0 %v4763, 127
        %v4852 = vpop.permute.xlu0 %4851
        %4853 = vrot.lane.b32.xlu0 %v4764, 127
        %v4854 = vpop.permute.xlu0 %4853
        %4855 = vrot.lane.b32.xlu0 %v4765, 127
        %v4856 = vpop.permute.xlu0 %4855
        %4857 = vrot.lane.b32.xlu0 %v4766, 127
        %v4858 = vpop.permute.xlu0 %4857
        %v4859 = vsel %vm476, %v4856, %v4858
        %v4860 = vsel %vm476, %v4854, %v4856
        %v4861 = vsel %vm476, %v4852, %v4854
        %v4862 = vsel %vm476, %v4858, %v4852
        %v4863 = vld [vmem:[%s1560] ss:$8 sm:$0xf]
        %v4865 = vperm.slane %v4863, 0
        %v4866 = vperm.slane %v4863, 1
        %v4867 = vperm.slane %v4863, 2
        %v4868 = vperm.slane %v4863, 3
        %v4873 = vmul.f32 %v4861, %v4865
        %v4874 = vmul.f32 %v4860, %v4866
        %v4875 = vmul.f32 %v4859, %v4867
        %v4876 = vmul.f32 %v4862, %v4868
        %v4877 = vpack.c.bf16 %v4874, %v4873
        %v4878 = vpack.c.bf16 %v4876, %v4875
        %4879 = vst [vmem:[#allocation3 + $0x1a0] sm:$0xff] %v4877
        %4880 = vst [vmem:[#allocation3 + $0x1a8] sm:$0xff] %v4878
        %v4881 = vld [vmem:[%s6] sm:$0xff]
        %v4882 = vld [vmem:[#allocation3] sm:$0xff]
        %v4883 = vld [vmem:[#allocation3 + $0x8] sm:$0xff]
        %v4884 = vld [vmem:[#allocation3 + $0x10] sm:$0xff]
        %v4885 = vld [vmem:[#allocation3 + $0x18] sm:$0xff]
        %v4886 = vld [vmem:[#allocation3 + $0x20] sm:$0xff]
        %v4887 = vld [vmem:[#allocation3 + $0x28] sm:$0xff]
        %v4888 = vld [vmem:[#allocation3 + $0x30] sm:$0xff]
        %v4889 = vld [vmem:[#allocation3 + $0x38] sm:$0xff]
        %v4890 = vld [vmem:[#allocation3 + $0x40] sm:$0xff]
        %v4891 = vld [vmem:[#allocation3 + $0x48] sm:$0xff]
        %v4892 = vld [vmem:[#allocation3 + $0x50] sm:$0xff]
        %v4893 = vld [vmem:[#allocation3 + $0x58] sm:$0xff]
        %v4894 = vld [vmem:[#allocation3 + $0x60] sm:$0xff]
        %v4895 = vld [vmem:[#allocation3 + $0x68] sm:$0xff]
        %v4896 = vld [vmem:[#allocation3 + $0x70] sm:$0xff]
        %v4897 = vld [vmem:[#allocation3 + $0x78] sm:$0xff]
        %v4898 = vld [vmem:[#allocation3 + $0x80] sm:$0xff]
        %v4899 = vld [vmem:[#allocation3 + $0x88] sm:$0xff]
        %v4900 = vld [vmem:[#allocation3 + $0x90] sm:$0xff]
        %v4901 = vld [vmem:[#allocation3 + $0x98] sm:$0xff]
        %v4902 = vld [vmem:[#allocation3 + $0xa0] sm:$0xff]
        %v4903 = vld [vmem:[#allocation3 + $0xa8] sm:$0xff]
        %v4904 = vld [vmem:[#allocation3 + $0xb0] sm:$0xff]
        %v4905 = vld [vmem:[#allocation3 + $0xb8] sm:$0xff]
        %v4906 = vld [vmem:[#allocation3 + $0xc0] sm:$0xff]
        %v4907 = vld [vmem:[#allocation3 + $0xc8] sm:$0xff]
        %v4908 = vld [vmem:[#allocation3 + $0xd0] sm:$0xff]
        %v4909 = vld [vmem:[#allocation3 + $0xd8] sm:$0xff]
        %v4910 = vld [vmem:[#allocation3 + $0xe0] sm:$0xff]
        %v4911 = vld [vmem:[#allocation3 + $0xe8] sm:$0xff]
        %v4912 = vld [vmem:[#allocation3 + $0xf0] sm:$0xff]
        %v4913 = vld [vmem:[#allocation3 + $0xf8] sm:$0xff]
        %v4914 = vld [vmem:[#allocation3 + $0x100] sm:$0xff]
        %v4915 = vld [vmem:[#allocation3 + $0x108] sm:$0xff]
        %v4916 = vld [vmem:[#allocation3 + $0x110] sm:$0xff]
        %v4917 = vld [vmem:[#allocation3 + $0x118] sm:$0xff]
        %v4918 = vld [vmem:[#allocation3 + $0x120] sm:$0xff]
        %v4919 = vld [vmem:[#allocation3 + $0x128] sm:$0xff]
        %v4920 = vld [vmem:[#allocation3 + $0x130] sm:$0xff]
        %v4921 = vld [vmem:[#allocation3 + $0x138] sm:$0xff]
        %v4922 = vld [vmem:[#allocation3 + $0x140] sm:$0xff]
        %v4923 = vld [vmem:[#allocation3 + $0x148] sm:$0xff]
        %v4924 = vld [vmem:[#allocation3 + $0x150] sm:$0xff]
        %v4925 = vld [vmem:[#allocation3 + $0x158] sm:$0xff]
        %v4926 = vld [vmem:[#allocation3 + $0x160] sm:$0xff]
        %v4927 = vld [vmem:[#allocation3 + $0x168] sm:$0xff]
        %v4928 = vld [vmem:[#allocation3 + $0x170] sm:$0xff]
        %v4929 = vld [vmem:[#allocation3 + $0x178] sm:$0xff]
        %v4930 = vld [vmem:[#allocation3 + $0x180] sm:$0xff]
        %v4931 = vld [vmem:[#allocation3 + $0x188] sm:$0xff]
        %v4932 = vld [vmem:[#allocation3 + $0x190] sm:$0xff]
        %v4933 = vld [vmem:[#allocation3 + $0x198] sm:$0xff]
        %v4934 = vld [vmem:[#allocation3 + $0x1a0] sm:$0xff]
        %v4935 = vld [vmem:[#allocation3 + $0x1a8] sm:$0xff]
        %v4936 = vld [vmem:[%s7] sm:$0xff]
        %4938 = vset.pattern.permute.xlu0 0
        %4939 = vperm.xlu0 %4938, %v4936
        %v4940 = vpop.permute.xlu0 %4939
        %v4943 = vunpack.c.l.b16 %v4881
        %v4944 = vunpack.c.h.b16 %v4881
        %v4945 = vpack.c.b16 %v4943, %v4943
        %v4946 = vpack.c.b16 %v4944, %v4944
        %v5002 = vunpack.c.l.b16 %v4882
        %v5003 = vunpack.c.h.b16 %v4882
        %v5004 = vunpack.c.l.b16 %v4883
        %v5005 = vunpack.c.h.b16 %v4883
        %v5006 = vunpack.c.l.b16 %v4884
        %v5007 = vunpack.c.h.b16 %v4884
        %v5008 = vunpack.c.l.b16 %v4885
        %v5009 = vunpack.c.h.b16 %v4885
        %v5010 = vunpack.c.l.b16 %v4886
        %v5011 = vunpack.c.h.b16 %v4886
        %v5012 = vunpack.c.l.b16 %v4887
        %v5013 = vunpack.c.h.b16 %v4887
        %v5014 = vunpack.c.l.b16 %v4888
        %v5015 = vunpack.c.h.b16 %v4888
        %v5016 = vunpack.c.l.b16 %v4889
        %v5017 = vunpack.c.h.b16 %v4889
        %v5018 = vunpack.c.l.b16 %v4890
        %v5019 = vunpack.c.h.b16 %v4890
        %v5020 = vunpack.c.l.b16 %v4891
        %v5021 = vunpack.c.h.b16 %v4891
        %v5022 = vunpack.c.l.b16 %v4892
        %v5023 = vunpack.c.h.b16 %v4892
        %v5024 = vunpack.c.l.b16 %v4893
        %v5025 = vunpack.c.h.b16 %v4893
        %v5026 = vunpack.c.l.b16 %v4894
        %v5027 = vunpack.c.h.b16 %v4894
        %v5028 = vunpack.c.l.b16 %v4895
        %v5029 = vunpack.c.h.b16 %v4895
        %v5030 = vunpack.c.l.b16 %v4896
        %v5031 = vunpack.c.h.b16 %v4896
        %v5032 = vunpack.c.l.b16 %v4897
        %v5033 = vunpack.c.h.b16 %v4897
        %v5034 = vunpack.c.l.b16 %v4898
        %v5035 = vunpack.c.h.b16 %v4898
        %v5036 = vunpack.c.l.b16 %v4899
        %v5037 = vunpack.c.h.b16 %v4899
        %v5038 = vunpack.c.l.b16 %v4900
        %v5039 = vunpack.c.h.b16 %v4900
        %v5040 = vunpack.c.l.b16 %v4901
        %v5041 = vunpack.c.h.b16 %v4901
        %v5042 = vunpack.c.l.b16 %v4902
        %v5043 = vunpack.c.h.b16 %v4902
        %v5044 = vunpack.c.l.b16 %v4903
        %v5045 = vunpack.c.h.b16 %v4903
        %v5046 = vunpack.c.l.b16 %v4904
        %v5047 = vunpack.c.h.b16 %v4904
        %v5048 = vunpack.c.l.b16 %v4905
        %v5049 = vunpack.c.h.b16 %v4905
        %v5050 = vunpack.c.l.b16 %v4906
        %v5051 = vunpack.c.h.b16 %v4906
        %v5052 = vunpack.c.l.b16 %v4907
        %v5053 = vunpack.c.h.b16 %v4907
        %v5054 = vunpack.c.l.b16 %v4908
        %v5055 = vunpack.c.h.b16 %v4908
        %v5056 = vunpack.c.l.b16 %v4909
        %v5057 = vunpack.c.h.b16 %v4909
        %v5058 = vunpack.c.l.b16 %v4910
        %v5059 = vunpack.c.h.b16 %v4910
        %v5060 = vunpack.c.l.b16 %v4911
        %v5061 = vunpack.c.h.b16 %v4911
        %v5062 = vunpack.c.l.b16 %v4912
        %v5063 = vunpack.c.h.b16 %v4912
        %v5064 = vunpack.c.l.b16 %v4913
        %v5065 = vunpack.c.h.b16 %v4913
        %v5066 = vunpack.c.l.b16 %v4914
        %v5067 = vunpack.c.h.b16 %v4914
        %v5068 = vunpack.c.l.b16 %v4915
        %v5069 = vunpack.c.h.b16 %v4915
        %v5070 = vunpack.c.l.b16 %v4916
        %v5071 = vunpack.c.h.b16 %v4916
        %v5072 = vunpack.c.l.b16 %v4917
        %v5073 = vunpack.c.h.b16 %v4917
        %v5074 = vunpack.c.l.b16 %v4918
        %v5075 = vunpack.c.h.b16 %v4918
        %v5076 = vunpack.c.l.b16 %v4919
        %v5077 = vunpack.c.h.b16 %v4919
        %v5078 = vunpack.c.l.b16 %v4920
        %v5079 = vunpack.c.h.b16 %v4920
        %v5080 = vunpack.c.l.b16 %v4921
        %v5081 = vunpack.c.h.b16 %v4921
        %v5082 = vunpack.c.l.b16 %v4922
        %v5083 = vunpack.c.h.b16 %v4922
        %v5084 = vunpack.c.l.b16 %v4923
        %v5085 = vunpack.c.h.b16 %v4923
        %v5086 = vunpack.c.l.b16 %v4924
        %v5087 = vunpack.c.h.b16 %v4924
        %v5088 = vunpack.c.l.b16 %v4925
        %v5089 = vunpack.c.h.b16 %v4925
        %v5090 = vunpack.c.l.b16 %v4926
        %v5091 = vunpack.c.h.b16 %v4926
        %v5092 = vunpack.c.l.b16 %v4927
        %v5093 = vunpack.c.h.b16 %v4927
        %v5094 = vunpack.c.l.b16 %v4928
        %v5095 = vunpack.c.h.b16 %v4928
        %v5096 = vunpack.c.l.b16 %v4929
        %v5097 = vunpack.c.h.b16 %v4929
        %v5098 = vunpack.c.l.b16 %v4930
        %v5099 = vunpack.c.h.b16 %v4930
        %v5100 = vunpack.c.l.b16 %v4931
        %v5101 = vunpack.c.h.b16 %v4931
        %v5102 = vunpack.c.l.b16 %v4932
        %v5103 = vunpack.c.h.b16 %v4932
        %v5104 = vunpack.c.l.b16 %v4933
        %v5105 = vunpack.c.h.b16 %v4933
        %v5106 = vunpack.c.l.b16 %v4934
        %v5107 = vunpack.c.h.b16 %v4934
        %v5108 = vunpack.c.l.b16 %v4935
        %v5109 = vunpack.c.h.b16 %v4935
        %v5110 = vpack.c.b16 %v5006, %v5002
        %v5111 = vpack.c.b16 %v5007, %v5003
        %v5112 = vpack.c.b16 %v5008, %v5004
        %v5113 = vpack.c.b16 %v5009, %v5005
        %v5114 = vpack.c.b16 %v5014, %v5010
        %v5115 = vpack.c.b16 %v5015, %v5011
        %v5116 = vpack.c.b16 %v5016, %v5012
        %v5117 = vpack.c.b16 %v5017, %v5013
        %v5118 = vpack.c.b16 %v5022, %v5018
        %v5119 = vpack.c.b16 %v5023, %v5019
        %v5120 = vpack.c.b16 %v5024, %v5020
        %v5121 = vpack.c.b16 %v5025, %v5021
        %v5122 = vpack.c.b16 %v5030, %v5026
        %v5123 = vpack.c.b16 %v5031, %v5027
        %v5124 = vpack.c.b16 %v5032, %v5028
        %v5125 = vpack.c.b16 %v5033, %v5029
        %v5126 = vpack.c.b16 %v5038, %v5034
        %v5127 = vpack.c.b16 %v5039, %v5035
        %v5128 = vpack.c.b16 %v5040, %v5036
        %v5129 = vpack.c.b16 %v5041, %v5037
        %v5130 = vpack.c.b16 %v5046, %v5042
        %v5131 = vpack.c.b16 %v5047, %v5043
        %v5132 = vpack.c.b16 %v5048, %v5044
        %v5133 = vpack.c.b16 %v5049, %v5045
        %v5134 = vpack.c.b16 %v5054, %v5050
        %v5135 = vpack.c.b16 %v5055, %v5051
        %v5136 = vpack.c.b16 %v5056, %v5052
        %v5137 = vpack.c.b16 %v5057, %v5053
        %v5138 = vpack.c.b16 %v5062, %v5058
        %v5139 = vpack.c.b16 %v5063, %v5059
        %v5140 = vpack.c.b16 %v5064, %v5060
        %v5141 = vpack.c.b16 %v5065, %v5061
        %v5142 = vpack.c.b16 %v5070, %v5066
        %v5143 = vpack.c.b16 %v5071, %v5067
        %v5144 = vpack.c.b16 %v5072, %v5068
        %v5145 = vpack.c.b16 %v5073, %v5069
        %v5146 = vpack.c.b16 %v5078, %v5074
        %v5147 = vpack.c.b16 %v5079, %v5075
        %v5148 = vpack.c.b16 %v5080, %v5076
        %v5149 = vpack.c.b16 %v5081, %v5077
        %v5150 = vpack.c.b16 %v5086, %v5082
        %v5151 = vpack.c.b16 %v5087, %v5083
        %v5152 = vpack.c.b16 %v5088, %v5084
        %v5153 = vpack.c.b16 %v5089, %v5085
        %v5154 = vpack.c.b16 %v5094, %v5090
        %v5155 = vpack.c.b16 %v5095, %v5091
        %v5156 = vpack.c.b16 %v5096, %v5092
        %v5157 = vpack.c.b16 %v5097, %v5093
        %v5158 = vpack.c.b16 %v5102, %v5098
        %v5159 = vpack.c.b16 %v5103, %v5099
        %v5160 = vpack.c.b16 %v5104, %v5100
        %v5161 = vpack.c.b16 %v5105, %v5101
        %v5162 = vpack.c.b16 %v5106, %v5106
        %v5163 = vpack.c.b16 %v5107, %v5107
        %v5164 = vpack.c.b16 %v5108, %v5108
        %v5165 = vpack.c.b16 %v5109, %v5109
        %v5219 = vsel %vm1916, %v4946, 0
        %v5222 = vsel %vm1920, %v5162, 0
        %v5225 = vsel %vm1920, %v5163, 0
        %v5228 = vsel %vm1920, %v5164, 0
        %v5231 = vsel %vm1920, %v5165, 0
        %5233 = vmatpush.bf16.msra.mxu0 %v5138
        %5234 = vmatpush.bf16.msra.mxu0 %v5134
        %5235 = vmatpush.bf16.msra.mxu0 %v5130
        %5236 = vmatpush.bf16.msra.mxu0 %v5126
        %5237 = vmatpush.bf16.msra.mxu0 %v5122
        %5238 = vmatpush.bf16.msra.mxu0 %v5118
        %5239 = vmatpush.bf16.msra.mxu0 %v5114
        %5240 = vmatpush.bf16.msra.mxu0 %v5110
        %5241 = vmatmul.bf16.gmra.mxu0 %v4945
        %v5242 = vpop.f32.mrf.mxu0
        %v5243 = vadd.f32 %v4940, %v5242
        %v5244 = vpop.f32.mrf.mxu0
        %5245 = vdwg.mxu0
        %5246 = vmatpush.bf16.msra.mxu0 0
        %5247 = vmatpush.bf16.msra.mxu0 0
        %5248 = vmatpush.bf16.msra.mxu0 %v5222
        %5249 = vmatpush.bf16.msra.mxu0 %v5158
        %5250 = vmatpush.bf16.msra.mxu0 %v5154
        %5251 = vmatpush.bf16.msra.mxu0 %v5150
        %5252 = vmatpush.bf16.msra.mxu0 %v5146
        %5253 = vmatpush.bf16.msra.mxu0 %v5142
        %5254 = vmatmul.bf16.gmra.mxu0 %v5219
        %v5255 = vpop.f32.mrf.mxu0
        %v5256 = vadd.f32 %v5243, %v5255
        %v5257 = vpop.f32.mrf.mxu0
        %5258 = vdwg.mxu0
        %5259 = vmatpush.bf16.msra.mxu0 %v5139
        %5260 = vmatpush.bf16.msra.mxu0 %v5135
        %5261 = vmatpush.bf16.msra.mxu0 %v5131
        %5262 = vmatpush.bf16.msra.mxu0 %v5127
        %5263 = vmatpush.bf16.msra.mxu0 %v5123
        %5264 = vmatpush.bf16.msra.mxu0 %v5119
        %5265 = vmatpush.bf16.msra.mxu0 %v5115
        %5266 = vmatpush.bf16.msra.mxu0 %v5111
        %5267 = vmatmul.bf16.gmra.mxu0 %v4945
        %v5268 = vpop.f32.mrf.mxu0
        %v5269 = vadd.f32 %v4940, %v5268
        %v5270 = vpop.f32.mrf.mxu0
        %5271 = vdwg.mxu0
        %5272 = vmatpush.bf16.msra.mxu0 0
        %5273 = vmatpush.bf16.msra.mxu0 0
        %5274 = vmatpush.bf16.msra.mxu0 %v5225
        %5275 = vmatpush.bf16.msra.mxu0 %v5159
        %5276 = vmatpush.bf16.msra.mxu0 %v5155
        %5277 = vmatpush.bf16.msra.mxu0 %v5151
        %5278 = vmatpush.bf16.msra.mxu0 %v5147
        %5279 = vmatpush.bf16.msra.mxu0 %v5143
        %5280 = vmatmul.bf16.gmra.mxu0 %v5219
        %v5281 = vpop.f32.mrf.mxu0
        %v5282 = vadd.f32 %v5269, %v5281
        %v5283 = vpop.f32.mrf.mxu0
        %5284 = vdwg.mxu0
        %5285 = vmatpush.bf16.msra.mxu0 %v5140
        %5286 = vmatpush.bf16.msra.mxu0 %v5136
        %5287 = vmatpush.bf16.msra.mxu0 %v5132
        %5288 = vmatpush.bf16.msra.mxu0 %v5128
        %5289 = vmatpush.bf16.msra.mxu0 %v5124
        %5290 = vmatpush.bf16.msra.mxu0 %v5120
        %5291 = vmatpush.bf16.msra.mxu0 %v5116
        %5292 = vmatpush.bf16.msra.mxu0 %v5112
        %5293 = vmatmul.bf16.gmra.mxu0 %v4945
        %v5294 = vpop.f32.mrf.mxu0
        %v5295 = vadd.f32 %v4940, %v5294
        %v5296 = vpop.f32.mrf.mxu0
        %5297 = vdwg.mxu0
        %5298 = vmatpush.bf16.msra.mxu0 0
        %5299 = vmatpush.bf16.msra.mxu0 0
        %5300 = vmatpush.bf16.msra.mxu0 %v5228
        %5301 = vmatpush.bf16.msra.mxu0 %v5160
        %5302 = vmatpush.bf16.msra.mxu0 %v5156
        %5303 = vmatpush.bf16.msra.mxu0 %v5152
        %5304 = vmatpush.bf16.msra.mxu0 %v5148
        %5305 = vmatpush.bf16.msra.mxu0 %v5144
        %5306 = vmatmul.bf16.gmra.mxu0 %v5219
        %v5307 = vpop.f32.mrf.mxu0
        %v5308 = vadd.f32 %v5295, %v5307
        %v5309 = vpop.f32.mrf.mxu0
        %5310 = vdwg.mxu0
        %5311 = vmatpush.bf16.msra.mxu0 %v5141
        %5312 = vmatpush.bf16.msra.mxu0 %v5137
        %5313 = vmatpush.bf16.msra.mxu0 %v5133
        %5314 = vmatpush.bf16.msra.mxu0 %v5129
        %5315 = vmatpush.bf16.msra.mxu0 %v5125
        %5316 = vmatpush.bf16.msra.mxu0 %v5121
        %5317 = vmatpush.bf16.msra.mxu0 %v5117
        %5318 = vmatpush.bf16.msra.mxu0 %v5113
        %5319 = vmatmul.bf16.gmra.mxu0 %v4945
        %v5320 = vpop.f32.mrf.mxu0
        %v5321 = vadd.f32 %v4940, %v5320
        %v5322 = vpop.f32.mrf.mxu0
        %5323 = vdwg.mxu0
        %5324 = vmatpush.bf16.msra.mxu0 0
        %5325 = vmatpush.bf16.msra.mxu0 0
        %5326 = vmatpush.bf16.msra.mxu0 %v5231
        %5327 = vmatpush.bf16.msra.mxu0 %v5161
        %5328 = vmatpush.bf16.msra.mxu0 %v5157
        %5329 = vmatpush.bf16.msra.mxu0 %v5153
        %5330 = vmatpush.bf16.msra.mxu0 %v5149
        %5331 = vmatpush.bf16.msra.mxu0 %v5145
        %5332 = vmatmul.bf16.gmra.mxu0 %v5219
        %v5333 = vpop.f32.mrf.mxu0
        %v5334 = vadd.f32 %v5321, %v5333
        %v5335 = vpop.f32.mrf.mxu0
        %5336 = vdwg.mxu0
        %v5337 = vmax.f32 %v5256, 0.0
        %v5338 = vmax.f32 %v5282, 0.0
        %v5339 = vmax.f32 %v5308, 0.0
        %v5340 = vmax.f32 %v5334, 0.0
        %5341 = vst [vmem:[%s340] sm:$0xff] %v5337
        %5342 = vst [vmem:[%s340 + $0x8] sm:$0xff] %v5338
        %5343 = vst [vmem:[%s340 + $0x10] sm:$0xff] %v5339
        %5344 = vst [vmem:[%s340 + $0x18] sm:$0xff] %v5340
        %s5345 = sand.u32 %s207, 1
        %s5346 = scalar_lea.sflag [#allocation6], %s5345
        %s5347 = sand.u32 %s207, 1
        %s5348 = smul.addr %s5347, 32
        %s5349 = scalar_lea.vmem [#allocation9], %s5348
        // Predicated region
        $region61: #{tpu_custom_call.1} parent=51 // pred_check
          %p5350 = pneg %p217
        $region62: #{tpu_custom_call.1} parent=51 // pred_check_branch
          %5352 = sbr.rel (%p5350) target = $region64
        $region63: #{tpu_custom_call.1} parent=51 // pred_region
          %5354 = vsyncadd %s5346, 0
          %s5355 = smul.addr %s26, 4
          %s5356 = smul.addr %s5355, 8
          %s5357 = scalar_lea.hbm %s8, %s5356
          %s5359 = sshll.u32 %s5349, 4
          %s5360 = int_to_ptr.vmem [resolvable:$true] %s5359
          %s5361 = sshll.u32 %s5357, 4
          %s5362 = int_to_ptr.hbm [resolvable:$true] %s5361
          %5364 = dma.vmem_to_hbm [thread:$0]  %s5360, 512, %s5362, %s5346
        $region64: #{tpu_custom_call.1} parent=51 // pred_fallthru
          _
      $region52: #{tpu_custom_call.1} parent=5 // pred_fallthru
        _
      %p5365 = scmp.le.s32.totalorder 2, %s21
      // Predicated region
      $region65: #{tpu_custom_call.1} parent=5 // pred_check
        %p5366 = pneg %p5365
      $region66: #{tpu_custom_call.1} parent=5 // pred_check_branch
        %5368 = sbr.rel (%p5366) target = $region68
      $region67: #{tpu_custom_call.1} parent=5 // pred_region
        %s5369 = ssub.s32 %s21, 2
        // Predicated region
        $region69: #{tpu_custom_call.1} parent=67 // pred_check
          %p5370 = pneg %p223
        $region70: #{tpu_custom_call.1} parent=67 // pred_check_branch
          %5372 = sbr.rel (%p5370) target = $region72
        $region71: #{tpu_custom_call.1} parent=67 // pred_region
          %s5373 = sand.u32 %s208, 1
          %s5374 = scalar_lea.sflag [#allocation6], %s5373
          %s5375 = sand.u32 %s208, 1
          %s5376 = smul.addr %s5375, 32
          %s5377 = scalar_lea.vmem [#allocation9], %s5376
          %5379 = dma.done %s5374, 512
        $region72: #{tpu_custom_call.1} parent=67 // pred_fallthru
          _
      $region68: #{tpu_custom_call.1} parent=5 // pred_fallthru
        _
    $region6: #{tpu_custom_call.1} parent=1 // loop_footer
      %s25 = sadd.s32 1, %s21
    $region7: #{tpu_custom_call.1} parent=1 // loop_footer_branch
      %20 = sbr.rel target = $region3
    $region8: #{tpu_custom_call.1} parent=1 // loop_exit
      _
    %5380 = vsyncpa [#allocation5], 1
    %s5381 = scalar_lea.sflag [#allocation5], 1
    %5382 = vsyncpa %s5381, 1
    %5383 = vsyncpa [#allocation8], 1
    %5384 = vsyncpa [#allocation6], 1
    %s5385 = scalar_lea.sflag [#allocation6], 1
    %5386 = vsyncpa %s5385, 1

</llo_original>
